<compile_context>
chip_gen: v6e
topology: v6e:2x2x1
jax: 0.10.0
libtpu: 0.0.40
codegen_flags: <defaults>
</compile_context>

<pallas_src>
import functools

import jax
import jax.numpy as jnp
from jax.experimental import pallas as pl
from jax.experimental.pallas import tpu as pltpu

LN_EPS = 1e-5                      # torch.nn.LayerNorm default
VMEM_LIMIT_BYTES = 48 * 1024 * 1024
WEIGHT_DTYPE = jnp.bfloat16        # MXU streaming dtype for weights
COMPUTE_DTYPE = jnp.bfloat16       # MXU streaming dtype for activations


# ----------------------------------------------------------------------------
# In-kernel helpers
# ----------------------------------------------------------------------------
def _erf(x):
    # Abramowitz & Stegun 7.1.26 rational approximation, |err| <= 1.5e-7.
    a1, a2, a3, a4, a5 = (0.254829592, -0.284496736, 1.421413741,
                          -1.453152027, 1.061405429)
    p = 0.3275911
    sgn = jnp.where(x >= 0.0, 1.0, -1.0)
    ax = jnp.abs(x)
    t = 1.0 / (1.0 + p * ax)
    poly = ((((a5 * t + a4) * t + a3) * t + a2) * t + a1) * t
    return sgn * (1.0 - poly * jnp.exp(-ax * ax))


def _gelu(x):
    # PyTorch F.gelu default (exact, erf-based) via the rational erf approx.
    return 0.5 * x * (1.0 + _erf(x * 0.7071067811865476))


# ----------------------------------------------------------------------------
# Fused linear kernel:  y = [residual +] act( [LN](x) @ W + b )
#   (W is already the transposed (D, N) bf16 slab -> natural MXU NN form)
# ----------------------------------------------------------------------------
def _make_linear_kernel(fuse_ln, has_bias, act, fuse_res, use_scratch,
                        compute_dtype):
    def kernel(*refs):
        idx = 0
        x_ref = refs[idx]; idx += 1
        if fuse_ln:
            g_ref, bln_ref = refs[idx], refs[idx + 1]; idx += 2
        w_ref = refs[idx]; idx += 1
        if has_bias:
            b_ref = refs[idx]; idx += 1
        if fuse_res:
            r_ref = refs[idx]; idx += 1
        o_ref = refs[idx]; idx += 1
        xn_ref = refs[idx] if use_scratch else None

        def normalized():
            x = x_ref[...].astype(jnp.float32)
            mean = jnp.mean(x, axis=-1, keepdims=True)
            xc = x - mean
            var = jnp.mean(xc * xc, axis=-1, keepdims=True)
            x = xc * jax.lax.rsqrt(var + LN_EPS)
            x = (x * g_ref[...].astype(jnp.float32)
                 + bln_ref[...].astype(jnp.float32))
            return x.astype(compute_dtype)     # explicit bf16 before the MXU

        if use_scratch:
            # LN hoisted out of the per-out-tile loop: compute once per row
            # tile (inner grid axis = out-feature tiles, marked "arbitrary").
            @pl.when(pl.program_id(1) == 0)
            def _():
                xn_ref[...] = normalized()
            xl = xn_ref[...]
        elif fuse_ln:
            xl = normalized()
        else:
            xl = x_ref[...].astype(compute_dtype)

        # bf16 x bf16 -> f32 accumulate on the MXU.
        y = jnp.dot(xl, w_ref[...], preferred_element_type=jnp.float32)
        if has_bias:
            y = y + b_ref[...].astype(jnp.float32)
        if act == "gelu":
            y = _gelu(y)
        if fuse_res:
            y = y + r_ref[...].astype(jnp.float32)
        o_ref[...] = y.astype(o_ref.dtype)

    return kernel


def fused_linear(x2d, w_t, bias, *, ln_params=None, act=None, residual=None,
                 tm_cap=256, tn_cap=512, out_dtype=None,
                 compute_dtype=COMPUTE_DTYPE):
    """x2d: (M, D).  w_t: (D, N) pre-transposed bf16 weight.  Returns (M, N)."""
    M, D = x2d.shape
    D2, N = w_t.shape
    assert D2 == D
    out_dtype = out_dtype or x2d.dtype

    # Pad rows to a sublane multiple (avoids masked partial rows in every tile).
    M_pad = ((M + 7) // 8) * 8
    pad = M_pad - M
    if pad:
        x2d = jnp.pad(x2d, ((0, pad), (0, 0)))
        if residual is not None:
            residual = jnp.pad(residual, ((0, pad), (0, 0)))

    TM = min(M_pad, tm_cap)
    TN = min(N, tn_cap)
    n_i = pl.cdiv(M_pad, TM)
    n_j = pl.cdiv(N, TN)

    fuse_ln = ln_params is not None
    has_bias = bias is not None
    fuse_res = residual is not None

    # Grid ordering:
    #  - single row tile -> (rows, cols): x + LN scratch resident, cols stream.
    #  - multiple row tiles -> (cols, rows): weight block constant along the
    #    inner axis -> exactly one HBM pass over the (N, D) weight per layer.
    rows_outer = (n_i == 1)
    if rows_outer:
        grid = (n_i, n_j)
        x_map = lambda i, j: (i, 0)
        p_map = lambda i, j: (0, 0)
        w_map = lambda i, j: (0, j)
        b_map = lambda i, j: (0, j)
        io_map = lambda i, j: (i, j)
    else:
        grid = (n_j, n_i)
        x_map = lambda j, i: (i, 0)
        p_map = lambda j, i: (0, 0)
        w_map = lambda j, i: (0, j)
        b_map = lambda j, i: (0, j)
        io_map = lambda j, i: (i, j)

    in_specs = [pl.BlockSpec((TM, D), x_map)]
    inputs = [x2d]
    if fuse_ln:
        gamma, beta = ln_params
        in_specs += [pl.BlockSpec((1, D), p_map), pl.BlockSpec((1, D), p_map)]
        inputs += [gamma.reshape(1, D).astype(jnp.float32),
                   beta.reshape(1, D).astype(jnp.float32)]
    in_specs.append(pl.BlockSpec((D, TN), w_map))
    inputs.append(w_t)
    if has_bias:
        in_specs.append(pl.BlockSpec((1, TN), b_map))
        inputs.append(bias.reshape(1, N).astype(jnp.float32))
    if fuse_res:
        in_specs.append(pl.BlockSpec((TM, TN), io_map))
        inputs.append(residual)

    use_scratch = fuse_ln and rows_outer
    scratch_shapes = ([pltpu.VMEM((TM, D), compute_dtype)]
                      if use_scratch else [])

    kernel = _make_linear_kernel(fuse_ln, has_bias, act, fuse_res,
                                 use_scratch, compute_dtype)

    # Dtype- and streaming-aware byte accounting.
    x_bytes = M_pad * D * x2d.dtype.itemsize * (1 if rows_outer else n_j)
    w_bytes = D * N * w_t.dtype.itemsize * (n_i if rows_outer else 1)
    out_bytes = M_pad * N * jnp.dtype(out_dtype).itemsize
    res_bytes = M_pad * N * residual.dtype.itemsize if fuse_res else 0
    bias_bytes = N * 4 if has_bias else 0
    cost = pl.CostEstimate(
        flops=2 * M_pad * N * D,
        transcendentals=(M_pad * N if act == "gelu" else 0),
        bytes_accessed=x_bytes + w_bytes + out_bytes + res_bytes + bias_bytes)

    result = pl.pallas_call(
        kernel,
        out_shape=jax.ShapeDtypeStruct((M_pad, N), out_dtype),
        grid_spec=pltpu.PrefetchScalarGridSpec(
            num_scalar_prefetch=0,
            grid=grid,
            in_specs=in_specs,
            out_specs=pl.BlockSpec((TM, TN), io_map),
            scratch_shapes=scratch_shapes),
        compiler_params=pltpu.CompilerParams(
            dimension_semantics=("parallel", "arbitrary"),
            vmem_limit_bytes=VMEM_LIMIT_BYTES),
        cost_estimate=cost,
    )(*inputs)
    return result[:M] if pad else result


# ----------------------------------------------------------------------------
# Multi-head self-attention kernel over a (batch, head-group) grid.
# Head-group slices of the fused qkv are selected by three index_maps into the
# same array; per-head outputs are written with lane-dense slice stores.
# ----------------------------------------------------------------------------
def _make_attention_kernel(heads_per_group, head_dim, scale):
    def kernel(q_ref, k_ref, v_ref, o_ref):
        for h in range(heads_per_group):          # static unroll, heads small
            sl = slice(h * head_dim, (h + 1) * head_dim)
            q = q_ref[:, sl]                       # bf16
            k = k_ref[:, sl]
            v = v_ref[:, sl]
            # s = q @ k^T * scale  (scale uses FULL dim, matching the module)
            s = jax.lax.dot_general(
                q, k, dimension_numbers=(((1,), (1,)), ((), ())),
                preferred_element_type=jnp.float32) * scale
            s = s - jnp.max(s, axis=-1, keepdims=True)
            p = jnp.exp(s)
            denom = jnp.sum(p, axis=-1, keepdims=True)
            p = p * pl.reciprocal(denom, approx=True)   # EUP, ~free
            out_h = jnp.dot(p.astype(v.dtype), v,
                            preferred_element_type=jnp.float32)
            o_ref[:, sl] = out_h.astype(o_ref.dtype)    # per-head slice store
    return kernel


def attention(qkv, *, heads, scale, out_dtype):
    """qkv: (B, S, 3*dim) fused projection (q|k|v).  Returns (B, S, dim)."""
    B, S, three_dim = qkv.shape
    dim = three_dim // 3
    head_dim = dim // heads

    # Smallest head-group whose slice is lane-aligned (multiple of 128 cols).
    hpg = heads
    for cand in range(1, heads + 1):
        if heads % cand == 0 and (cand * head_dim) % 128 == 0:
            hpg = cand
            break
    g = hpg * head_dim
    n_groups = heads // hpg          # dim == n_groups * g

    kernel = _make_attention_kernel(hpg, head_dim, scale)
    q_spec = pl.BlockSpec((None, S, g), lambda b, hg: (b, 0, hg))
    k_spec = pl.BlockSpec((None, S, g), lambda b, hg: (b, 0, n_groups + hg))
    v_spec = pl.BlockSpec((None, S, g), lambda b, hg: (b, 0, 2 * n_groups + hg))
    o_spec = pl.BlockSpec((None, S, g), lambda b, hg: (b, 0, hg))

    cost = pl.CostEstimate(
        flops=4 * B * heads * S * S * head_dim,
        transcendentals=B * heads * S * S,
        bytes_accessed=(B * S * three_dim * qkv.dtype.itemsize
                        + B * S * dim * jnp.dtype(out_dtype).itemsize))

    return pl.pallas_call(
        kernel,
        out_shape=jax.ShapeDtypeStruct((B, S, dim), out_dtype),
        grid_spec=pltpu.PrefetchScalarGridSpec(
            num_scalar_prefetch=0,
            grid=(B, n_groups),
            in_specs=[q_spec, k_spec, v_spec],
            out_specs=o_spec),
        compiler_params=pltpu.CompilerParams(
            dimension_semantics=("parallel", "parallel"),
            vmem_limit_bytes=VMEM_LIMIT_BYTES),
        cost_estimate=cost,
    )(qkv, qkv, qkv)


# ----------------------------------------------------------------------------
# One-time parameter preparation: transpose (out,in) -> (in,out), cast to bf16.
# ----------------------------------------------------------------------------
def prepare_params(raw, weight_dtype=WEIGHT_DTYPE):
    def wt(w):
        return jnp.asarray(w, jnp.float32).T.astype(weight_dtype)

    def f32(v):
        return None if v is None else jnp.asarray(v, jnp.float32)

    out = dict(emb_wT=wt(raw["emb_w"]), emb_b=f32(raw["emb_b"]),
               fin_wT=wt(raw["fin_w"]), fin_b=f32(raw["fin_b"]), blocks=[])
    for blk in raw["blocks"]:
        out["blocks"].append(dict(
            ln1_g=f32(blk["ln1_g"]), ln1_b=f32(blk["ln1_b"]),
            qkv_wT=wt(blk["qkv_w"]),
            o_wT=wt(blk["o_w"]), o_b=f32(blk["o_b"]),
            ln2_g=f32(blk["ln2_g"]), ln2_b=f32(blk["ln2_b"]),
            fc1_wT=wt(blk["fc1_w"]), fc1_b=f32(blk["fc1_b"]),
            fc2_wT=wt(blk["fc2_w"]), fc2_b=f32(blk["fc2_b"])))
    return out


# ----------------------------------------------------------------------------
# Full EmbeddingTransformer forward (Pallas)
# ----------------------------------------------------------------------------
def embedding_transformer_forward(x, params, *, heads):
    """x: (B, S, D). Returns (B, S, OUT_DIM).  Dropout p=0 -> identity."""
    B, S, D = x.shape
    scale = float(D) ** -0.5            # module uses full dim, not head dim
    xf = x.reshape(B * S, D).astype(jnp.float32)

    # LinearEmbeddingLayer (residual stream stays f32)
    xf = fused_linear(xf, params["emb_wT"], params["emb_b"],
                      out_dtype=jnp.float32)

    # Encoder blocks: x += MSA(LN(x)); x += MLP(LN(x))
    for blk in params["blocks"]:
        qkv = fused_linear(xf, blk["qkv_wT"], None,
                           ln_params=(blk["ln1_g"], blk["ln1_b"]),
                           out_dtype=jnp.bfloat16)
        attn = attention(qkv.reshape(B, S, 3 * D), heads=heads, scale=scale,
                         out_dtype=jnp.bfloat16)
        xf = fused_linear(attn.reshape(B * S, D), blk["o_wT"], blk["o_b"],
                          residual=xf, out_dtype=jnp.float32)
        h = fused_linear(xf, blk["fc1_wT"], blk["fc1_b"],
                         ln_params=(blk["ln2_g"], blk["ln2_b"]), act="gelu",
                         out_dtype=jnp.bfloat16)
        xf = fused_linear(h, blk["fc2_wT"], blk["fc2_b"], residual=xf,
                          out_dtype=jnp.float32)

    # final_linear
    y = fused_linear(xf, params["fin_wT"], params["fin_b"],
                     out_dtype=jnp.float32)
    return y.reshape(B, S, -1)


# ----------------------------------------------------------------------------
# Pure-JAX reference (mirrors the PyTorch forward; weights rounded to the same
# bf16 values the kernels stream, so the comparison isolates pipeline rounding)
# ----------------------------------------------------------------------------
def reference_forward(x, raw_params, *, heads, weight_dtype=WEIGHT_DTYPE):
    def rw(w):
        return w.astype(weight_dtype).astype(jnp.float32)

    def linear(t, w, b):
        y = t @ rw(w).T
        return y if b is None else y + b

    def layernorm(t, g, b):
        m = jnp.mean(t, axis=-1, keepdims=True)
        v = jnp.mean((t - m) ** 2, axis=-1, keepdims=True)
        return (t - m) / jnp.sqrt(v + LN_EPS) * g + b

    B, S, D = x.shape
    hd = D // heads
    scale = float(D) ** -0.5
    x = linear(x, raw_params["emb_w"], raw_params["emb_b"])
    for blk in raw_params["blocks"]:
        h = layernorm(x, blk["ln1_g"], blk["ln1_b"])
        qkv = linear(h, blk["qkv_w"], None).reshape(B, S, 3, heads, hd)
        q = jnp.transpose(qkv[:, :, 0], (0, 2, 1, 3))
        k = jnp.transpose(qkv[:, :, 1], (0, 2, 1, 3))
        v = jnp.transpose(qkv[:, :, 2], (0, 2, 1, 3))
        s = jnp.einsum("bhqd,bhkd->bhqk", q, k) * scale
        p = jax.nn.softmax(s, axis=-1)
        o = jnp.einsum("bhqk,bhkd->bhqd", p, v)
        o = jnp.transpose(o, (0, 2, 1, 3)).reshape(B, S, D)
        x = x + linear(o, blk["o_w"], blk["o_b"])
        h = layernorm(x, blk["ln2_g"], blk["ln2_b"])
        h = jax.nn.gelu(linear(h, blk["fc1_w"], blk["fc1_b"]),
                        approximate=False)
        x = x + linear(h, blk["fc2_w"], blk["fc2_b"])
    return linear(x, raw_params["fin_w"], raw_params["fin_b"])


# ----------------------------------------------------------------------------
# Test
# ----------------------------------------------------------------------------
if __name__ == "__main__":
    # Small analog of the real config (dim=2048, heads=8, mlp_dim=2048,
    # depth=2, seq=77, final 2048->4096):
    B, S, D = 2, 8, 128
    HEADS = 8
    MLP_DIM = 128        # module uses mlp_dim == dim
    OUT_DIM = 2 * D      # module: 2048 -> 4096
    DEPTH = 2

    key = jax.random.PRNGKey(0)

    def init_linear(k, out_dim, in_dim, with_bias=True):
        # PyTorch nn.Linear default init: U(-1/sqrt(in), 1/sqrt(in))
        kw, kb = jax.random.split(k)
        bound = 1.0 / (in_dim ** 0.5)
        w = jax.random.uniform(kw, (out_dim, in_dim), minval=-bound,
                               maxval=bound, dtype=jnp.float32)
        b = (jax.random.uniform(kb, (out_dim,), minval=-bound, maxval=bound,
                                dtype=jnp.float32) if with_bias else None)
        return w, b

    keys = jax.random.split(key, 3 + DEPTH)
    kx, kemb, kfin = keys[0], keys[1], keys[2]
    x = jax.random.normal(kx, (B, S, D), dtype=jnp.float32)

    emb_w, emb_b = init_linear(kemb, D, D)
    blocks = []
    for d in range(DEPTH):
        kq, ko, k1, k2 = jax.random.split(keys[3 + d], 4)
        qkv_w, _ = init_linear(kq, 3 * D, D, with_bias=False)
        o_w, o_b = init_linear(ko, D, D)
        fc1_w, fc1_b = init_linear(k1, MLP_DIM, D)
        fc2_w, fc2_b = init_linear(k2, D, MLP_DIM)
        blocks.append(dict(
            ln1_g=jnp.ones((D,), jnp.float32),
            ln1_b=jnp.zeros((D,), jnp.float32),
            qkv_w=qkv_w, o_w=o_w, o_b=o_b,
            ln2_g=jnp.ones((D,), jnp.float32),
            ln2_b=jnp.zeros((D,), jnp.float32),
            fc1_w=fc1_w, fc1_b=fc1_b, fc2_w=fc2_w, fc2_b=fc2_b))
    fin_w, fin_b = init_linear(kfin, OUT_DIM, D)
    raw_params = dict(emb_w=emb_w, emb_b=emb_b, blocks=blocks,
                      fin_w=fin_w, fin_b=fin_b)

    params = prepare_params(raw_params)      # one-time transpose + bf16 cast

    fwd = jax.jit(functools.partial(embedding_transformer_forward, heads=HEADS))
    out = jax.block_until_ready(fwd(x, params))

    ref = reference_forward(x, raw_params, heads=HEADS)
    assert out.shape == (B, S, OUT_DIM), out.shape
    max_err = float(jnp.max(jnp.abs(out - ref)))
    assert jnp.allclose(out, ref, atol=3e-2, rtol=3e-2), f"max abs err {max_err}"

    print("KERNEL_OK")
</pallas_src>

<mosaic_0001>
module attributes {stable_mosaic.version = 11 : i64} {
  func.func @kernel(%arg0: i32, %arg1: i32, %arg2: memref<16x128xbf16, #tpu.memory_space<vmem>>, %arg3: memref<128x128xbf16, #tpu.memory_space<vmem>>, %arg4: memref<1x128xf32, #tpu.memory_space<vmem>>, %arg5: memref<16x128xf32, #tpu.memory_space<vmem>>, %arg6: memref<16x128xf32, #tpu.memory_space<vmem>>) attributes {dimension_semantics = [#tpu.dimension_semantics<parallel>, #tpu.dimension_semantics<arbitrary>], iteration_bounds = array<i64: 1, 1>, scalar_prefetch = 0 : i64, scratch_operands = 0 : i64, tpu.core_type = #tpu.core_type<tc>, window_params = [{transform_indices = @transform_0, window_bounds = array<i64: 16, 128>}, {transform_indices = @transform_1, window_bounds = array<i64: 128, 128>}, {transform_indices = @transform_2, window_bounds = array<i64: 1, 128>}, {transform_indices = @transform_3, window_bounds = array<i64: 16, 128>}, {transform_indices = @transform_4, window_bounds = array<i64: 16, 128>}]} {
    %c0 = arith.constant 0 : index
    %c0_0 = arith.constant 0 : index
    %0 = vector.load %arg2[%c0, %c0_0] : memref<16x128xbf16, #tpu.memory_space<vmem>>, vector<16x128xbf16>
    %c0_1 = arith.constant 0 : index
    %c0_2 = arith.constant 0 : index
    %1 = vector.load %arg3[%c0_1, %c0_2] : memref<128x128xbf16, #tpu.memory_space<vmem>>, vector<128x128xbf16>
    %cst = arith.constant dense<0.000000e+00> : vector<16x128xf32>
    %2 = tpu.matmul %0, %1, %cst {dimension_numbers = #tpu.dot_dimension_numbers<[1], [0], [0], [1], [0, 0, 1, 1], [], []>} : vector<16x128xbf16>, vector<128x128xbf16>, vector<16x128xf32> -> vector<16x128xf32>
    %c0_3 = arith.constant 0 : index
    %c0_4 = arith.constant 0 : index
    %3 = vector.load %arg4[%c0_3, %c0_4] : memref<1x128xf32, #tpu.memory_space<vmem>>, vector<1x128xf32>
    %4 = vector.broadcast %3 : vector<1x128xf32> to vector<16x128xf32>
    %5 = arith.addf %2, %4 : vector<16x128xf32>
    %c0_5 = arith.constant 0 : index
    %c0_6 = arith.constant 0 : index
    %6 = vector.load %arg5[%c0_5, %c0_6] : memref<16x128xf32, #tpu.memory_space<vmem>>, vector<16x128xf32>
    %7 = arith.addf %5, %6 : vector<16x128xf32>
    %c0_7 = arith.constant 0 : index
    %c0_8 = arith.constant 0 : index
    %8 = vector.load %arg6[%c0_7, %c0_8] : memref<16x128xf32, #tpu.memory_space<vmem>>, vector<16x128xf32>
    tpu.vector_store %arg6[%c0_7, %c0_8], %7 {strides = array<i32>} : memref<16x128xf32, #tpu.memory_space<vmem>>, vector<16x128xf32>,
    return
  }
  func.func @transform_0(%arg0: i32, %arg1: i32) -> (i32, i32) {
    %c0_i32 = arith.constant 0 : i32
    %c0_i32_0 = arith.constant 0 : i32
    return %arg0, %c0_i32 : i32, i32
  }
  func.func @transform_1(%arg0: i32, %arg1: i32) -> (i32, i32) {
    %c0_i32 = arith.constant 0 : i32
    %c0_i32_0 = arith.constant 0 : i32
    return %c0_i32, %arg1 : i32, i32
  }
  func.func @transform_2(%arg0: i32, %arg1: i32) -> (i32, i32) {
    %c0_i32 = arith.constant 0 : i32
    %c0_i32_0 = arith.constant 0 : i32
    return %c0_i32, %arg1 : i32, i32
  }
  func.func @transform_3(%arg0: i32, %arg1: i32) -> (i32, i32) {
    %c0_i32 = arith.constant 0 : i32
    return %arg0, %arg1 : i32, i32
  }
  func.func @transform_4(%arg0: i32, %arg1: i32) -> (i32, i32) {
    %c0_i32 = arith.constant 0 : i32
    return %arg0, %arg1 : i32, i32
  }
}

module attributes {stable_mosaic.version = 11 : i64} {
  func.func @kernel(%arg0: i32, %arg1: i32, %arg2: memref<16x128xf32, #tpu.memory_space<vmem>>, %arg3: memref<1x128xf32, #tpu.memory_space<vmem>>, %arg4: memref<1x128xf32, #tpu.memory_space<vmem>>, %arg5: memref<128x384xbf16, #tpu.memory_space<vmem>>, %arg6: memref<16x384xbf16, #tpu.memory_space<vmem>>, %arg7: memref<16x128xbf16, #tpu.memory_space<vmem>>) attributes {dimension_semantics = [#tpu.dimension_semantics<parallel>, #tpu.dimension_semantics<arbitrary>], iteration_bounds = array<i64: 1, 1>, scalar_prefetch = 0 : i64, scratch_operands = 1 : i64, tpu.core_type = #tpu.core_type<tc>, window_params = [{transform_indices = @transform_0, window_bounds = array<i64: 16, 128>}, {pipeline_mode = #tpu.pipeline_mode<synchronous>, transform_indices = @transform_1, window_bounds = array<i64: 1, 128>}, {pipeline_mode = #tpu.pipeline_mode<synchronous>, transform_indices = @transform_2, window_bounds = array<i64: 1, 128>}, {transform_indices = @transform_3, window_bounds = array<i64: 128, 384>}, {transform_indices = @transform_4, window_bounds = array<i64: 16, 384>}]} {
    %c0_i32 = arith.constant 0 : i32
    %0 = arith.cmpi eq, %arg1, %c0_i32 : i32
    %1 = arith.extui %0 : i1 to i32
    %c0_i32_0 = arith.constant 0 : i32
    %2 = arith.cmpi ne, %1, %c0_i32_0 : i32
    scf.if %2 {
      %c0_6 = arith.constant 0 : index
      %c0_7 = arith.constant 0 : index
      %8 = vector.load %arg2[%c0_6, %c0_7] : memref<16x128xf32, #tpu.memory_space<vmem>>, vector<16x128xf32>
      %cst_8 = arith.constant dense<0.000000e+00> : vector<16xf32>
      %9 = vector.multi_reduction <add>, %8, %cst_8 [1] : vector<16x128xf32> to vector<16xf32>
      %10 = vector.shape_cast %9 : vector<16xf32> to vector<16x1xf32>
      %cst_9 = arith.constant 1.280000e+02 : f32
      %11 = vector.broadcast %cst_9 : f32 to vector<16x1xf32>
      %12 = arith.divf %10, %11 : vector<16x1xf32>
      %13 = vector.broadcast %12 : vector<16x1xf32> to vector<16x128xf32>
      %14 = arith.subf %8, %13 : vector<16x128xf32>
      %15 = arith.mulf %14, %14 : vector<16x128xf32>
      %cst_10 = arith.constant dense<0.000000e+00> : vector<16xf32>
      %16 = vector.multi_reduction <add>, %15, %cst_10 [1] : vector<16x128xf32> to vector<16xf32>
      %17 = vector.shape_cast %16 : vector<16xf32> to vector<16x1xf32>
      %cst_11 = arith.constant 1.280000e+02 : f32
      %18 = vector.broadcast %cst_11 : f32 to vector<16x1xf32>
      %19 = arith.divf %17, %18 : vector<16x1xf32>
      %cst_12 = arith.constant 9.99999974E-6 : f32
      %20 = vector.broadcast %cst_12 : f32 to vector<16x1xf32>
      %21 = arith.addf %19, %20 : vector<16x1xf32>
      %22 = math.rsqrt %21 : vector<16x1xf32>
      %23 = vector.broadcast %22 : vector<16x1xf32> to vector<16x128xf32>
      %24 = arith.mulf %14, %23 : vector<16x128xf32>
      %c0_13 = arith.constant 0 : index
      %c0_14 = arith.constant 0 : index
      %25 = vector.load %arg3[%c0_13, %c0_14] : memref<1x128xf32, #tpu.memory_space<vmem>>, vector<1x128xf32>
      %26 = vector.broadcast %25 : vector<1x128xf32> to vector<16x128xf32>
      %27 = arith.mulf %24, %26 : vector<16x128xf32>
      %c0_15 = arith.constant 0 : index
      %c0_16 = arith.constant 0 : index
      %28 = vector.load %arg4[%c0_15, %c0_16] : memref<1x128xf32, #tpu.memory_space<vmem>>, vector<1x128xf32>
      %29 = vector.broadcast %28 : vector<1x128xf32> to vector<16x128xf32>
      %30 = arith.addf %27, %29 : vector<16x128xf32>
      %31 = arith.truncf %30 : vector<16x128xf32> to vector<16x128xbf16>
      %c0_17 = arith.constant 0 : index
      %c0_18 = arith.constant 0 : index
      %32 = vector.load %arg7[%c0_17, %c0_18] : memref<16x128xbf16, #tpu.memory_space<vmem>>, vector<16x128xbf16>
      tpu.vector_store %arg7[%c0_17, %c0_18], %31 {strides = array<i32>} : memref<16x128xbf16, #tpu.memory_space<vmem>>, vector<16x128xbf16>,
    } else {
    }
    %c0 = arith.constant 0 : index
    %c0_1 = arith.constant 0 : index
    %3 = vector.load %arg7[%c0, %c0_1] : memref<16x128xbf16, #tpu.memory_space<vmem>>, vector<16x128xbf16>
    %c0_2 = arith.constant 0 : index
    %c0_3 = arith.constant 0 : index
    %4 = vector.load %arg5[%c0_2, %c0_3] : memref<128x384xbf16, #tpu.memory_space<vmem>>, vector<128x384xbf16>
    %cst = arith.constant dense<0.000000e+00> : vector<16x384xf32>
    %5 = tpu.matmul %3, %4, %cst {dimension_numbers = #tpu.dot_dimension_numbers<[1], [0], [0], [1], [0, 0, 1, 1], [], []>} : vector<16x128xbf16>, vector<128x384xbf16>, vector<16x384xf32> -> vector<16x384xf32>
    %6 = arith.truncf %5 : vector<16x384xf32> to vector<16x384xbf16>
    %c0_4 = arith.constant 0 : index
    %c0_5 = arith.constant 0 : index
    %7 = vector.load %arg6[%c0_4, %c0_5] : memref<16x384xbf16, #tpu.memory_space<vmem>>, vector<16x384xbf16>
    tpu.vector_store %arg6[%c0_4, %c0_5], %6 {strides = array<i32>} : memref<16x384xbf16, #tpu.memory_space<vmem>>, vector<16x384xbf16>,
    return
  }
  func.func @transform_0(%arg0: i32, %arg1: i32) -> (i32, i32) {
    %c0_i32 = arith.constant 0 : i32
    %c0_i32_0 = arith.constant 0 : i32
    return %arg0, %c0_i32 : i32, i32
  }
  func.func @transform_1(%arg0: i32, %arg1: i32) -> (i32, i32) {
    %c0_i32 = arith.constant 0 : i32
    %c0_i32_0 = arith.constant 0 : i32
    %c0_i32_1 = arith.constant 0 : i32
    return %c0_i32, %c0_i32_0 : i32, i32
  }
  func.func @transform_2(%arg0: i32, %arg1: i32) -> (i32, i32) {
    %c0_i32 = arith.constant 0 : i32
    %c0_i32_0 = arith.constant 0 : i32
    %c0_i32_1 = arith.constant 0 : i32
    return %c0_i32, %c0_i32_0 : i32, i32
  }
  func.func @transform_3(%arg0: i32, %arg1: i32) -> (i32, i32) {
    %c0_i32 = arith.constant 0 : i32
    %c0_i32_0 = arith.constant 0 : i32
    return %c0_i32, %arg1 : i32, i32
  }
  func.func @transform_4(%arg0: i32, %arg1: i32) -> (i32, i32) {
    %c0_i32 = arith.constant 0 : i32
    return %arg0, %arg1 : i32, i32
  }
}

module attributes {stable_mosaic.version = 11 : i64} {
  func.func @kernel(%arg0: i32, %arg1: i32, %arg2: memref<16x128xf32, #tpu.memory_space<vmem>>, %arg3: memref<128x128xbf16, #tpu.memory_space<vmem>>, %arg4: memref<1x128xf32, #tpu.memory_space<vmem>>, %arg5: memref<16x128xf32, #tpu.memory_space<vmem>>) attributes {dimension_semantics = [#tpu.dimension_semantics<parallel>, #tpu.dimension_semantics<arbitrary>], iteration_bounds = array<i64: 1, 1>, scalar_prefetch = 0 : i64, scratch_operands = 0 : i64, tpu.core_type = #tpu.core_type<tc>, window_params = [{transform_indices = @transform_0, window_bounds = array<i64: 16, 128>}, {transform_indices = @transform_1, window_bounds = array<i64: 128, 128>}, {transform_indices = @transform_2, window_bounds = array<i64: 1, 128>}, {transform_indices = @transform_3, window_bounds = array<i64: 16, 128>}]} {
    %c0 = arith.constant 0 : index
    %c0_0 = arith.constant 0 : index
    %0 = vector.load %arg2[%c0, %c0_0] : memref<16x128xf32, #tpu.memory_space<vmem>>, vector<16x128xf32>
    %1 = arith.truncf %0 : vector<16x128xf32> to vector<16x128xbf16>
    %c0_1 = arith.constant 0 : index
    %c0_2 = arith.constant 0 : index
    %2 = vector.load %arg3[%c0_1, %c0_2] : memref<128x128xbf16, #tpu.memory_space<vmem>>, vector<128x128xbf16>
    %cst = arith.constant dense<0.000000e+00> : vector<16x128xf32>
    %3 = tpu.matmul %1, %2, %cst {dimension_numbers = #tpu.dot_dimension_numbers<[1], [0], [0], [1], [0, 0, 1, 1], [], []>} : vector<16x128xbf16>, vector<128x128xbf16>, vector<16x128xf32> -> vector<16x128xf32>
    %c0_3 = arith.constant 0 : index
    %c0_4 = arith.constant 0 : index
    %4 = vector.load %arg4[%c0_3, %c0_4] : memref<1x128xf32, #tpu.memory_space<vmem>>, vector<1x128xf32>
    %5 = vector.broadcast %4 : vector<1x128xf32> to vector<16x128xf32>
    %6 = arith.addf %3, %5 : vector<16x128xf32>
    %c0_5 = arith.constant 0 : index
    %c0_6 = arith.constant 0 : index
    %7 = vector.load %arg5[%c0_5, %c0_6] : memref<16x128xf32, #tpu.memory_space<vmem>>, vector<16x128xf32>
    tpu.vector_store %arg5[%c0_5, %c0_6], %6 {strides = array<i32>} : memref<16x128xf32, #tpu.memory_space<vmem>>, vector<16x128xf32>,
    return
  }
  func.func @transform_0(%arg0: i32, %arg1: i32) -> (i32, i32) {
    %c0_i32 = arith.constant 0 : i32
    %c0_i32_0 = arith.constant 0 : i32
    return %arg0, %c0_i32 : i32, i32
  }
  func.func @transform_1(%arg0: i32, %arg1: i32) -> (i32, i32) {
    %c0_i32 = arith.constant 0 : i32
    %c0_i32_0 = arith.constant 0 : i32
    return %c0_i32, %arg1 : i32, i32
  }
  func.func @transform_2(%arg0: i32, %arg1: i32) -> (i32, i32) {
    %c0_i32 = arith.constant 0 : i32
    %c0_i32_0 = arith.constant 0 : i32
    return %c0_i32, %arg1 : i32, i32
  }
  func.func @transform_3(%arg0: i32, %arg1: i32) -> (i32, i32) {
    %c0_i32 = arith.constant 0 : i32
    return %arg0, %arg1 : i32, i32
  }
}

module attributes {stable_mosaic.version = 11 : i64} {
  func.func @kernel(%arg0: i32, %arg1: i32, %arg2: memref<1x8x128xbf16, #tpu.memory_space<vmem>>, %arg3: memref<1x8x128xbf16, #tpu.memory_space<vmem>>, %arg4: memref<1x8x128xbf16, #tpu.memory_space<vmem>>, %arg5: memref<1x8x128xbf16, #tpu.memory_space<vmem>>) attributes {dimension_semantics = [#tpu.dimension_semantics<parallel>, #tpu.dimension_semantics<parallel>], iteration_bounds = array<i64: 2, 1>, scalar_prefetch = 0 : i64, scratch_operands = 0 : i64, tpu.core_type = #tpu.core_type<tc>, window_params = [{transform_indices = @transform_0, window_bounds = array<i64: 1, 8, 128>}, {transform_indices = @transform_1, window_bounds = array<i64: 1, 8, 128>}, {transform_indices = @transform_2, window_bounds = array<i64: 1, 8, 128>}, {transform_indices = @transform_3, window_bounds = array<i64: 1, 8, 128>}]} {
    %c0 = arith.constant 0 : index
    %c0_0 = arith.constant 0 : index
    %c0_1 = arith.constant 0 : index
    %0 = vector.load %arg2[%c0, %c0_0, %c0_1] : memref<1x8x128xbf16, #tpu.memory_space<vmem>>, vector<1x8x16xbf16>
    %1 = vector.shape_cast %0 : vector<1x8x16xbf16> to vector<8x16xbf16>
    %c0_2 = arith.constant 0 : index
    %c0_3 = arith.constant 0 : index
    %c0_4 = arith.constant 0 : index
    %2 = vector.load %arg3[%c0_2, %c0_3, %c0_4] : memref<1x8x128xbf16, #tpu.memory_space<vmem>>, vector<1x8x16xbf16>
    %3 = vector.shape_cast %2 : vector<1x8x16xbf16> to vector<8x16xbf16>
    %c0_5 = arith.constant 0 : index
    %c0_6 = arith.constant 0 : index
    %c0_7 = arith.constant 0 : index
    %4 = vector.load %arg4[%c0_5, %c0_6, %c0_7] : memref<1x8x128xbf16, #tpu.memory_space<vmem>>, vector<1x8x16xbf16>
    %5 = vector.shape_cast %4 : vector<1x8x16xbf16> to vector<8x16xbf16>
    %cst = arith.constant dense<0.000000e+00> : vector<8x8xf32>
    %6 = tpu.matmul %1, %3, %cst {dimension_numbers = #tpu.dot_dimension_numbers<[1], [1], [0], [0], [0, 0, 1, 0], [], []>} : vector<8x16xbf16>, vector<8x16xbf16>, vector<8x8xf32> -> vector<8x8xf32>
    %cst_8 = arith.constant 0.0883883461 : f32
    %7 = vector.broadcast %cst_8 : f32 to vector<8x8xf32>
    %8 = arith.mulf %6, %7 : vector<8x8xf32>
    %cst_9 = arith.constant dense<0xFF800000> : vector<8xf32>
    %9 = vector.multi_reduction <maximumf>, %8, %cst_9 [1] : vector<8x8xf32> to vector<8xf32>
    %10 = vector.shape_cast %9 : vector<8xf32> to vector<8x1xf32>
    %11 = vector.broadcast %10 : vector<8x1xf32> to vector<8x8xf32>
    %12 = arith.subf %8, %11 : vector<8x8xf32>
    %13 = math.exp %12 : vector<8x8xf32>
    %cst_10 = arith.constant dense<0.000000e+00> : vector<8xf32>
    %14 = vector.multi_reduction <add>, %13, %cst_10 [1] : vector<8x8xf32> to vector<8xf32>
    %15 = vector.shape_cast %14 : vector<8xf32> to vector<8x1xf32>
    %16 = tpu.reciprocal %15 {approx = true} : vector<8x1xf32> -> vector<8x1xf32>
    %17 = vector.broadcast %16 : vector<8x1xf32> to vector<8x8xf32>
    %18 = arith.mulf %13, %17 : vector<8x8xf32>
    %19 = arith.truncf %18 : vector<8x8xf32> to vector<8x8xbf16>
    %cst_11 = arith.constant dense<0.000000e+00> : vector<8x16xf32>
    %20 = tpu.matmul %19, %5, %cst_11 {dimension_numbers = #tpu.dot_dimension_numbers<[1], [0], [0], [1], [0, 0, 1, 1], [], []>} : vector<8x8xbf16>, vector<8x16xbf16>, vector<8x16xf32> -> vector<8x16xf32>
    %21 = arith.truncf %20 : vector<8x16xf32> to vector<8x16xbf16>
    %c0_12 = arith.constant 0 : index
    %c0_13 = arith.constant 0 : index
    %c0_14 = arith.constant 0 : index
    %22 = vector.load %arg5[%c0_12, %c0_13, %c0_14] : memref<1x8x128xbf16, #tpu.memory_space<vmem>>, vector<1x8x16xbf16>
    %23 = vector.shape_cast %22 : vector<1x8x16xbf16> to vector<8x16xbf16>
    %24 = vector.shape_cast %21 : vector<8x16xbf16> to vector<1x8x16xbf16>
    tpu.vector_store %arg5[%c0_12, %c0_13, %c0_14], %24 {strides = array<i32>} : memref<1x8x128xbf16, #tpu.memory_space<vmem>>, vector<1x8x16xbf16>,
    %c0_15 = arith.constant 0 : index
    %c0_16 = arith.constant 0 : index
    %c16 = arith.constant 16 : index
    %25 = vector.load %arg2[%c0_15, %c0_16, %c16] : memref<1x8x128xbf16, #tpu.memory_space<vmem>>, vector<1x8x16xbf16>
    %26 = vector.shape_cast %25 : vector<1x8x16xbf16> to vector<8x16xbf16>
    %c0_17 = arith.constant 0 : index
    %c0_18 = arith.constant 0 : index
    %c16_19 = arith.constant 16 : index
    %27 = vector.load %arg3[%c0_17, %c0_18, %c16_19] : memref<1x8x128xbf16, #tpu.memory_space<vmem>>, vector<1x8x16xbf16>
    %28 = vector.shape_cast %27 : vector<1x8x16xbf16> to vector<8x16xbf16>
    %c0_20 = arith.constant 0 : index
    %c0_21 = arith.constant 0 : index
    %c16_22 = arith.constant 16 : index
    %29 = vector.load %arg4[%c0_20, %c0_21, %c16_22] : memref<1x8x128xbf16, #tpu.memory_space<vmem>>, vector<1x8x16xbf16>
    %30 = vector.shape_cast %29 : vector<1x8x16xbf16> to vector<8x16xbf16>
    %cst_23 = arith.constant dense<0.000000e+00> : vector<8x8xf32>
    %31 = tpu.matmul %26, %28, %cst_23 {dimension_numbers = #tpu.dot_dimension_numbers<[1], [1], [0], [0], [0, 0, 1, 0], [], []>} : vector<8x16xbf16>, vector<8x16xbf16>, vector<8x8xf32> -> vector<8x8xf32>
    %cst_24 = arith.constant 0.0883883461 : f32
    %32 = vector.broadcast %cst_24 : f32 to vector<8x8xf32>
    %33 = arith.mulf %31, %32 : vector<8x8xf32>
    %cst_25 = arith.constant dense<0xFF800000> : vector<8xf32>
    %34 = vector.multi_reduction <maximumf>, %33, %cst_25 [1] : vector<8x8xf32> to vector<8xf32>
    %35 = vector.shape_cast %34 : vector<8xf32> to vector<8x1xf32>
    %36 = vector.broadcast %35 : vector<8x1xf32> to vector<8x8xf32>
    %37 = arith.subf %33, %36 : vector<8x8xf32>
    %38 = math.exp %37 : vector<8x8xf32>
    %cst_26 = arith.constant dense<0.000000e+00> : vector<8xf32>
    %39 = vector.multi_reduction <add>, %38, %cst_26 [1] : vector<8x8xf32> to vector<8xf32>
    %40 = vector.shape_cast %39 : vector<8xf32> to vector<8x1xf32>
    %41 = tpu.reciprocal %40 {approx = true} : vector<8x1xf32> -> vector<8x1xf32>
    %42 = vector.broadcast %41 : vector<8x1xf32> to vector<8x8xf32>
    %43 = arith.mulf %38, %42 : vector<8x8xf32>
    %44 = arith.truncf %43 : vector<8x8xf32> to vector<8x8xbf16>
    %cst_27 = arith.constant dense<0.000000e+00> : vector<8x16xf32>
    %45 = tpu.matmul %44, %30, %cst_27 {dimension_numbers = #tpu.dot_dimension_numbers<[1], [0], [0], [1], [0, 0, 1, 1], [], []>} : vector<8x8xbf16>, vector<8x16xbf16>, vector<8x16xf32> -> vector<8x16xf32>
    %46 = arith.truncf %45 : vector<8x16xf32> to vector<8x16xbf16>
    %c0_28 = arith.constant 0 : index
    %c0_29 = arith.constant 0 : index
    %c16_30 = arith.constant 16 : index
    %47 = vector.load %arg5[%c0_28, %c0_29, %c16_30] : memref<1x8x128xbf16, #tpu.memory_space<vmem>>, vector<1x8x16xbf16>
    %48 = vector.shape_cast %47 : vector<1x8x16xbf16> to vector<8x16xbf16>
    %49 = vector.shape_cast %46 : vector<8x16xbf16> to vector<1x8x16xbf16>
    tpu.vector_store %arg5[%c0_28, %c0_29, %c16_30], %49 {strides = array<i32>} : memref<1x8x128xbf16, #tpu.memory_space<vmem>>, vector<1x8x16xbf16>,
    %c0_31 = arith.constant 0 : index
    %c0_32 = arith.constant 0 : index
    %c32 = arith.constant 32 : index
    %50 = vector.load %arg2[%c0_31, %c0_32, %c32] : memref<1x8x128xbf16, #tpu.memory_space<vmem>>, vector<1x8x16xbf16>
    %51 = vector.shape_cast %50 : vector<1x8x16xbf16> to vector<8x16xbf16>
    %c0_33 = arith.constant 0 : index
    %c0_34 = arith.constant 0 : index
    %c32_35 = arith.constant 32 : index
    %52 = vector.load %arg3[%c0_33, %c0_34, %c32_35] : memref<1x8x128xbf16, #tpu.memory_space<vmem>>, vector<1x8x16xbf16>
    %53 = vector.shape_cast %52 : vector<1x8x16xbf16> to vector<8x16xbf16>
    %c0_36 = arith.constant 0 : index
    %c0_37 = arith.constant 0 : index
    %c32_38 = arith.constant 32 : index
    %54 = vector.load %arg4[%c0_36, %c0_37, %c32_38] : memref<1x8x128xbf16, #tpu.memory_space<vmem>>, vector<1x8x16xbf16>
    %55 = vector.shape_cast %54 : vector<1x8x16xbf16> to vector<8x16xbf16>
    %cst_39 = arith.constant dense<0.000000e+00> : vector<8x8xf32>
    %56 = tpu.matmul %51, %53, %cst_39 {dimension_numbers = #tpu.dot_dimension_numbers<[1], [1], [0], [0], [0, 0, 1, 0], [], []>} : vector<8x16xbf16>, vector<8x16xbf16>, vector<8x8xf32> -> vector<8x8xf32>
    %cst_40 = arith.constant 0.0883883461 : f32
    %57 = vector.broadcast %cst_40 : f32 to vector<8x8xf32>
    %58 = arith.mulf %56, %57 : vector<8x8xf32>
    %cst_41 = arith.constant dense<0xFF800000> : vector<8xf32>
    %59 = vector.multi_reduction <maximumf>, %58, %cst_41 [1] : vector<8x8xf32> to vector<8xf32>
    %60 = vector.shape_cast %59 : vector<8xf32> to vector<8x1xf32>
    %61 = vector.broadcast %60 : vector<8x1xf32> to vector<8x8xf32>
    %62 = arith.subf %58, %61 : vector<8x8xf32>
    %63 = math.exp %62 : vector<8x8xf32>
    %cst_42 = arith.constant dense<0.000000e+00> : vector<8xf32>
    %64 = vector.multi_reduction <add>, %63, %cst_42 [1] : vector<8x8xf32> to vector<8xf32>
    %65 = vector.shape_cast %64 : vector<8xf32> to vector<8x1xf32>
    %66 = tpu.reciprocal %65 {approx = true} : vector<8x1xf32> -> vector<8x1xf32>
    %67 = vector.broadcast %66 : vector<8x1xf32> to vector<8x8xf32>
    %68 = arith.mulf %63, %67 : vector<8x8xf32>
    %69 = arith.truncf %68 : vector<8x8xf32> to vector<8x8xbf16>
    %cst_43 = arith.constant dense<0.000000e+00> : vector<8x16xf32>
    %70 = tpu.matmul %69, %55, %cst_43 {dimension_numbers = #tpu.dot_dimension_numbers<[1], [0], [0], [1], [0, 0, 1, 1], [], []>} : vector<8x8xbf16>, vector<8x16xbf16>, vector<8x16xf32> -> vector<8x16xf32>
    %71 = arith.truncf %70 : vector<8x16xf32> to vector<8x16xbf16>
    %c0_44 = arith.constant 0 : index
    %c0_45 = arith.constant 0 : index
    %c32_46 = arith.constant 32 : index
    %72 = vector.load %arg5[%c0_44, %c0_45, %c32_46] : memref<1x8x128xbf16, #tpu.memory_space<vmem>>, vector<1x8x16xbf16>
    %73 = vector.shape_cast %72 : vector<1x8x16xbf16> to vector<8x16xbf16>
    %74 = vector.shape_cast %71 : vector<8x16xbf16> to vector<1x8x16xbf16>
    tpu.vector_store %arg5[%c0_44, %c0_45, %c32_46], %74 {strides = array<i32>} : memref<1x8x128xbf16, #tpu.memory_space<vmem>>, vector<1x8x16xbf16>,
    %c0_47 = arith.constant 0 : index
    %c0_48 = arith.constant 0 : index
    %c48 = arith.constant 48 : index
    %75 = vector.load %arg2[%c0_47, %c0_48, %c48] : memref<1x8x128xbf16, #tpu.memory_space<vmem>>, vector<1x8x16xbf16>
    %76 = vector.shape_cast %75 : vector<1x8x16xbf16> to vector<8x16xbf16>
    %c0_49 = arith.constant 0 : index
    %c0_50 = arith.constant 0 : index
    %c48_51 = arith.constant 48 : index
    %77 = vector.load %arg3[%c0_49, %c0_50, %c48_51] : memref<1x8x128xbf16, #tpu.memory_space<vmem>>, vector<1x8x16xbf16>
    %78 = vector.shape_cast %77 : vector<1x8x16xbf16> to vector<8x16xbf16>
    %c0_52 = arith.constant 0 : index
    %c0_53 = arith.constant 0 : index
    %c48_54 = arith.constant 48 : index
    %79 = vector.load %arg4[%c0_52, %c0_53, %c48_54] : memref<1x8x128xbf16, #tpu.memory_space<vmem>>, vector<1x8x16xbf16>
    %80 = vector.shape_cast %79 : vector<1x8x16xbf16> to vector<8x16xbf16>
    %cst_55 = arith.constant dense<0.000000e+00> : vector<8x8xf32>
    %81 = tpu.matmul %76, %78, %cst_55 {dimension_numbers = #tpu.dot_dimension_numbers<[1], [1], [0], [0], [0, 0, 1, 0], [], []>} : vector<8x16xbf16>, vector<8x16xbf16>, vector<8x8xf32> -> vector<8x8xf32>
    %cst_56 = arith.constant 0.0883883461 : f32
    %82 = vector.broadcast %cst_56 : f32 to vector<8x8xf32>
    %83 = arith.mulf %81, %82 : vector<8x8xf32>
    %cst_57 = arith.constant dense<0xFF800000> : vector<8xf32>
    %84 = vector.multi_reduction <maximumf>, %83, %cst_57 [1] : vector<8x8xf32> to vector<8xf32>
    %85 = vector.shape_cast %84 : vector<8xf32> to vector<8x1xf32>
    %86 = vector.broadcast %85 : vector<8x1xf32> to vector<8x8xf32>
    %87 = arith.subf %83, %86 : vector<8x8xf32>
    %88 = math.exp %87 : vector<8x8xf32>
    %cst_58 = arith.constant dense<0.000000e+00> : vector<8xf32>
    %89 = vector.multi_reduction <add>, %88, %cst_58 [1] : vector<8x8xf32> to vector<8xf32>
    %90 = vector.shape_cast %89 : vector<8xf32> to vector<8x1xf32>
    %91 = tpu.reciprocal %90 {approx = true} : vector<8x1xf32> -> vector<8x1xf32>
    %92 = vector.broadcast %91 : vector<8x1xf32> to vector<8x8xf32>
    %93 = arith.mulf %88, %92 : vector<8x8xf32>
    %94 = arith.truncf %93 : vector<8x8xf32> to vector<8x8xbf16>
    %cst_59 = arith.constant dense<0.000000e+00> : vector<8x16xf32>
    %95 = tpu.matmul %94, %80, %cst_59 {dimension_numbers = #tpu.dot_dimension_numbers<[1], [0], [0], [1], [0, 0, 1, 1], [], []>} : vector<8x8xbf16>, vector<8x16xbf16>, vector<8x16xf32> -> vector<8x16xf32>
    %96 = arith.truncf %95 : vector<8x16xf32> to vector<8x16xbf16>
    %c0_60 = arith.constant 0 : index
    %c0_61 = arith.constant 0 : index
    %c48_62 = arith.constant 48 : index
    %97 = vector.load %arg5[%c0_60, %c0_61, %c48_62] : memref<1x8x128xbf16, #tpu.memory_space<vmem>>, vector<1x8x16xbf16>
    %98 = vector.shape_cast %97 : vector<1x8x16xbf16> to vector<8x16xbf16>
    %99 = vector.shape_cast %96 : vector<8x16xbf16> to vector<1x8x16xbf16>
    tpu.vector_store %arg5[%c0_60, %c0_61, %c48_62], %99 {strides = array<i32>} : memref<1x8x128xbf16, #tpu.memory_space<vmem>>, vector<1x8x16xbf16>,
    %c0_63 = arith.constant 0 : index
    %c0_64 = arith.constant 0 : index
    %c64 = arith.constant 64 : index
    %100 = vector.load %arg2[%c0_63, %c0_64, %c64] : memref<1x8x128xbf16, #tpu.memory_space<vmem>>, vector<1x8x16xbf16>
    %101 = vector.shape_cast %100 : vector<1x8x16xbf16> to vector<8x16xbf16>
    %c0_65 = arith.constant 0 : index
    %c0_66 = arith.constant 0 : index
    %c64_67 = arith.constant 64 : index
    %102 = vector.load %arg3[%c0_65, %c0_66, %c64_67] : memref<1x8x128xbf16, #tpu.memory_space<vmem>>, vector<1x8x16xbf16>
    %103 = vector.shape_cast %102 : vector<1x8x16xbf16> to vector<8x16xbf16>
    %c0_68 = arith.constant 0 : index
    %c0_69 = arith.constant 0 : index
    %c64_70 = arith.constant 64 : index
    %104 = vector.load %arg4[%c0_68, %c0_69, %c64_70] : memref<1x8x128xbf16, #tpu.memory_space<vmem>>, vector<1x8x16xbf16>
    %105 = vector.shape_cast %104 : vector<1x8x16xbf16> to vector<8x16xbf16>
    %cst_71 = arith.constant dense<0.000000e+00> : vector<8x8xf32>
    %106 = tpu.matmul %101, %103, %cst_71 {dimension_numbers = #tpu.dot_dimension_numbers<[1], [1], [0], [0], [0, 0, 1, 0], [], []>} : vector<8x16xbf16>, vector<8x16xbf16>, vector<8x8xf32> -> vector<8x8xf32>
    %cst_72 = arith.constant 0.0883883461 : f32
    %107 = vector.broadcast %cst_72 : f32 to vector<8x8xf32>
    %108 = arith.mulf %106, %107 : vector<8x8xf32>
    %cst_73 = arith.constant dense<0xFF800000> : vector<8xf32>
    %109 = vector.multi_reduction <maximumf>, %108, %cst_73 [1] : vector<8x8xf32> to vector<8xf32>
    %110 = vector.shape_cast %109 : vector<8xf32> to vector<8x1xf32>
    %111 = vector.broadcast %110 : vector<8x1xf32> to vector<8x8xf32>
    %112 = arith.subf %108, %111 : vector<8x8xf32>
    %113 = math.exp %112 : vector<8x8xf32>
    %cst_74 = arith.constant dense<0.000000e+00> : vector<8xf32>
    %114 = vector.multi_reduction <add>, %113, %cst_74 [1] : vector<8x8xf32> to vector<8xf32>
    %115 = vector.shape_cast %114 : vector<8xf32> to vector<8x1xf32>
    %116 = tpu.reciprocal %115 {approx = true} : vector<8x1xf32> -> vector<8x1xf32>
    %117 = vector.broadcast %116 : vector<8x1xf32> to vector<8x8xf32>
    %118 = arith.mulf %113, %117 : vector<8x8xf32>
    %119 = arith.truncf %118 : vector<8x8xf32> to vector<8x8xbf16>
    %cst_75 = arith.constant dense<0.000000e+00> : vector<8x16xf32>
    %120 = tpu.matmul %119, %105, %cst_75 {dimension_numbers = #tpu.dot_dimension_numbers<[1], [0], [0], [1], [0, 0, 1, 1], [], []>} : vector<8x8xbf16>, vector<8x16xbf16>, vector<8x16xf32> -> vector<8x16xf32>
    %121 = arith.truncf %120 : vector<8x16xf32> to vector<8x16xbf16>
    %c0_76 = arith.constant 0 : index
    %c0_77 = arith.constant 0 : index
    %c64_78 = arith.constant 64 : index
    %122 = vector.load %arg5[%c0_76, %c0_77, %c64_78] : memref<1x8x128xbf16, #tpu.memory_space<vmem>>, vector<1x8x16xbf16>
    %123 = vector.shape_cast %122 : vector<1x8x16xbf16> to vector<8x16xbf16>
    %124 = vector.shape_cast %121 : vector<8x16xbf16> to vector<1x8x16xbf16>
    tpu.vector_store %arg5[%c0_76, %c0_77, %c64_78], %124 {strides = array<i32>} : memref<1x8x128xbf16, #tpu.memory_space<vmem>>, vector<1x8x16xbf16>,
    %c0_79 = arith.constant 0 : index
    %c0_80 = arith.constant 0 : index
    %c80 = arith.constant 80 : index
    %125 = vector.load %arg2[%c0_79, %c0_80, %c80] : memref<1x8x128xbf16, #tpu.memory_space<vmem>>, vector<1x8x16xbf16>
    %126 = vector.shape_cast %125 : vector<1x8x16xbf16> to vector<8x16xbf16>
    %c0_81 = arith.constant 0 : index
    %c0_82 = arith.constant 0 : index
    %c80_83 = arith.constant 80 : index
    %127 = vector.load %arg3[%c0_81, %c0_82, %c80_83] : memref<1x8x128xbf16, #tpu.memory_space<vmem>>, vector<1x8x16xbf16>
    %128 = vector.shape_cast %127 : vector<1x8x16xbf16> to vector<8x16xbf16>
    %c0_84 = arith.constant 0 : index
    %c0_85 = arith.constant 0 : index
    %c80_86 = arith.constant 80 : index
    %129 = vector.load %arg4[%c0_84, %c0_85, %c80_86] : memref<1x8x128xbf16, #tpu.memory_space<vmem>>, vector<1x8x16xbf16>
    %130 = vector.shape_cast %129 : vector<1x8x16xbf16> to vector<8x16xbf16>
    %cst_87 = arith.constant dense<0.000000e+00> : vector<8x8xf32>
    %131 = tpu.matmul %126, %128, %cst_87 {dimension_numbers = #tpu.dot_dimension_numbers<[1], [1], [0], [0], [0, 0, 1, 0], [], []>} : vector<8x16xbf16>, vector<8x16xbf16>, vector<8x8xf32> -> vector<8x8xf32>
    %cst_88 = arith.constant 0.0883883461 : f32
    %132 = vector.broadcast %cst_88 : f32 to vector<8x8xf32>
    %133 = arith.mulf %131, %132 : vector<8x8xf32>
    %cst_89 = arith.constant dense<0xFF800000> : vector<8xf32>
    %134 = vector.multi_reduction <maximumf>, %133, %cst_89 [1] : vector<8x8xf32> to vector<8xf32>
    %135 = vector.shape_cast %134 : vector<8xf32> to vector<8x1xf32>
    %136 = vector.broadcast %135 : vector<8x1xf32> to vector<8x8xf32>
    %137 = arith.subf %133, %136 : vector<8x8xf32>
    %138 = math.exp %137 : vector<8x8xf32>
    %cst_90 = arith.constant dense<0.000000e+00> : vector<8xf32>
    %139 = vector.multi_reduction <add>, %138, %cst_90 [1] : vector<8x8xf32> to vector<8xf32>
    %140 = vector.shape_cast %139 : vector<8xf32> to vector<8x1xf32>
    %141 = tpu.reciprocal %140 {approx = true} : vector<8x1xf32> -> vector<8x1xf32>
    %142 = vector.broadcast %141 : vector<8x1xf32> to vector<8x8xf32>
    %143 = arith.mulf %138, %142 : vector<8x8xf32>
    %144 = arith.truncf %143 : vector<8x8xf32> to vector<8x8xbf16>
    %cst_91 = arith.constant dense<0.000000e+00> : vector<8x16xf32>
    %145 = tpu.matmul %144, %130, %cst_91 {dimension_numbers = #tpu.dot_dimension_numbers<[1], [0], [0], [1], [0, 0, 1, 1], [], []>} : vector<8x8xbf16>, vector<8x16xbf16>, vector<8x16xf32> -> vector<8x16xf32>
    %146 = arith.truncf %145 : vector<8x16xf32> to vector<8x16xbf16>
    %c0_92 = arith.constant 0 : index
    %c0_93 = arith.constant 0 : index
    %c80_94 = arith.constant 80 : index
    %147 = vector.load %arg5[%c0_92, %c0_93, %c80_94] : memref<1x8x128xbf16, #tpu.memory_space<vmem>>, vector<1x8x16xbf16>
    %148 = vector.shape_cast %147 : vector<1x8x16xbf16> to vector<8x16xbf16>
    %149 = vector.shape_cast %146 : vector<8x16xbf16> to vector<1x8x16xbf16>
    tpu.vector_store %arg5[%c0_92, %c0_93, %c80_94], %149 {strides = array<i32>} : memref<1x8x128xbf16, #tpu.memory_space<vmem>>, vector<1x8x16xbf16>,
    %c0_95 = arith.constant 0 : index
    %c0_96 = arith.constant 0 : index
    %c96 = arith.constant 96 : index
    %150 = vector.load %arg2[%c0_95, %c0_96, %c96] : memref<1x8x128xbf16, #tpu.memory_space<vmem>>, vector<1x8x16xbf16>
    %151 = vector.shape_cast %150 : vector<1x8x16xbf16> to vector<8x16xbf16>
    %c0_97 = arith.constant 0 : index
    %c0_98 = arith.constant 0 : index
    %c96_99 = arith.constant 96 : index
    %152 = vector.load %arg3[%c0_97, %c0_98, %c96_99] : memref<1x8x128xbf16, #tpu.memory_space<vmem>>, vector<1x8x16xbf16>
    %153 = vector.shape_cast %152 : vector<1x8x16xbf16> to vector<8x16xbf16>
    %c0_100 = arith.constant 0 : index
    %c0_101 = arith.constant 0 : index
    %c96_102 = arith.constant 96 : index
    %154 = vector.load %arg4[%c0_100, %c0_101, %c96_102] : memref<1x8x128xbf16, #tpu.memory_space<vmem>>, vector<1x8x16xbf16>
    %155 = vector.shape_cast %154 : vector<1x8x16xbf16> to vector<8x16xbf16>
    %cst_103 = arith.constant dense<0.000000e+00> : vector<8x8xf32>
    %156 = tpu.matmul %151, %153, %cst_103 {dimension_numbers = #tpu.dot_dimension_numbers<[1], [1], [0], [0], [0, 0, 1, 0], [], []>} : vector<8x16xbf16>, vector<8x16xbf16>, vector<8x8xf32> -> vector<8x8xf32>
    %cst_104 = arith.constant 0.0883883461 : f32
    %157 = vector.broadcast %cst_104 : f32 to vector<8x8xf32>
    %158 = arith.mulf %156, %157 : vector<8x8xf32>
    %cst_105 = arith.constant dense<0xFF800000> : vector<8xf32>
    %159 = vector.multi_reduction <maximumf>, %158, %cst_105 [1] : vector<8x8xf32> to vector<8xf32>
    %160 = vector.shape_cast %159 : vector<8xf32> to vector<8x1xf32>
    %161 = vector.broadcast %160 : vector<8x1xf32> to vector<8x8xf32>
    %162 = arith.subf %158, %161 : vector<8x8xf32>
    %163 = math.exp %162 : vector<8x8xf32>
    %cst_106 = arith.constant dense<0.000000e+00> : vector<8xf32>
    %164 = vector.multi_reduction <add>, %163, %cst_106 [1] : vector<8x8xf32> to vector<8xf32>
    %165 = vector.shape_cast %164 : vector<8xf32> to vector<8x1xf32>
    %166 = tpu.reciprocal %165 {approx = true} : vector<8x1xf32> -> vector<8x1xf32>
    %167 = vector.broadcast %166 : vector<8x1xf32> to vector<8x8xf32>
    %168 = arith.mulf %163, %167 : vector<8x8xf32>
    %169 = arith.truncf %168 : vector<8x8xf32> to vector<8x8xbf16>
    %cst_107 = arith.constant dense<0.000000e+00> : vector<8x16xf32>
    %170 = tpu.matmul %169, %155, %cst_107 {dimension_numbers = #tpu.dot_dimension_numbers<[1], [0], [0], [1], [0, 0, 1, 1], [], []>} : vector<8x8xbf16>, vector<8x16xbf16>, vector<8x16xf32> -> vector<8x16xf32>
    %171 = arith.truncf %170 : vector<8x16xf32> to vector<8x16xbf16>
    %c0_108 = arith.constant 0 : index
    %c0_109 = arith.constant 0 : index
    %c96_110 = arith.constant 96 : index
    %172 = vector.load %arg5[%c0_108, %c0_109, %c96_110] : memref<1x8x128xbf16, #tpu.memory_space<vmem>>, vector<1x8x16xbf16>
    %173 = vector.shape_cast %172 : vector<1x8x16xbf16> to vector<8x16xbf16>
    %174 = vector.shape_cast %171 : vector<8x16xbf16> to vector<1x8x16xbf16>
    tpu.vector_store %arg5[%c0_108, %c0_109, %c96_110], %174 {strides = array<i32>} : memref<1x8x128xbf16, #tpu.memory_space<vmem>>, vector<1x8x16xbf16>,
    %c0_111 = arith.constant 0 : index
    %c0_112 = arith.constant 0 : index
    %c112 = arith.constant 112 : index
    %175 = vector.load %arg2[%c0_111, %c0_112, %c112] : memref<1x8x128xbf16, #tpu.memory_space<vmem>>, vector<1x8x16xbf16>
    %176 = vector.shape_cast %175 : vector<1x8x16xbf16> to vector<8x16xbf16>
    %c0_113 = arith.constant 0 : index
    %c0_114 = arith.constant 0 : index
    %c112_115 = arith.constant 112 : index
    %177 = vector.load %arg3[%c0_113, %c0_114, %c112_115] : memref<1x8x128xbf16, #tpu.memory_space<vmem>>, vector<1x8x16xbf16>
    %178 = vector.shape_cast %177 : vector<1x8x16xbf16> to vector<8x16xbf16>
    %c0_116 = arith.constant 0 : index
    %c0_117 = arith.constant 0 : index
    %c112_118 = arith.constant 112 : index
    %179 = vector.load %arg4[%c0_116, %c0_117, %c112_118] : memref<1x8x128xbf16, #tpu.memory_space<vmem>>, vector<1x8x16xbf16>
    %180 = vector.shape_cast %179 : vector<1x8x16xbf16> to vector<8x16xbf16>
    %cst_119 = arith.constant dense<0.000000e+00> : vector<8x8xf32>
    %181 = tpu.matmul %176, %178, %cst_119 {dimension_numbers = #tpu.dot_dimension_numbers<[1], [1], [0], [0], [0, 0, 1, 0], [], []>} : vector<8x16xbf16>, vector<8x16xbf16>, vector<8x8xf32> -> vector<8x8xf32>
    %cst_120 = arith.constant 0.0883883461 : f32
    %182 = vector.broadcast %cst_120 : f32 to vector<8x8xf32>
    %183 = arith.mulf %181, %182 : vector<8x8xf32>
    %cst_121 = arith.constant dense<0xFF800000> : vector<8xf32>
    %184 = vector.multi_reduction <maximumf>, %183, %cst_121 [1] : vector<8x8xf32> to vector<8xf32>
    %185 = vector.shape_cast %184 : vector<8xf32> to vector<8x1xf32>
    %186 = vector.broadcast %185 : vector<8x1xf32> to vector<8x8xf32>
    %187 = arith.subf %183, %186 : vector<8x8xf32>
    %188 = math.exp %187 : vector<8x8xf32>
    %cst_122 = arith.constant dense<0.000000e+00> : vector<8xf32>
    %189 = vector.multi_reduction <add>, %188, %cst_122 [1] : vector<8x8xf32> to vector<8xf32>
    %190 = vector.shape_cast %189 : vector<8xf32> to vector<8x1xf32>
    %191 = tpu.reciprocal %190 {approx = true} : vector<8x1xf32> -> vector<8x1xf32>
    %192 = vector.broadcast %191 : vector<8x1xf32> to vector<8x8xf32>
    %193 = arith.mulf %188, %192 : vector<8x8xf32>
    %194 = arith.truncf %193 : vector<8x8xf32> to vector<8x8xbf16>
    %cst_123 = arith.constant dense<0.000000e+00> : vector<8x16xf32>
    %195 = tpu.matmul %194, %180, %cst_123 {dimension_numbers = #tpu.dot_dimension_numbers<[1], [0], [0], [1], [0, 0, 1, 1], [], []>} : vector<8x8xbf16>, vector<8x16xbf16>, vector<8x16xf32> -> vector<8x16xf32>
    %196 = arith.truncf %195 : vector<8x16xf32> to vector<8x16xbf16>
    %c0_124 = arith.constant 0 : index
    %c0_125 = arith.constant 0 : index
    %c112_126 = arith.constant 112 : index
    %197 = vector.load %arg5[%c0_124, %c0_125, %c112_126] : memref<1x8x128xbf16, #tpu.memory_space<vmem>>, vector<1x8x16xbf16>
    %198 = vector.shape_cast %197 : vector<1x8x16xbf16> to vector<8x16xbf16>
    %199 = vector.shape_cast %196 : vector<8x16xbf16> to vector<1x8x16xbf16>
    tpu.vector_store %arg5[%c0_124, %c0_125, %c112_126], %199 {strides = array<i32>} : memref<1x8x128xbf16, #tpu.memory_space<vmem>>, vector<1x8x16xbf16>,
    return
  }
  func.func @transform_0(%arg0: i32, %arg1: i32) -> (i32, i32, i32) {
    %c0_i32 = arith.constant 0 : i32
    %c0_i32_0 = arith.constant 0 : i32
    return %arg0, %c0_i32, %arg1 : i32, i32, i32
  }
  func.func @transform_1(%arg0: i32, %arg1: i32) -> (i32, i32, i32) {
    %c1_i32 = arith.constant 1 : i32
    %0 = arith.addi %c1_i32, %arg1 : i32
    %c0_i32 = arith.constant 0 : i32
    %c0_i32_0 = arith.constant 0 : i32
    return %arg0, %c0_i32, %0 : i32, i32, i32
  }
  func.func @transform_2(%arg0: i32, %arg1: i32) -> (i32, i32, i32) {
    %c2_i32 = arith.constant 2 : i32
    %0 = arith.addi %c2_i32, %arg1 : i32
    %c0_i32 = arith.constant 0 : i32
    %c0_i32_0 = arith.constant 0 : i32
    return %arg0, %c0_i32, %0 : i32, i32, i32
  }
  func.func @transform_3(%arg0: i32, %arg1: i32) -> (i32, i32, i32) {
    %c0_i32 = arith.constant 0 : i32
    %c0_i32_0 = arith.constant 0 : i32
    return %arg0, %c0_i32, %arg1 : i32, i32, i32
  }
}

module attributes {stable_mosaic.version = 11 : i64} {
  func.func @kernel(%arg0: i32, %arg1: i32, %arg2: memref<16x128xf32, #tpu.memory_space<vmem>>, %arg3: memref<128x256xbf16, #tpu.memory_space<vmem>>, %arg4: memref<1x256xf32, #tpu.memory_space<vmem>>, %arg5: memref<16x256xf32, #tpu.memory_space<vmem>>) attributes {dimension_semantics = [#tpu.dimension_semantics<parallel>, #tpu.dimension_semantics<arbitrary>], iteration_bounds = array<i64: 1, 1>, scalar_prefetch = 0 : i64, scratch_operands = 0 : i64, tpu.core_type = #tpu.core_type<tc>, window_params = [{transform_indices = @transform_0, window_bounds = array<i64: 16, 128>}, {transform_indices = @transform_1, window_bounds = array<i64: 128, 256>}, {transform_indices = @transform_2, window_bounds = array<i64: 1, 256>}, {transform_indices = @transform_3, window_bounds = array<i64: 16, 256>}]} {
    %c0 = arith.constant 0 : index
    %c0_0 = arith.constant 0 : index
    %0 = vector.load %arg2[%c0, %c0_0] : memref<16x128xf32, #tpu.memory_space<vmem>>, vector<16x128xf32>
    %1 = arith.truncf %0 : vector<16x128xf32> to vector<16x128xbf16>
    %c0_1 = arith.constant 0 : index
    %c0_2 = arith.constant 0 : index
    %2 = vector.load %arg3[%c0_1, %c0_2] : memref<128x256xbf16, #tpu.memory_space<vmem>>, vector<128x256xbf16>
    %cst = arith.constant dense<0.000000e+00> : vector<16x256xf32>
    %3 = tpu.matmul %1, %2, %cst {dimension_numbers = #tpu.dot_dimension_numbers<[1], [0], [0], [1], [0, 0, 1, 1], [], []>} : vector<16x128xbf16>, vector<128x256xbf16>, vector<16x256xf32> -> vector<16x256xf32>
    %c0_3 = arith.constant 0 : index
    %c0_4 = arith.constant 0 : index
    %4 = vector.load %arg4[%c0_3, %c0_4] : memref<1x256xf32, #tpu.memory_space<vmem>>, vector<1x256xf32>
    %5 = vector.broadcast %4 : vector<1x256xf32> to vector<16x256xf32>
    %6 = arith.addf %3, %5 : vector<16x256xf32>
    %c0_5 = arith.constant 0 : index
    %c0_6 = arith.constant 0 : index
    %7 = vector.load %arg5[%c0_5, %c0_6] : memref<16x256xf32, #tpu.memory_space<vmem>>, vector<16x256xf32>
    tpu.vector_store %arg5[%c0_5, %c0_6], %6 {strides = array<i32>} : memref<16x256xf32, #tpu.memory_space<vmem>>, vector<16x256xf32>,
    return
  }
  func.func @transform_0(%arg0: i32, %arg1: i32) -> (i32, i32) {
    %c0_i32 = arith.constant 0 : i32
    %c0_i32_0 = arith.constant 0 : i32
    return %arg0, %c0_i32 : i32, i32
  }
  func.func @transform_1(%arg0: i32, %arg1: i32) -> (i32, i32) {
    %c0_i32 = arith.constant 0 : i32
    %c0_i32_0 = arith.constant 0 : i32
    return %c0_i32, %arg1 : i32, i32
  }
  func.func @transform_2(%arg0: i32, %arg1: i32) -> (i32, i32) {
    %c0_i32 = arith.constant 0 : i32
    %c0_i32_0 = arith.constant 0 : i32
    return %c0_i32, %arg1 : i32, i32
  }
  func.func @transform_3(%arg0: i32, %arg1: i32) -> (i32, i32) {
    %c0_i32 = arith.constant 0 : i32
    return %arg0, %arg1 : i32, i32
  }
}

module attributes {stable_mosaic.version = 11 : i64} {
  func.func @kernel(%arg0: i32, %arg1: i32, %arg2: memref<16x128xf32, #tpu.memory_space<vmem>>, %arg3: memref<1x128xf32, #tpu.memory_space<vmem>>, %arg4: memref<1x128xf32, #tpu.memory_space<vmem>>, %arg5: memref<128x128xbf16, #tpu.memory_space<vmem>>, %arg6: memref<1x128xf32, #tpu.memory_space<vmem>>, %arg7: memref<16x128xbf16, #tpu.memory_space<vmem>>, %arg8: memref<16x128xbf16, #tpu.memory_space<vmem>>) attributes {dimension_semantics = [#tpu.dimension_semantics<parallel>, #tpu.dimension_semantics<arbitrary>], iteration_bounds = array<i64: 1, 1>, scalar_prefetch = 0 : i64, scratch_operands = 1 : i64, tpu.core_type = #tpu.core_type<tc>, window_params = [{transform_indices = @transform_0, window_bounds = array<i64: 16, 128>}, {pipeline_mode = #tpu.pipeline_mode<synchronous>, transform_indices = @transform_1, window_bounds = array<i64: 1, 128>}, {pipeline_mode = #tpu.pipeline_mode<synchronous>, transform_indices = @transform_2, window_bounds = array<i64: 1, 128>}, {transform_indices = @transform_3, window_bounds = array<i64: 128, 128>}, {transform_indices = @transform_4, window_bounds = array<i64: 1, 128>}, {transform_indices = @transform_5, window_bounds = array<i64: 16, 128>}]} {
    %c0_i32 = arith.constant 0 : i32
    %0 = arith.cmpi eq, %arg1, %c0_i32 : i32
    %1 = arith.extui %0 : i1 to i32
    %c0_i32_0 = arith.constant 0 : i32
    %2 = arith.cmpi ne, %1, %c0_i32_0 : i32
    scf.if %2 {
      %c0_24 = arith.constant 0 : index
      %c0_25 = arith.constant 0 : index
      %52 = vector.load %arg2[%c0_24, %c0_25] : memref<16x128xf32, #tpu.memory_space<vmem>>, vector<16x128xf32>
      %cst_26 = arith.constant dense<0.000000e+00> : vector<16xf32>
      %53 = vector.multi_reduction <add>, %52, %cst_26 [1] : vector<16x128xf32> to vector<16xf32>
      %54 = vector.shape_cast %53 : vector<16xf32> to vector<16x1xf32>
      %cst_27 = arith.constant 1.280000e+02 : f32
      %55 = vector.broadcast %cst_27 : f32 to vector<16x1xf32>
      %56 = arith.divf %54, %55 : vector<16x1xf32>
      %57 = vector.broadcast %56 : vector<16x1xf32> to vector<16x128xf32>
      %58 = arith.subf %52, %57 : vector<16x128xf32>
      %59 = arith.mulf %58, %58 : vector<16x128xf32>
      %cst_28 = arith.constant dense<0.000000e+00> : vector<16xf32>
      %60 = vector.multi_reduction <add>, %59, %cst_28 [1] : vector<16x128xf32> to vector<16xf32>
      %61 = vector.shape_cast %60 : vector<16xf32> to vector<16x1xf32>
      %cst_29 = arith.constant 1.280000e+02 : f32
      %62 = vector.broadcast %cst_29 : f32 to vector<16x1xf32>
      %63 = arith.divf %61, %62 : vector<16x1xf32>
      %cst_30 = arith.constant 9.99999974E-6 : f32
      %64 = vector.broadcast %cst_30 : f32 to vector<16x1xf32>
      %65 = arith.addf %63, %64 : vector<16x1xf32>
      %66 = math.rsqrt %65 : vector<16x1xf32>
      %67 = vector.broadcast %66 : vector<16x1xf32> to vector<16x128xf32>
      %68 = arith.mulf %58, %67 : vector<16x128xf32>
      %c0_31 = arith.constant 0 : index
      %c0_32 = arith.constant 0 : index
      %69 = vector.load %arg3[%c0_31, %c0_32] : memref<1x128xf32, #tpu.memory_space<vmem>>, vector<1x128xf32>
      %70 = vector.broadcast %69 : vector<1x128xf32> to vector<16x128xf32>
      %71 = arith.mulf %68, %70 : vector<16x128xf32>
      %c0_33 = arith.constant 0 : index
      %c0_34 = arith.constant 0 : index
      %72 = vector.load %arg4[%c0_33, %c0_34] : memref<1x128xf32, #tpu.memory_space<vmem>>, vector<1x128xf32>
      %73 = vector.broadcast %72 : vector<1x128xf32> to vector<16x128xf32>
      %74 = arith.addf %71, %73 : vector<16x128xf32>
      %75 = arith.truncf %74 : vector<16x128xf32> to vector<16x128xbf16>
      %c0_35 = arith.constant 0 : index
      %c0_36 = arith.constant 0 : index
      %76 = vector.load %arg8[%c0_35, %c0_36] : memref<16x128xbf16, #tpu.memory_space<vmem>>, vector<16x128xbf16>
      tpu.vector_store %arg8[%c0_35, %c0_36], %75 {strides = array<i32>} : memref<16x128xbf16, #tpu.memory_space<vmem>>, vector<16x128xbf16>,
    } else {
    }
    %c0 = arith.constant 0 : index
    %c0_1 = arith.constant 0 : index
    %3 = vector.load %arg8[%c0, %c0_1] : memref<16x128xbf16, #tpu.memory_space<vmem>>, vector<16x128xbf16>
    %c0_2 = arith.constant 0 : index
    %c0_3 = arith.constant 0 : index
    %4 = vector.load %arg5[%c0_2, %c0_3] : memref<128x128xbf16, #tpu.memory_space<vmem>>, vector<128x128xbf16>
    %cst = arith.constant dense<0.000000e+00> : vector<16x128xf32>
    %5 = tpu.matmul %3, %4, %cst {dimension_numbers = #tpu.dot_dimension_numbers<[1], [0], [0], [1], [0, 0, 1, 1], [], []>} : vector<16x128xbf16>, vector<128x128xbf16>, vector<16x128xf32> -> vector<16x128xf32>
    %c0_4 = arith.constant 0 : index
    %c0_5 = arith.constant 0 : index
    %6 = vector.load %arg6[%c0_4, %c0_5] : memref<1x128xf32, #tpu.memory_space<vmem>>, vector<1x128xf32>
    %7 = vector.broadcast %6 : vector<1x128xf32> to vector<16x128xf32>
    %8 = arith.addf %5, %7 : vector<16x128xf32>
    %cst_6 = arith.constant 5.000000e-01 : f32
    %9 = vector.broadcast %cst_6 : f32 to vector<16x128xf32>
    %10 = arith.mulf %9, %8 : vector<16x128xf32>
    %cst_7 = arith.constant 0.707106769 : f32
    %11 = vector.broadcast %cst_7 : f32 to vector<16x128xf32>
    %12 = arith.mulf %8, %11 : vector<16x128xf32>
    %cst_8 = arith.constant 0.000000e+00 : f32
    %13 = vector.broadcast %cst_8 : f32 to vector<16x128xf32>
    %14 = arith.cmpf oge, %12, %13 : vector<16x128xf32>
    %cst_9 = arith.constant 1.000000e+00 : f32
    %cst_10 = arith.constant -1.000000e+00 : f32
    %15 = vector.broadcast %cst_9 : f32 to vector<16x128xf32>
    %16 = vector.broadcast %cst_10 : f32 to vector<16x128xf32>
    %17 = arith.select %14, %15, %16 : vector<16x128xi1>, vector<16x128xf32>
    %18 = math.absf %12 : vector<16x128xf32>
    %cst_11 = arith.constant 0.327591091 : f32
    %19 = vector.broadcast %cst_11 : f32 to vector<16x128xf32>
    %20 = arith.mulf %19, %18 : vector<16x128xf32>
    %cst_12 = arith.constant 1.000000e+00 : f32
    %21 = vector.broadcast %cst_12 : f32 to vector<16x128xf32>
    %22 = arith.addf %21, %20 : vector<16x128xf32>
    %cst_13 = arith.constant 1.000000e+00 : f32
    %23 = vector.broadcast %cst_13 : f32 to vector<16x128xf32>
    %24 = arith.divf %23, %22 : vector<16x128xf32>
    %cst_14 = arith.constant 1.06140542 : f32
    %25 = vector.broadcast %cst_14 : f32 to vector<16x128xf32>
    %26 = arith.mulf %25, %24 : vector<16x128xf32>
    %cst_15 = arith.constant -1.45315206 : f32
    %27 = vector.broadcast %cst_15 : f32 to vector<16x128xf32>
    %28 = arith.addf %26, %27 : vector<16x128xf32>
    %29 = arith.mulf %28, %24 : vector<16x128xf32>
    %cst_16 = arith.constant 1.42141378 : f32
    %30 = vector.broadcast %cst_16 : f32 to vector<16x128xf32>
    %31 = arith.addf %29, %30 : vector<16x128xf32>
    %32 = arith.mulf %31, %24 : vector<16x128xf32>
    %cst_17 = arith.constant -0.284496725 : f32
    %33 = vector.broadcast %cst_17 : f32 to vector<16x128xf32>
    %34 = arith.addf %32, %33 : vector<16x128xf32>
    %35 = arith.mulf %34, %24 : vector<16x128xf32>
    %cst_18 = arith.constant 0.254829586 : f32
    %36 = vector.broadcast %cst_18 : f32 to vector<16x128xf32>
    %37 = arith.addf %35, %36 : vector<16x128xf32>
    %38 = arith.mulf %37, %24 : vector<16x128xf32>
    %cst_19 = arith.constant 0.000000e+00 : f32
    %39 = vector.broadcast %cst_19 : f32 to vector<16x128xf32>
    %40 = arith.subf %39, %18 : vector<16x128xf32>
    %41 = arith.mulf %40, %18 : vector<16x128xf32>
    %42 = math.exp %41 : vector<16x128xf32>
    %43 = arith.mulf %38, %42 : vector<16x128xf32>
    %cst_20 = arith.constant 1.000000e+00 : f32
    %44 = vector.broadcast %cst_20 : f32 to vector<16x128xf32>
    %45 = arith.subf %44, %43 : vector<16x128xf32>
    %46 = arith.mulf %17, %45 : vector<16x128xf32>
    %cst_21 = arith.constant 1.000000e+00 : f32
    %47 = vector.broadcast %cst_21 : f32 to vector<16x128xf32>
    %48 = arith.addf %47, %46 : vector<16x128xf32>
    %49 = arith.mulf %10, %48 : vector<16x128xf32>
    %50 = arith.truncf %49 : vector<16x128xf32> to vector<16x128xbf16>
    %c0_22 = arith.constant 0 : index
    %c0_23 = arith.constant 0 : index
    %51 = vector.load %arg7[%c0_22, %c0_23] : memref<16x128xbf16, #tpu.memory_space<vmem>>, vector<16x128xbf16>
    tpu.vector_store %arg7[%c0_22, %c0_23], %50 {strides = array<i32>} : memref<16x128xbf16, #tpu.memory_space<vmem>>, vector<16x128xbf16>,
    return
  }
  func.func @transform_0(%arg0: i32, %arg1: i32) -> (i32, i32) {
    %c0_i32 = arith.constant 0 : i32
    %c0_i32_0 = arith.constant 0 : i32
    return %arg0, %c0_i32 : i32, i32
  }
  func.func @transform_1(%arg0: i32, %arg1: i32) -> (i32, i32) {
    %c0_i32 = arith.constant 0 : i32
    %c0_i32_0 = arith.constant 0 : i32
    %c0_i32_1 = arith.constant 0 : i32
    return %c0_i32, %c0_i32_0 : i32, i32
  }
  func.func @transform_2(%arg0: i32, %arg1: i32) -> (i32, i32) {
    %c0_i32 = arith.constant 0 : i32
    %c0_i32_0 = arith.constant 0 : i32
    %c0_i32_1 = arith.constant 0 : i32
    return %c0_i32, %c0_i32_0 : i32, i32
  }
  func.func @transform_3(%arg0: i32, %arg1: i32) -> (i32, i32) {
    %c0_i32 = arith.constant 0 : i32
    %c0_i32_0 = arith.constant 0 : i32
    return %c0_i32, %arg1 : i32, i32
  }
  func.func @transform_4(%arg0: i32, %arg1: i32) -> (i32, i32) {
    %c0_i32 = arith.constant 0 : i32
    %c0_i32_0 = arith.constant 0 : i32
    return %c0_i32, %arg1 : i32, i32
  }
  func.func @transform_5(%arg0: i32, %arg1: i32) -> (i32, i32) {
    %c0_i32 = arith.constant 0 : i32
    return %arg0, %arg1 : i32, i32
  }
}

module attributes {stable_mosaic.version = 11 : i64} {
  func.func @kernel(%arg0: i32, %arg1: i32, %arg2: memref<16x128xf32, #tpu.memory_space<vmem>>, %arg3: memref<1x128xf32, #tpu.memory_space<vmem>>, %arg4: memref<1x128xf32, #tpu.memory_space<vmem>>, %arg5: memref<128x384xbf16, #tpu.memory_space<vmem>>, %arg6: memref<16x384xbf16, #tpu.memory_space<vmem>>, %arg7: memref<16x128xbf16, #tpu.memory_space<vmem>>) attributes {dimension_semantics = [#tpu.dimension_semantics<parallel>, #tpu.dimension_semantics<arbitrary>], iteration_bounds = array<i64: 1, 1>, scalar_prefetch = 0 : i64, scratch_operands = 1 : i64, tpu.core_type = #tpu.core_type<tc>, window_params = [{transform_indices = @transform_0, window_bounds = array<i64: 16, 128>}, {pipeline_mode = #tpu.pipeline_mode<synchronous>, transform_indices = @transform_1, window_bounds = array<i64: 1, 128>}, {pipeline_mode = #tpu.pipeline_mode<synchronous>, transform_indices = @transform_2, window_bounds = array<i64: 1, 128>}, {transform_indices = @transform_3, window_bounds = array<i64: 128, 384>}, {transform_indices = @transform_4, window_bounds = array<i64: 16, 384>}]} {
    %c0_i32 = arith.constant 0 : i32
    %0 = arith.cmpi eq, %arg1, %c0_i32 : i32
    %1 = arith.extui %0 : i1 to i32
    %c0_i32_0 = arith.constant 0 : i32
    %2 = arith.cmpi ne, %1, %c0_i32_0 : i32
    scf.if %2 {
      %c0_6 = arith.constant 0 : index
      %c0_7 = arith.constant 0 : index
      %8 = vector.load %arg2[%c0_6, %c0_7] : memref<16x128xf32, #tpu.memory_space<vmem>>, vector<16x128xf32>
      %cst_8 = arith.constant dense<0.000000e+00> : vector<16xf32>
      %9 = vector.multi_reduction <add>, %8, %cst_8 [1] : vector<16x128xf32> to vector<16xf32>
      %10 = vector.shape_cast %9 : vector<16xf32> to vector<16x1xf32>
      %cst_9 = arith.constant 1.280000e+02 : f32
      %11 = vector.broadcast %cst_9 : f32 to vector<16x1xf32>
      %12 = arith.divf %10, %11 : vector<16x1xf32>
      %13 = vector.broadcast %12 : vector<16x1xf32> to vector<16x128xf32>
      %14 = arith.subf %8, %13 : vector<16x128xf32>
      %15 = arith.mulf %14, %14 : vector<16x128xf32>
      %cst_10 = arith.constant dense<0.000000e+00> : vector<16xf32>
      %16 = vector.multi_reduction <add>, %15, %cst_10 [1] : vector<16x128xf32> to vector<16xf32>
      %17 = vector.shape_cast %16 : vector<16xf32> to vector<16x1xf32>
      %cst_11 = arith.constant 1.280000e+02 : f32
      %18 = vector.broadcast %cst_11 : f32 to vector<16x1xf32>
      %19 = arith.divf %17, %18 : vector<16x1xf32>
      %cst_12 = arith.constant 9.99999974E-6 : f32
      %20 = vector.broadcast %cst_12 : f32 to vector<16x1xf32>
      %21 = arith.addf %19, %20 : vector<16x1xf32>
      %22 = math.rsqrt %21 : vector<16x1xf32>
      %23 = vector.broadcast %22 : vector<16x1xf32> to vector<16x128xf32>
      %24 = arith.mulf %14, %23 : vector<16x128xf32>
      %c0_13 = arith.constant 0 : index
      %c0_14 = arith.constant 0 : index
      %25 = vector.load %arg3[%c0_13, %c0_14] : memref<1x128xf32, #tpu.memory_space<vmem>>, vector<1x128xf32>
      %26 = vector.broadcast %25 : vector<1x128xf32> to vector<16x128xf32>
      %27 = arith.mulf %24, %26 : vector<16x128xf32>
      %c0_15 = arith.constant 0 : index
      %c0_16 = arith.constant 0 : index
      %28 = vector.load %arg4[%c0_15, %c0_16] : memref<1x128xf32, #tpu.memory_space<vmem>>, vector<1x128xf32>
      %29 = vector.broadcast %28 : vector<1x128xf32> to vector<16x128xf32>
      %30 = arith.addf %27, %29 : vector<16x128xf32>
      %31 = arith.truncf %30 : vector<16x128xf32> to vector<16x128xbf16>
      %c0_17 = arith.constant 0 : index
      %c0_18 = arith.constant 0 : index
      %32 = vector.load %arg7[%c0_17, %c0_18] : memref<16x128xbf16, #tpu.memory_space<vmem>>, vector<16x128xbf16>
      tpu.vector_store %arg7[%c0_17, %c0_18], %31 {strides = array<i32>} : memref<16x128xbf16, #tpu.memory_space<vmem>>, vector<16x128xbf16>,
    } else {
    }
    %c0 = arith.constant 0 : index
    %c0_1 = arith.constant 0 : index
    %3 = vector.load %arg7[%c0, %c0_1] : memref<16x128xbf16, #tpu.memory_space<vmem>>, vector<16x128xbf16>
    %c0_2 = arith.constant 0 : index
    %c0_3 = arith.constant 0 : index
    %4 = vector.load %arg5[%c0_2, %c0_3] : memref<128x384xbf16, #tpu.memory_space<vmem>>, vector<128x384xbf16>
    %cst = arith.constant dense<0.000000e+00> : vector<16x384xf32>
    %5 = tpu.matmul %3, %4, %cst {dimension_numbers = #tpu.dot_dimension_numbers<[1], [0], [0], [1], [0, 0, 1, 1], [], []>} : vector<16x128xbf16>, vector<128x384xbf16>, vector<16x384xf32> -> vector<16x384xf32>
    %6 = arith.truncf %5 : vector<16x384xf32> to vector<16x384xbf16>
    %c0_4 = arith.constant 0 : index
    %c0_5 = arith.constant 0 : index
    %7 = vector.load %arg6[%c0_4, %c0_5] : memref<16x384xbf16, #tpu.memory_space<vmem>>, vector<16x384xbf16>
    tpu.vector_store %arg6[%c0_4, %c0_5], %6 {strides = array<i32>} : memref<16x384xbf16, #tpu.memory_space<vmem>>, vector<16x384xbf16>,
    return
  }
  func.func @transform_0(%arg0: i32, %arg1: i32) -> (i32, i32) {
    %c0_i32 = arith.constant 0 : i32
    %c0_i32_0 = arith.constant 0 : i32
    return %arg0, %c0_i32 : i32, i32
  }
  func.func @transform_1(%arg0: i32, %arg1: i32) -> (i32, i32) {
    %c0_i32 = arith.constant 0 : i32
    %c0_i32_0 = arith.constant 0 : i32
    %c0_i32_1 = arith.constant 0 : i32
    return %c0_i32, %c0_i32_0 : i32, i32
  }
  func.func @transform_2(%arg0: i32, %arg1: i32) -> (i32, i32) {
    %c0_i32 = arith.constant 0 : i32
    %c0_i32_0 = arith.constant 0 : i32
    %c0_i32_1 = arith.constant 0 : i32
    return %c0_i32, %c0_i32_0 : i32, i32
  }
  func.func @transform_3(%arg0: i32, %arg1: i32) -> (i32, i32) {
    %c0_i32 = arith.constant 0 : i32
    %c0_i32_0 = arith.constant 0 : i32
    return %c0_i32, %arg1 : i32, i32
  }
  func.func @transform_4(%arg0: i32, %arg1: i32) -> (i32, i32) {
    %c0_i32 = arith.constant 0 : i32
    return %arg0, %arg1 : i32, i32
  }
}

</mosaic_0001>

<llo_original>
// kernel: embedding_transformer_forward.15
$region0: #{embedding_transformer_forward.15}
  #allocation0 [shape = 'u32[]', space=smem, size = 0x4, offset = 0x4, fixed_abs, tag = 'smem constant byte address 0x4 - core index']
  #allocation1 [shape = 'u32[144,128]{1,0:T(1,128)}', space=vmem, size = 0x12000, scoped, tag = 'internal scratch']
  %s0 = inlined_call_operand.vmem [shape: bf16[16,128], index: 0, kind: input, shape index: {}]
  %s1 = inlined_call_operand.vmem [shape: bf16[128,128], index: 1, kind: input, shape index: {}]
  %s2 = inlined_call_operand.vmem [shape: f32[1,128], index: 2, kind: input, shape index: {}]
  %s3 = inlined_call_operand.vmem [shape: f32[16,128], index: 3, kind: input, shape index: {}]
  %s4 = inlined_call_operand.vmem [shape: f32[16,128], index: 4, kind: output, shape index: {}]
  %s5 = sld [smem:[#allocation0]]
  $region26: #{embedding_transformer_forward.15} parent=0
    _
  %s7 = ssub.s32 1, %s5
  %s8 = scalar_select 0, %s7, %s5
  // Predicated region
  $region2: #{embedding_transformer_forward.15} parent=0 // pred_check
    _
  $region3: #{embedding_transformer_forward.15} parent=0 // pred_check_branch
    %10 = sbr.rel (0) target = $region5
  $region4: #{embedding_transformer_forward.15} parent=0 // pred_region
    _
  $region5: #{embedding_transformer_forward.15} parent=0 // pred_fallthru
    _
  // Predicated region
  $region6: #{embedding_transformer_forward.15} parent=0 // pred_check
    _
  $region7: #{embedding_transformer_forward.15} parent=0 // pred_check_branch
    %12 = sbr.rel (0) target = $region9
  $region8: #{embedding_transformer_forward.15} parent=0 // pred_region
    _
  $region9: #{embedding_transformer_forward.15} parent=0 // pred_fallthru
    _
  // Predicated region
  $region10: #{embedding_transformer_forward.15} parent=0 // pred_check
    _
  $region11: #{embedding_transformer_forward.15} parent=0 // pred_check_branch
    %14 = sbr.rel (0) target = $region13
  $region12: #{embedding_transformer_forward.15} parent=0 // pred_region
    _
  $region13: #{embedding_transformer_forward.15} parent=0 // pred_fallthru
    _
  // Predicated region
  $region14: #{embedding_transformer_forward.15} parent=0 // pred_check
    _
  $region15: #{embedding_transformer_forward.15} parent=0 // pred_check_branch
    %16 = sbr.rel (0) target = $region17
  $region16: #{embedding_transformer_forward.15} parent=0 // pred_region
    _
  $region17: #{embedding_transformer_forward.15} parent=0 // pred_fallthru
    _
  %v18 = vld [vmem:[%s0] sm:$0xf]
  %v19 = vld [vmem:[%s0 + $0x4] sm:$0xf]
  %v20 = vld [vmem:[%s1] sm:$0xf]
  %v21 = vld [vmem:[%s1 + $0x4] sm:$0xf]
  %v22 = vld [vmem:[%s1 + $0x8] sm:$0xf]
  %v23 = vld [vmem:[%s1 + $0xc] sm:$0xf]
  %v24 = vld [vmem:[%s1 + $0x10] sm:$0xf]
  %v25 = vld [vmem:[%s1 + $0x14] sm:$0xf]
  %v26 = vld [vmem:[%s1 + $0x18] sm:$0xf]
  %v27 = vld [vmem:[%s1 + $0x1c] sm:$0xf]
  %v28 = vld [vmem:[%s1 + $0x20] sm:$0xf]
  %v29 = vld [vmem:[%s1 + $0x24] sm:$0xf]
  %v30 = vld [vmem:[%s1 + $0x28] sm:$0xf]
  %v31 = vld [vmem:[%s1 + $0x2c] sm:$0xf]
  %v32 = vld [vmem:[%s1 + $0x30] sm:$0xf]
  %v33 = vld [vmem:[%s1 + $0x34] sm:$0xf]
  %v34 = vld [vmem:[%s1 + $0x38] sm:$0xf]
  %v35 = vld [vmem:[%s1 + $0x3c] sm:$0xf]
  %v36 = vld [vmem:[%s2] sm:$0x1]
  %v38 = vlaneseq
  %v39 = vshrl.u32 %v38, 7
  %v40 = vsub.s32 0, %v39
  %v41 = vrot.slane %v36, %v40
  %v45 = vunpack.c.l.b16 %v18
  %v46 = vunpack.c.l.b16 %v19
  %v47 = vpack.c.b16 %v46, %v45
  %v65 = vunpack.c.l.b16 %v20
  %v66 = vunpack.c.l.b16 %v21
  %v67 = vunpack.c.l.b16 %v22
  %v68 = vunpack.c.l.b16 %v23
  %v69 = vunpack.c.l.b16 %v24
  %v70 = vunpack.c.l.b16 %v25
  %v71 = vunpack.c.l.b16 %v26
  %v72 = vunpack.c.l.b16 %v27
  %v73 = vunpack.c.l.b16 %v28
  %v74 = vunpack.c.l.b16 %v29
  %v75 = vunpack.c.l.b16 %v30
  %v76 = vunpack.c.l.b16 %v31
  %v77 = vunpack.c.l.b16 %v32
  %v78 = vunpack.c.l.b16 %v33
  %v79 = vunpack.c.l.b16 %v34
  %v80 = vunpack.c.l.b16 %v35
  %v81 = vpack.c.b16 %v66, %v65
  %v82 = vpack.c.b16 %v68, %v67
  %v83 = vpack.c.b16 %v70, %v69
  %v84 = vpack.c.b16 %v72, %v71
  %v85 = vpack.c.b16 %v74, %v73
  %v86 = vpack.c.b16 %v76, %v75
  %v87 = vpack.c.b16 %v78, %v77
  %v88 = vpack.c.b16 %v80, %v79
  %97 = vmatprep.subr.bf16.mxu0 0
  %98 = vmatpush1.bf16.msra.mxu0 %v88
  %99 = vmatprep.subr.bf16.mxu0 0
  %100 = vmatpush1.bf16.msra.mxu0 %v87
  %101 = vmatprep.subr.bf16.mxu0 0
  %102 = vmatpush1.bf16.msra.mxu0 %v86
  %103 = vmatprep.subr.bf16.mxu0 0
  %104 = vmatpush1.bf16.msra.mxu0 %v85
  %105 = vmatprep.subr.bf16.mxu0 0
  %106 = vmatpush1.bf16.msra.mxu0 %v84
  %107 = vmatprep.subr.bf16.mxu0 0
  %108 = vmatpush1.bf16.msra.mxu0 %v83
  %109 = vmatprep.subr.bf16.mxu0 0
  %110 = vmatpush1.bf16.msra.mxu0 %v82
  %111 = vmatprep.subr.bf16.mxu0 0
  %112 = vmatpush1.bf16.msra.mxu0 %v81
  %113 = vmatprep.subr.bf16.mxu0 0
  %114 = vmatpush2.bf16.msra.mxu0 0
  %115 = vmatprep.subr.bf16.mxu0 0
  %116 = vmatpush2.bf16.msra.mxu0 0
  %117 = vmatprep.subr.bf16.mxu0 0
  %118 = vmatpush2.bf16.msra.mxu0 0
  %119 = vmatprep.subr.bf16.mxu0 0
  %120 = vmatpush2.bf16.msra.mxu0 0
  %121 = vmatprep.subr.bf16.mxu0 0
  %122 = vmatpush2.bf16.msra.mxu0 0
  %123 = vmatprep.subr.bf16.mxu0 0
  %124 = vmatpush2.bf16.msra.mxu0 0
  %125 = vmatprep.subr.bf16.mxu0 0
  %126 = vmatpush2.bf16.msra.mxu0 0
  %127 = vmatprep.subr.bf16.mxu0 0
  %128 = vmatpush2.bf16.msra.mxu0 0
  %129 = vmatprep.mubr.bf16.mxu0 0
  %130 = vmatmul.mubr.bf16.gmra.mxu0 %v47
  %v131 = vpop.f32.mrf.mxu0
  %v132 = vadd.f32 %v41, %v131
  %v133 = vpop.f32.mrf.mxu0
  %v134 = vpop.f32.mrf.mxu0
  %v135 = vadd.f32 %v41, %v134
  %v136 = vpop.f32.mrf.mxu0
  %137 = vdwg.mxu0
  %v138 = vld [vmem:[%s3] sm:$0xff]
  %v139 = vld [vmem:[%s3 + $0x8] sm:$0xff]
  %v140 = vadd.f32 %v132, %v138
  %v141 = vadd.f32 %v135, %v139
  %142 = vst [vmem:[%s4] sm:$0xff] %v140
  %143 = vst [vmem:[%s4 + $0x8] sm:$0xff] %v141
  // Predicated region
  $region18: #{embedding_transformer_forward.15} parent=0 // pred_check
    _
  $region19: #{embedding_transformer_forward.15} parent=0 // pred_check_branch
    %145 = sbr.rel (0) target = $region21
  $region20: #{embedding_transformer_forward.15} parent=0 // pred_region
    _
  $region21: #{embedding_transformer_forward.15} parent=0 // pred_fallthru
    _
  // Predicated region
  $region22: #{embedding_transformer_forward.15} parent=0 // pred_check
    _
  $region23: #{embedding_transformer_forward.15} parent=0 // pred_check_branch
    %147 = sbr.rel (0) target = $region25
  $region24: #{embedding_transformer_forward.15} parent=0 // pred_region
    _
  $region25: #{embedding_transformer_forward.15} parent=0 // pred_fallthru
    _

// kernel: embedding_transformer_forward.12
$region0: #{embedding_transformer_forward.12}
  #allocation0 [shape = 'u32[]', space=smem, size = 0x4, offset = 0x4, fixed_abs, tag = 'smem constant byte address 0x4 - core index']
  #allocation1 [shape = 'u32[144,128]{1,0:T(1,128)}', space=vmem, size = 0x12000, scoped, tag = 'internal scratch']
  %s0 = inlined_call_operand.hbm [shape: f32[16,128], index: 0, kind: input, shape index: {}]
  %s1 = inlined_call_operand.vmem [shape: bf16[128,128], index: 1, kind: input, shape index: {}]
  %s2 = inlined_call_operand.vmem [shape: f32[1,128], index: 2, kind: input, shape index: {}]
  %s3 = inlined_call_operand.vmem [shape: f32[16,128], index: 3, kind: output, shape index: {}]
  %s4 = sld [smem:[#allocation0]]
  $region26: #{embedding_transformer_forward.12} parent=0
    _
  %s6 = ssub.s32 1, %s4
  %s7 = scalar_select 0, %s6, %s4
  $region1: #{embedding_transformer_forward.12} parent=0
    #allocation2 [shape = 'u8[8192]{0}', space=vmem, size = 0x2000, scoped, tag = 'input window, operand 0, single buffered']
    #allocation3 [shape = 's32[1]{0}', space=sflag, size = 0x4, scoped, tag = 'scoped memory for embedding_transformer_forward.12']
    %8 = vsyncpa [#allocation3], 0
    // Predicated region
    $region2: #{embedding_transformer_forward.12} parent=1 // pred_check
      _
    $region3: #{embedding_transformer_forward.12} parent=1 // pred_check_branch
      %10 = sbr.rel (0) target = $region5
    $region4: #{embedding_transformer_forward.12} parent=1 // pred_region
      %s12 = ssub.s32 256, 256
      %13 = vsyncadd [#allocation3], %s12
      %s14 = sshll.u32 [#allocation2], 4
      %s15 = int_to_ptr.vmem [resolvable:$true] %s14
      %20 = dma.hbm_to_vmem [thread:$0]  %s0, 256, %s15, [#allocation3], 128, 128, 8
    $region5: #{embedding_transformer_forward.12} parent=1 // pred_fallthru
      _
    // Predicated region
    $region6: #{embedding_transformer_forward.12} parent=1 // pred_check
      _
    $region7: #{embedding_transformer_forward.12} parent=1 // pred_check_branch
      %22 = sbr.rel (0) target = $region9
    $region8: #{embedding_transformer_forward.12} parent=1 // pred_region
      _
    $region9: #{embedding_transformer_forward.12} parent=1 // pred_fallthru
      _
    // Predicated region
    $region10: #{embedding_transformer_forward.12} parent=1 // pred_check
      _
    $region11: #{embedding_transformer_forward.12} parent=1 // pred_check_branch
      %24 = sbr.rel (0) target = $region13
    $region12: #{embedding_transformer_forward.12} parent=1 // pred_region
      _
    $region13: #{embedding_transformer_forward.12} parent=1 // pred_fallthru
      _
    // Predicated region
    $region14: #{embedding_transformer_forward.12} parent=1 // pred_check
      _
    $region15: #{embedding_transformer_forward.12} parent=1 // pred_check_branch
      %26 = sbr.rel (0) target = $region17
    $region16: #{embedding_transformer_forward.12} parent=1 // pred_region
      %27 = dma.done [#allocation3], 256
    $region17: #{embedding_transformer_forward.12} parent=1 // pred_fallthru
      _
    %v29 = vld [vmem:[#allocation2] sm:$0xff]
    %v30 = vld [vmem:[#allocation2 + $0x8] sm:$0xff]
    %v31 = vpack.c.bf16 %v30, %v29
    %v32 = vld [vmem:[%s1] sm:$0xf]
    %v33 = vld [vmem:[%s1 + $0x4] sm:$0xf]
    %v34 = vld [vmem:[%s1 + $0x8] sm:$0xf]
    %v35 = vld [vmem:[%s1 + $0xc] sm:$0xf]
    %v36 = vld [vmem:[%s1 + $0x10] sm:$0xf]
    %v37 = vld [vmem:[%s1 + $0x14] sm:$0xf]
    %v38 = vld [vmem:[%s1 + $0x18] sm:$0xf]
    %v39 = vld [vmem:[%s1 + $0x1c] sm:$0xf]
    %v40 = vld [vmem:[%s1 + $0x20] sm:$0xf]
    %v41 = vld [vmem:[%s1 + $0x24] sm:$0xf]
    %v42 = vld [vmem:[%s1 + $0x28] sm:$0xf]
    %v43 = vld [vmem:[%s1 + $0x2c] sm:$0xf]
    %v44 = vld [vmem:[%s1 + $0x30] sm:$0xf]
    %v45 = vld [vmem:[%s1 + $0x34] sm:$0xf]
    %v46 = vld [vmem:[%s1 + $0x38] sm:$0xf]
    %v47 = vld [vmem:[%s1 + $0x3c] sm:$0xf]
    %v48 = vld [vmem:[%s2] sm:$0x1]
    %v50 = vlaneseq
    %v51 = vshrl.u32 %v50, 7
    %v52 = vsub.s32 0, %v51
    %v53 = vrot.slane %v48, %v52
    %v71 = vunpack.c.l.b16 %v32
    %v72 = vunpack.c.l.b16 %v33
    %v73 = vunpack.c.l.b16 %v34
    %v74 = vunpack.c.l.b16 %v35
    %v75 = vunpack.c.l.b16 %v36
    %v76 = vunpack.c.l.b16 %v37
    %v77 = vunpack.c.l.b16 %v38
    %v78 = vunpack.c.l.b16 %v39
    %v79 = vunpack.c.l.b16 %v40
    %v80 = vunpack.c.l.b16 %v41
    %v81 = vunpack.c.l.b16 %v42
    %v82 = vunpack.c.l.b16 %v43
    %v83 = vunpack.c.l.b16 %v44
    %v84 = vunpack.c.l.b16 %v45
    %v85 = vunpack.c.l.b16 %v46
    %v86 = vunpack.c.l.b16 %v47
    %v87 = vpack.c.b16 %v72, %v71
    %v88 = vpack.c.b16 %v74, %v73
    %v89 = vpack.c.b16 %v76, %v75
    %v90 = vpack.c.b16 %v78, %v77
    %v91 = vpack.c.b16 %v80, %v79
    %v92 = vpack.c.b16 %v82, %v81
    %v93 = vpack.c.b16 %v84, %v83
    %v94 = vpack.c.b16 %v86, %v85
    %103 = vmatprep.subr.bf16.mxu0 0
    %104 = vmatpush1.bf16.msra.mxu0 %v94
    %105 = vmatprep.subr.bf16.mxu0 0
    %106 = vmatpush1.bf16.msra.mxu0 %v93
    %107 = vmatprep.subr.bf16.mxu0 0
    %108 = vmatpush1.bf16.msra.mxu0 %v92
    %109 = vmatprep.subr.bf16.mxu0 0
    %110 = vmatpush1.bf16.msra.mxu0 %v91
    %111 = vmatprep.subr.bf16.mxu0 0
    %112 = vmatpush1.bf16.msra.mxu0 %v90
    %113 = vmatprep.subr.bf16.mxu0 0
    %114 = vmatpush1.bf16.msra.mxu0 %v89
    %115 = vmatprep.subr.bf16.mxu0 0
    %116 = vmatpush1.bf16.msra.mxu0 %v88
    %117 = vmatprep.subr.bf16.mxu0 0
    %118 = vmatpush1.bf16.msra.mxu0 %v87
    %119 = vmatprep.subr.bf16.mxu0 0
    %120 = vmatpush2.bf16.msra.mxu0 0
    %121 = vmatprep.subr.bf16.mxu0 0
    %122 = vmatpush2.bf16.msra.mxu0 0
    %123 = vmatprep.subr.bf16.mxu0 0
    %124 = vmatpush2.bf16.msra.mxu0 0
    %125 = vmatprep.subr.bf16.mxu0 0
    %126 = vmatpush2.bf16.msra.mxu0 0
    %127 = vmatprep.subr.bf16.mxu0 0
    %128 = vmatpush2.bf16.msra.mxu0 0
    %129 = vmatprep.subr.bf16.mxu0 0
    %130 = vmatpush2.bf16.msra.mxu0 0
    %131 = vmatprep.subr.bf16.mxu0 0
    %132 = vmatpush2.bf16.msra.mxu0 0
    %133 = vmatprep.subr.bf16.mxu0 0
    %134 = vmatpush2.bf16.msra.mxu0 0
    %135 = vmatprep.mubr.bf16.mxu0 0
    %136 = vmatmul.mubr.bf16.gmra.mxu0 %v31
    %v137 = vpop.f32.mrf.mxu0
    %v138 = vadd.f32 %v53, %v137
    %v139 = vpop.f32.mrf.mxu0
    %v140 = vpop.f32.mrf.mxu0
    %v141 = vadd.f32 %v53, %v140
    %v142 = vpop.f32.mrf.mxu0
    %143 = vdwg.mxu0
    %144 = vst [vmem:[%s3] sm:$0xff] %v138
    %145 = vst [vmem:[%s3 + $0x8] sm:$0xff] %v141
    // Predicated region
    $region18: #{embedding_transformer_forward.12} parent=1 // pred_check
      _
    $region19: #{embedding_transformer_forward.12} parent=1 // pred_check_branch
      %147 = sbr.rel (0) target = $region21
    $region20: #{embedding_transformer_forward.12} parent=1 // pred_region
      _
    $region21: #{embedding_transformer_forward.12} parent=1 // pred_fallthru
      _
    // Predicated region
    $region22: #{embedding_transformer_forward.12} parent=1 // pred_check
      _
    $region23: #{embedding_transformer_forward.12} parent=1 // pred_check_branch
      %149 = sbr.rel (0) target = $region25
    $region24: #{embedding_transformer_forward.12} parent=1 // pred_region
      _
    $region25: #{embedding_transformer_forward.12} parent=1 // pred_fallthru
      _
    %150 = vsyncpa [#allocation3], 1

// kernel: embedding_transformer_forward.13
$region0: #{embedding_transformer_forward.13}
  #allocation0 [shape = 'u32[]', space=smem, size = 0x4, offset = 0x4, fixed_abs, tag = 'smem constant byte address 0x4 - core index']
  #allocation1 [shape = 'u32[144,128]{1,0:T(1,128)}', space=vmem, size = 0x12000, scoped, tag = 'internal scratch']
  #allocation2 [shape = 'bf16[16,128]{1,0:T(8,128)(2,1)}', space=vmem, size = 0x1000, scoped, tag = 'scratch operand']
  %s0 = inlined_call_operand.vmem [shape: f32[16,128], index: 0, kind: input, shape index: {}]
  %s1 = inlined_call_operand.vmem [shape: f32[1,128], index: 1, kind: input, shape index: {}]
  %s2 = inlined_call_operand.vmem [shape: f32[1,128], index: 2, kind: input, shape index: {}]
  %s3 = inlined_call_operand.hbm [shape: bf16[128,384], index: 3, kind: input, shape index: {}]
  %s4 = inlined_call_operand.vmem [shape: bf16[16,384], index: 4, kind: output, shape index: {}]
  %s5 = sld [smem:[#allocation0]]
  $region34: #{embedding_transformer_forward.13} parent=0
    _
  %s7 = ssub.s32 1, %s5
  %s8 = scalar_select 0, %s7, %s5
  $region1: #{embedding_transformer_forward.13} parent=0
    #allocation3 [shape = 'u8[98304]{0}', space=vmem, size = 0x18000, scoped, tag = 'input window, operand 3, single buffered']
    #allocation4 [shape = 's32[1]{0}', space=sflag, size = 0x4, scoped, tag = 'scoped memory for embedding_transformer_forward.13']
    %9 = vsyncpa [#allocation4], 0
    // Predicated region
    $region2: #{embedding_transformer_forward.13} parent=1 // pred_check
      _
    $region3: #{embedding_transformer_forward.13} parent=1 // pred_check_branch
      %11 = sbr.rel (0) target = $region5
    $region4: #{embedding_transformer_forward.13} parent=1 // pred_region
      _
    $region5: #{embedding_transformer_forward.13} parent=1 // pred_fallthru
      _
    // Predicated region
    $region6: #{embedding_transformer_forward.13} parent=1 // pred_check
      _
    $region7: #{embedding_transformer_forward.13} parent=1 // pred_check_branch
      %13 = sbr.rel (0) target = $region9
    $region8: #{embedding_transformer_forward.13} parent=1 // pred_region
      _
    $region9: #{embedding_transformer_forward.13} parent=1 // pred_fallthru
      _
    // Predicated region
    $region10: #{embedding_transformer_forward.13} parent=1 // pred_check
      _
    $region11: #{embedding_transformer_forward.13} parent=1 // pred_check_branch
      %15 = sbr.rel (0) target = $region13
    $region12: #{embedding_transformer_forward.13} parent=1 // pred_region
      _
    $region13: #{embedding_transformer_forward.13} parent=1 // pred_fallthru
      _
    // Predicated region
    $region14: #{embedding_transformer_forward.13} parent=1 // pred_check
      _
    $region15: #{embedding_transformer_forward.13} parent=1 // pred_check_branch
      %17 = sbr.rel (0) target = $region17
    $region16: #{embedding_transformer_forward.13} parent=1 // pred_region
      %s19 = ssub.s32 3072, 3072
      %20 = vsyncadd [#allocation4], %s19
      %s21 = sshll.u32 [#allocation3], 4
      %s22 = int_to_ptr.vmem [resolvable:$true] %s21
      %27 = dma.hbm_to_vmem [thread:$0]  %s3, 3072, %s22, [#allocation4], 192, 192, 12
    $region17: #{embedding_transformer_forward.13} parent=1 // pred_fallthru
      _
    // Predicated region
    $region18: #{embedding_transformer_forward.13} parent=1 // pred_check
      _
    $region19: #{embedding_transformer_forward.13} parent=1 // pred_check_branch
      %29 = sbr.rel (0) target = $region21
    $region20: #{embedding_transformer_forward.13} parent=1 // pred_region
      %30 = dma.done [#allocation4], 3072
    $region21: #{embedding_transformer_forward.13} parent=1 // pred_fallthru
      _
    %p32 = scmp.eq.s32.totalorder 0, 0
    // Predicated region
    $region22: #{embedding_transformer_forward.13} parent=1 // pred_check
      %p33 = pneg %p32
    $region23: #{embedding_transformer_forward.13} parent=1 // pred_check_branch
      %35 = sbr.rel (%p33) target = $region25
    $region24: #{embedding_transformer_forward.13} parent=1 // pred_region
      %v36 = vld [vmem:[%s0] sm:$0xff]
      %v37 = vld [vmem:[%s0 + $0x8] sm:$0xff]
      %38 = vadd.xlane.f32.xlu0 %v36
      %v39 = vpop.xlane.xlu0 %38
      %40 = vadd.xlane.f32.xlu0 %v37
      %v41 = vpop.xlane.xlu0 %40
      %v42 = vrcp.pop 128.0
      %v43 = vmul.f32 %v39, %v42
      %v44 = vmul.f32 %v41, %v42
      %v45 = vsub.f32 %v36, %v43
      %v46 = vsub.f32 %v37, %v44
      %v47 = vmul.f32 %v45, %v45
      %v48 = vmul.f32 %v46, %v46
      %49 = vadd.xlane.f32.xlu0 %v47
      %v50 = vpop.xlane.xlu0 %49
      %51 = vadd.xlane.f32.xlu0 %v48
      %v52 = vpop.xlane.xlu0 %51
      %v53 = vmul.f32 %v50, %v42
      %v54 = vmul.f32 %v52, %v42
      %v55 = vadd.f32 %v53, 1e-05
      %v56 = vadd.f32 %v54, 1e-05
      %v57 = vrsqrt.pop %v55
      %v58 = vrsqrt.pop %v56
      %v59 = vmul.f32 %v45, %v57
      %v60 = vmul.f32 %v46, %v58
      %v61 = vld [vmem:[%s1] sm:$0x1]
      %v63 = vlaneseq
      %v64 = vshrl.u32 %v63, 7
      %v65 = vsub.s32 0, %v64
      %v66 = vrot.slane %v61, %v65
      %v68 = vmul.f32 %v59, %v66
      %v69 = vmul.f32 %v60, %v66
      %v70 = vld [vmem:[%s2] sm:$0x1]
      %v72 = vlaneseq
      %v73 = vshrl.u32 %v72, 7
      %v74 = vsub.s32 0, %v73
      %v75 = vrot.slane %v70, %v74
      %v77 = vadd.f32 %v68, %v75
      %v78 = vadd.f32 %v69, %v75
      %v79 = vpack.c.bf16 %v78, %v77
      %v81 = vunpack.c.l.b16 %v79
      %v82 = vunpack.c.h.b16 %v79
      %v83 = vpack.c.b16 %v81, %v81
      %v84 = vpack.c.b16 %v82, %v82
      %87 = vst [vmem:[#allocation2] sm:$0xf] %v83
      %88 = vst [vmem:[#allocation2 + $0x4] sm:$0xf] %v84
    $region25: #{embedding_transformer_forward.13} parent=1 // pred_fallthru
      _
    %v89 = vld [vmem:[#allocation2] sm:$0xf]
    %v90 = vld [vmem:[#allocation2 + $0x4] sm:$0xf]
    %v91 = vld [vmem:[#allocation3] sm:$0xff]
    %v92 = vld [vmem:[#allocation3 + $0x8] sm:$0xf]
    %v93 = vld [vmem:[#allocation3 + $0xc] sm:$0xff]
    %v94 = vld [vmem:[#allocation3 + $0x14] sm:$0xf]
    %v95 = vld [vmem:[#allocation3 + $0x18] sm:$0xff]
    %v96 = vld [vmem:[#allocation3 + $0x20] sm:$0xf]
    %v97 = vld [vmem:[#allocation3 + $0x24] sm:$0xff]
    %v98 = vld [vmem:[#allocation3 + $0x2c] sm:$0xf]
    %v99 = vld [vmem:[#allocation3 + $0x30] sm:$0xff]
    %v100 = vld [vmem:[#allocation3 + $0x38] sm:$0xf]
    %v101 = vld [vmem:[#allocation3 + $0x3c] sm:$0xff]
    %v102 = vld [vmem:[#allocation3 + $0x44] sm:$0xf]
    %v103 = vld [vmem:[#allocation3 + $0x48] sm:$0xff]
    %v104 = vld [vmem:[#allocation3 + $0x50] sm:$0xf]
    %v105 = vld [vmem:[#allocation3 + $0x54] sm:$0xff]
    %v106 = vld [vmem:[#allocation3 + $0x5c] sm:$0xf]
    %v107 = vld [vmem:[#allocation3 + $0x60] sm:$0xff]
    %v108 = vld [vmem:[#allocation3 + $0x68] sm:$0xf]
    %v109 = vld [vmem:[#allocation3 + $0x6c] sm:$0xff]
    %v110 = vld [vmem:[#allocation3 + $0x74] sm:$0xf]
    %v111 = vld [vmem:[#allocation3 + $0x78] sm:$0xff]
    %v112 = vld [vmem:[#allocation3 + $0x80] sm:$0xf]
    %v113 = vld [vmem:[#allocation3 + $0x84] sm:$0xff]
    %v114 = vld [vmem:[#allocation3 + $0x8c] sm:$0xf]
    %v115 = vld [vmem:[#allocation3 + $0x90] sm:$0xff]
    %v116 = vld [vmem:[#allocation3 + $0x98] sm:$0xf]
    %v117 = vld [vmem:[#allocation3 + $0x9c] sm:$0xff]
    %v118 = vld [vmem:[#allocation3 + $0xa4] sm:$0xf]
    %v119 = vld [vmem:[#allocation3 + $0xa8] sm:$0xff]
    %v120 = vld [vmem:[#allocation3 + $0xb0] sm:$0xf]
    %v121 = vld [vmem:[#allocation3 + $0xb4] sm:$0xff]
    %v122 = vld [vmem:[#allocation3 + $0xbc] sm:$0xf]
    %v125 = vunpack.c.l.b16 %v89
    %v126 = vunpack.c.l.b16 %v90
    %v127 = vpack.c.b16 %v126, %v125
    %v161 = vunpack.c.l.b16 %v91
    %v162 = vunpack.c.h.b16 %v91
    %v163 = vunpack.c.l.b16 %v92
    %v164 = vunpack.c.l.b16 %v93
    %v165 = vunpack.c.h.b16 %v93
    %v166 = vunpack.c.l.b16 %v94
    %v167 = vunpack.c.l.b16 %v95
    %v168 = vunpack.c.h.b16 %v95
    %v169 = vunpack.c.l.b16 %v96
    %v170 = vunpack.c.l.b16 %v97
    %v171 = vunpack.c.h.b16 %v97
    %v172 = vunpack.c.l.b16 %v98
    %v173 = vunpack.c.l.b16 %v99
    %v174 = vunpack.c.h.b16 %v99
    %v175 = vunpack.c.l.b16 %v100
    %v176 = vunpack.c.l.b16 %v101
    %v177 = vunpack.c.h.b16 %v101
    %v178 = vunpack.c.l.b16 %v102
    %v179 = vunpack.c.l.b16 %v103
    %v180 = vunpack.c.h.b16 %v103
    %v181 = vunpack.c.l.b16 %v104
    %v182 = vunpack.c.l.b16 %v105
    %v183 = vunpack.c.h.b16 %v105
    %v184 = vunpack.c.l.b16 %v106
    %v185 = vunpack.c.l.b16 %v107
    %v186 = vunpack.c.h.b16 %v107
    %v187 = vunpack.c.l.b16 %v108
    %v188 = vunpack.c.l.b16 %v109
    %v189 = vunpack.c.h.b16 %v109
    %v190 = vunpack.c.l.b16 %v110
    %v191 = vunpack.c.l.b16 %v111
    %v192 = vunpack.c.h.b16 %v111
    %v193 = vunpack.c.l.b16 %v112
    %v194 = vunpack.c.l.b16 %v113
    %v195 = vunpack.c.h.b16 %v113
    %v196 = vunpack.c.l.b16 %v114
    %v197 = vunpack.c.l.b16 %v115
    %v198 = vunpack.c.h.b16 %v115
    %v199 = vunpack.c.l.b16 %v116
    %v200 = vunpack.c.l.b16 %v117
    %v201 = vunpack.c.h.b16 %v117
    %v202 = vunpack.c.l.b16 %v118
    %v203 = vunpack.c.l.b16 %v119
    %v204 = vunpack.c.h.b16 %v119
    %v205 = vunpack.c.l.b16 %v120
    %v206 = vunpack.c.l.b16 %v121
    %v207 = vunpack.c.h.b16 %v121
    %v208 = vunpack.c.l.b16 %v122
    %v209 = vpack.c.b16 %v164, %v161
    %v210 = vpack.c.b16 %v165, %v162
    %v211 = vpack.c.b16 %v166, %v163
    %v212 = vpack.c.b16 %v170, %v167
    %v213 = vpack.c.b16 %v171, %v168
    %v214 = vpack.c.b16 %v172, %v169
    %v215 = vpack.c.b16 %v176, %v173
    %v216 = vpack.c.b16 %v177, %v174
    %v217 = vpack.c.b16 %v178, %v175
    %v218 = vpack.c.b16 %v182, %v179
    %v219 = vpack.c.b16 %v183, %v180
    %v220 = vpack.c.b16 %v184, %v181
    %v221 = vpack.c.b16 %v188, %v185
    %v222 = vpack.c.b16 %v189, %v186
    %v223 = vpack.c.b16 %v190, %v187
    %v224 = vpack.c.b16 %v194, %v191
    %v225 = vpack.c.b16 %v195, %v192
    %v226 = vpack.c.b16 %v196, %v193
    %v227 = vpack.c.b16 %v200, %v197
    %v228 = vpack.c.b16 %v201, %v198
    %v229 = vpack.c.b16 %v202, %v199
    %v230 = vpack.c.b16 %v206, %v203
    %v231 = vpack.c.b16 %v207, %v204
    %v232 = vpack.c.b16 %v208, %v205
    %257 = vmatprep.subr.bf16.mxu0 %v231
    %258 = vmatpush1.bf16.msra.mxu0 %v230
    %259 = vmatprep.subr.bf16.mxu0 %v228
    %260 = vmatpush1.bf16.msra.mxu0 %v227
    %261 = vmatprep.subr.bf16.mxu0 %v225
    %262 = vmatpush1.bf16.msra.mxu0 %v224
    %263 = vmatprep.subr.bf16.mxu0 %v222
    %264 = vmatpush1.bf16.msra.mxu0 %v221
    %265 = vmatprep.subr.bf16.mxu0 %v219
    %266 = vmatpush1.bf16.msra.mxu0 %v218
    %267 = vmatprep.subr.bf16.mxu0 %v216
    %268 = vmatpush1.bf16.msra.mxu0 %v215
    %269 = vmatprep.subr.bf16.mxu0 %v213
    %270 = vmatpush1.bf16.msra.mxu0 %v212
    %271 = vmatprep.subr.bf16.mxu0 %v210
    %272 = vmatpush1.bf16.msra.mxu0 %v209
    %273 = vmatprep.subr.bf16.mxu0 0
    %274 = vmatpush2.bf16.msra.mxu0 0
    %275 = vmatprep.subr.bf16.mxu0 0
    %276 = vmatpush2.bf16.msra.mxu0 0
    %277 = vmatprep.subr.bf16.mxu0 0
    %278 = vmatpush2.bf16.msra.mxu0 0
    %279 = vmatprep.subr.bf16.mxu0 0
    %280 = vmatpush2.bf16.msra.mxu0 0
    %281 = vmatprep.subr.bf16.mxu0 0
    %282 = vmatpush2.bf16.msra.mxu0 0
    %283 = vmatprep.subr.bf16.mxu0 0
    %284 = vmatpush2.bf16.msra.mxu0 0
    %285 = vmatprep.subr.bf16.mxu0 0
    %286 = vmatpush2.bf16.msra.mxu0 0
    %287 = vmatprep.subr.bf16.mxu0 0
    %288 = vmatpush2.bf16.msra.mxu0 0
    %289 = vmatprep.mubr.bf16.mxu0 0
    %290 = vmatmul.mubr.bf16.gmra.mxu0 %v127
    %v291 = vpop.f32.mrf.mxu0
    %v292 = vadd.f32 0.0, %v291
    %v293 = vpop.f32.mrf.mxu0
    %v294 = vadd.f32 0.0, %v293
    %v295 = vpop.f32.mrf.mxu0
    %v296 = vadd.f32 0.0, %v295
    %v297 = vpop.f32.mrf.mxu0
    %v298 = vadd.f32 0.0, %v297
    %299 = vdwg.mxu0
    %300 = vmatprep.subr.bf16.mxu0 0
    %301 = vmatpush1.bf16.msra.mxu0 %v232
    %302 = vmatprep.subr.bf16.mxu0 0
    %303 = vmatpush1.bf16.msra.mxu0 %v229
    %304 = vmatprep.subr.bf16.mxu0 0
    %305 = vmatpush1.bf16.msra.mxu0 %v226
    %306 = vmatprep.subr.bf16.mxu0 0
    %307 = vmatpush1.bf16.msra.mxu0 %v223
    %308 = vmatprep.subr.bf16.mxu0 0
    %309 = vmatpush1.bf16.msra.mxu0 %v220
    %310 = vmatprep.subr.bf16.mxu0 0
    %311 = vmatpush1.bf16.msra.mxu0 %v217
    %312 = vmatprep.subr.bf16.mxu0 0
    %313 = vmatpush1.bf16.msra.mxu0 %v214
    %314 = vmatprep.subr.bf16.mxu0 0
    %315 = vmatpush1.bf16.msra.mxu0 %v211
    %316 = vmatprep.subr.bf16.mxu0 0
    %317 = vmatpush2.bf16.msra.mxu0 0
    %318 = vmatprep.subr.bf16.mxu0 0
    %319 = vmatpush2.bf16.msra.mxu0 0
    %320 = vmatprep.subr.bf16.mxu0 0
    %321 = vmatpush2.bf16.msra.mxu0 0
    %322 = vmatprep.subr.bf16.mxu0 0
    %323 = vmatpush2.bf16.msra.mxu0 0
    %324 = vmatprep.subr.bf16.mxu0 0
    %325 = vmatpush2.bf16.msra.mxu0 0
    %326 = vmatprep.subr.bf16.mxu0 0
    %327 = vmatpush2.bf16.msra.mxu0 0
    %328 = vmatprep.subr.bf16.mxu0 0
    %329 = vmatpush2.bf16.msra.mxu0 0
    %330 = vmatprep.subr.bf16.mxu0 0
    %331 = vmatpush2.bf16.msra.mxu0 0
    %332 = vmatprep.mubr.bf16.mxu0 0
    %333 = vmatmul.mubr.bf16.gmra.mxu0 %v127
    %v334 = vpop.f32.mrf.mxu0
    %v335 = vadd.f32 0.0, %v334
    %v336 = vpop.f32.mrf.mxu0
    %v337 = vpop.f32.mrf.mxu0
    %v338 = vadd.f32 0.0, %v337
    %v339 = vpop.f32.mrf.mxu0
    %340 = vdwg.mxu0
    %v341 = vpack.c.bf16 %v296, %v292
    %v342 = vpack.c.bf16 %v298, %v294
    %v343 = vpack.c.bf16 %v338, %v335
    %v347 = vunpack.c.l.b16 %v341
    %v348 = vunpack.c.l.b16 %v342
    %v349 = vunpack.c.l.b16 %v343
    %v350 = vunpack.c.h.b16 %v341
    %v351 = vunpack.c.h.b16 %v342
    %v352 = vunpack.c.h.b16 %v343
    %v353 = vpack.c.b16 %v348, %v347
    %v354 = vpack.c.b16 %v349, %v349
    %v355 = vpack.c.b16 %v351, %v350
    %v356 = vpack.c.b16 %v352, %v352
    %361 = vst [vmem:[%s4] sm:$0xff] %v353
    %362 = vst [vmem:[%s4 + $0x8] sm:$0xf] %v354
    %363 = vst [vmem:[%s4 + $0xc] sm:$0xff] %v355
    %364 = vst [vmem:[%s4 + $0x14] sm:$0xf] %v356
    // Predicated region
    $region26: #{embedding_transformer_forward.13} parent=1 // pred_check
      _
    $region27: #{embedding_transformer_forward.13} parent=1 // pred_check_branch
      %366 = sbr.rel (0) target = $region29
    $region28: #{embedding_transformer_forward.13} parent=1 // pred_region
      _
    $region29: #{embedding_transformer_forward.13} parent=1 // pred_fallthru
      _
    // Predicated region
    $region30: #{embedding_transformer_forward.13} parent=1 // pred_check
      _
    $region31: #{embedding_transformer_forward.13} parent=1 // pred_check_branch
      %368 = sbr.rel (0) target = $region33
    $region32: #{embedding_transformer_forward.13} parent=1 // pred_region
      _
    $region33: #{embedding_transformer_forward.13} parent=1 // pred_fallthru
      _
    %369 = vsyncpa [#allocation4], 1

// kernel: embedding_transformer_forward.14
$region0: #{embedding_transformer_forward.14}
  #allocation0 [shape = 'u32[]', space=smem, size = 0x4, offset = 0x4, fixed_abs, tag = 'smem constant byte address 0x4 - core index']
  #allocation1 [shape = 'u32[144,128]{1,0:T(1,128)}', space=vmem, size = 0x12000, scoped, tag = 'internal scratch']
  %s0 = inlined_call_operand.vmem [shape: bf16[2,8,384], index: 0, kind: input, shape index: {}, may-alias: {0,1,2}]
  %s1 = inlined_call_operand.vmem [shape: bf16[2,8,384], index: 1, kind: input, shape index: {}, may-alias: {0,1,2}]
  %s2 = inlined_call_operand.vmem [shape: bf16[2,8,384], index: 2, kind: input, shape index: {}, may-alias: {0,1,2}]
  %s3 = inlined_call_operand.vmem [shape: bf16[2,8,128], index: 3, kind: output, shape index: {}]
  %s4 = sld [smem:[#allocation0]]
  $region45: #{embedding_transformer_forward.14} parent=0
    _
  %s6 = ssub.s32 1, %s4
  %s7 = scalar_select 0, %s6, %s4
  loop: start=0, step=1, limit=4
  $region2: #{embedding_transformer_forward.14} parent=0 // loop_pre_header
    _
  $region3: #{embedding_transformer_forward.14} parent=0 // loop_header
    %s9 = sphi 0, %s13
    %p10 = scmp.ge.s32.totalorder %s9, 4
    %s16 = sphi 0, %s28
    %s17 = sphi 0, %s24
    %s18 = sphi 0, %s16
    %s19 = sphi 0, %s17
    %s20 = sphi 0, %s18
    %s21 = sphi 0, %s19
    %s33 = sphi 0, %s35
    %s36 = sphi 0, %s33
    %s37 = sphi 0, %s36
    %s53 = sphi 0, %s37
    %s63 = sphi 0, %s65
    %s66 = sphi 0, %s63
    %s67 = sphi 0, %s66
    %s83 = sphi 0, %s67
    %s93 = sphi 0, %s95
    %s96 = sphi 0, %s93
    %s97 = sphi 0, %s96
    %s113 = sphi 0, %s97
    %s121 = sphi 0, %s123
    %s124 = sphi 0, %s121
    %s125 = sphi 0, %s124
    %s141 = sphi 0, %s125
  $region4: #{embedding_transformer_forward.14} parent=0 // loop_header_branch
    %12 = sbr.rel (%p10) target = $region8
  $region5: #{embedding_transformer_forward.14} parent=0 // loop_body
    %s14 = ssub.s32 %s9, 1
    %s15 = ssub.s32 %s9, 2
    %s22 = sadd.s32 1, %s17
    %p23 = scmp.ge.s32.totalorder %s22, 1
    %s24 = scalar_select %p23, 0, %s22
    %s25 = sadd.s32 1, %s16
    %s26 = scalar_select %p23, %s25, %s16
    %p27 = scmp.ge.s32.totalorder %s26, 2
    %s28 = scalar_select %p27, 0, %s26
    %s29 = ssub.s32 %s16, %s28
    %s30 = ssub.s32 %s17, %s24
    %s31 = sor.u32 %s29, %s30
    %p32 = scmp.eq.s32.totalorder %s31, 0
    %s34 = sadd.s32 %s33, 1
    %s35 = scalar_select %p32, %s33, %s34
    %p38 = pneg %p32
    %p39 = scmp.eq.s32.totalorder %s9, 1
    %p40 = por %p38, %p39
    %p41 = scmp.ne.s32.totalorder %s33, %s36
    %p42 = scmp.eq.s32.totalorder %s9, 0
    %p43 = por %p41, %p42
    %p44 = scmp.ne.s32.totalorder %s33, %s36
    %p45 = scmp.eq.s32.totalorder %s14, 1
    %p46 = por %p44, %p45
    %p47 = scmp.ne.s32.totalorder %s36, %s37
    %p48 = scmp.eq.s32.totalorder %s14, 0
    %p49 = por %p47, %p48
    %p50 = scmp.ne.s32.totalorder %s36, %s37
    %p51 = scmp.eq.s32.totalorder %s15, 1
    %p52 = por %p50, %p51
    %p54 = scmp.ne.s32.totalorder %s37, %s53
    %p55 = scmp.eq.s32.totalorder %s15, 0
    %p56 = por %p54, %p55
    %s57 = sadd.s32 %s17, 1
    %s58 = sadd.s32 %s24, 1
    %s59 = ssub.s32 %s16, %s28
    %s60 = ssub.s32 %s57, %s58
    %s61 = sor.u32 %s59, %s60
    %p62 = scmp.eq.s32.totalorder %s61, 0
    %s64 = sadd.s32 %s63, 1
    %s65 = scalar_select %p62, %s63, %s64
    %p68 = pneg %p62
    %p69 = scmp.eq.s32.totalorder %s9, 1
    %p70 = por %p68, %p69
    %p71 = scmp.ne.s32.totalorder %s63, %s66
    %p72 = scmp.eq.s32.totalorder %s9, 0
    %p73 = por %p71, %p72
    %p74 = scmp.ne.s32.totalorder %s63, %s66
    %p75 = scmp.eq.s32.totalorder %s14, 1
    %p76 = por %p74, %p75
    %p77 = scmp.ne.s32.totalorder %s66, %s67
    %p78 = scmp.eq.s32.totalorder %s14, 0
    %p79 = por %p77, %p78
    %p80 = scmp.ne.s32.totalorder %s66, %s67
    %p81 = scmp.eq.s32.totalorder %s15, 1
    %p82 = por %p80, %p81
    %p84 = scmp.ne.s32.totalorder %s67, %s83
    %p85 = scmp.eq.s32.totalorder %s15, 0
    %p86 = por %p84, %p85
    %s87 = sadd.s32 %s17, 2
    %s88 = sadd.s32 %s24, 2
    %s89 = ssub.s32 %s16, %s28
    %s90 = ssub.s32 %s87, %s88
    %s91 = sor.u32 %s89, %s90
    %p92 = scmp.eq.s32.totalorder %s91, 0
    %s94 = sadd.s32 %s93, 1
    %s95 = scalar_select %p92, %s93, %s94
    %p98 = pneg %p92
    %p99 = scmp.eq.s32.totalorder %s9, 1
    %p100 = por %p98, %p99
    %p101 = scmp.ne.s32.totalorder %s93, %s96
    %p102 = scmp.eq.s32.totalorder %s9, 0
    %p103 = por %p101, %p102
    %p104 = scmp.ne.s32.totalorder %s93, %s96
    %p105 = scmp.eq.s32.totalorder %s14, 1
    %p106 = por %p104, %p105
    %p107 = scmp.ne.s32.totalorder %s96, %s97
    %p108 = scmp.eq.s32.totalorder %s14, 0
    %p109 = por %p107, %p108
    %p110 = scmp.ne.s32.totalorder %s96, %s97
    %p111 = scmp.eq.s32.totalorder %s15, 1
    %p112 = por %p110, %p111
    %p114 = scmp.ne.s32.totalorder %s97, %s113
    %p115 = scmp.eq.s32.totalorder %s15, 0
    %p116 = por %p114, %p115
    %s117 = ssub.s32 %s16, %s28
    %s118 = ssub.s32 %s17, %s24
    %s119 = sor.u32 %s117, %s118
    %p120 = scmp.eq.s32.totalorder %s119, 0
    %s122 = sadd.s32 %s121, 1
    %s123 = scalar_select %p120, %s121, %s122
    %p126 = pneg %p120
    %p127 = scmp.eq.s32.totalorder %s9, 1
    %p128 = por %p126, %p127
    %p129 = scmp.ne.s32.totalorder %s121, %s124
    %p130 = scmp.eq.s32.totalorder %s9, 0
    %p131 = por %p129, %p130
    %p132 = scmp.ne.s32.totalorder %s121, %s124
    %p133 = scmp.eq.s32.totalorder %s14, 1
    %p134 = por %p132, %p133
    %p135 = scmp.ne.s32.totalorder %s124, %s125
    %p136 = scmp.eq.s32.totalorder %s14, 0
    %p137 = por %p135, %p136
    %p138 = scmp.ne.s32.totalorder %s124, %s125
    %p139 = scmp.eq.s32.totalorder %s15, 1
    %p140 = por %p138, %p139
    %p142 = scmp.ne.s32.totalorder %s125, %s141
    %p143 = scmp.eq.s32.totalorder %s15, 0
    %p144 = por %p142, %p143
    %p145 = scmp.le.s32.totalorder 1, %s9
    %p146 = scmp.lt.s32.totalorder %s9, 3
    %p147 = pnand %p145, %p146
    %p148 = pneg %p147
    // Predicated region
    $region9: #{embedding_transformer_forward.14} parent=5 // pred_check
      _
    $region10: #{embedding_transformer_forward.14} parent=5 // pred_check_branch
      %150 = sbr.rel (%p147) target = $region12
    $region11: #{embedding_transformer_forward.14} parent=5 // pred_region
      %s151 = ssub.s32 %s9, 1
    $region12: #{embedding_transformer_forward.14} parent=5 // pred_fallthru
      _
    %p152 = scmp.lt.s32.totalorder %s9, 2
    // Predicated region
    $region13: #{embedding_transformer_forward.14} parent=5 // pred_check
      %p153 = pneg %p152
    $region14: #{embedding_transformer_forward.14} parent=5 // pred_check_branch
      %155 = sbr.rel (%p153) target = $region16
    $region15: #{embedding_transformer_forward.14} parent=5 // pred_region
      // Predicated region
      $region17: #{embedding_transformer_forward.14} parent=15 // pred_check
        %p156 = pneg %p43
      $region18: #{embedding_transformer_forward.14} parent=15 // pred_check_branch
        %158 = sbr.rel (%p156) target = $region20
      $region19: #{embedding_transformer_forward.14} parent=15 // pred_region
        %p159 = scmp.lt.s32.totalorder %s16, 1
        %s160 = scalar_select %p159, %s16, 1
        %p161 = scmp.lt.s32.totalorder %s17, 2
        %s162 = scalar_select %p161, %s17, 2
        %s163 = smul.addr %s160, 3
        %s164 = sadd.s32 %s162, %s163
        %s165 = smul.addr %s164, 4
        %s166 = scalar_lea.vmem %s0, %s165
      $region20: #{embedding_transformer_forward.14} parent=15 // pred_fallthru
        _
      // Predicated region
      $region21: #{embedding_transformer_forward.14} parent=15 // pred_check
        %p167 = pneg %p73
      $region22: #{embedding_transformer_forward.14} parent=15 // pred_check_branch
        %169 = sbr.rel (%p167) target = $region24
      $region23: #{embedding_transformer_forward.14} parent=15 // pred_region
        %s170 = sadd.s32 %s17, 1
        %p171 = scmp.lt.s32.totalorder %s16, 1
        %s172 = scalar_select %p171, %s16, 1
        %p173 = scmp.lt.s32.totalorder %s170, 2
        %s174 = scalar_select %p173, %s170, 2
        %s175 = smul.addr %s172, 3
        %s176 = sadd.s32 %s174, %s175
        %s177 = smul.addr %s176, 4
        %s178 = scalar_lea.vmem %s1, %s177
        %s179 = sadd.s32 %s17, 1
      $region24: #{embedding_transformer_forward.14} parent=15 // pred_fallthru
        _
      // Predicated region
      $region25: #{embedding_transformer_forward.14} parent=15 // pred_check
        %p180 = pneg %p103
      $region26: #{embedding_transformer_forward.14} parent=15 // pred_check_branch
        %182 = sbr.rel (%p180) target = $region28
      $region27: #{embedding_transformer_forward.14} parent=15 // pred_region
        %s183 = sadd.s32 %s17, 2
        %p184 = scmp.lt.s32.totalorder %s16, 1
        %s185 = scalar_select %p184, %s16, 1
        %p186 = scmp.lt.s32.totalorder %s183, 2
        %s187 = scalar_select %p186, %s183, 2
        %s188 = smul.addr %s185, 3
        %s189 = sadd.s32 %s187, %s188
        %s190 = smul.addr %s189, 4
        %s191 = scalar_lea.vmem %s2, %s190
        %s192 = sadd.s32 %s17, 2
      $region28: #{embedding_transformer_forward.14} parent=15 // pred_fallthru
        _
    $region16: #{embedding_transformer_forward.14} parent=5 // pred_fallthru
      _
    %p193 = scmp.le.s32.totalorder 1, %s9
    %p194 = scmp.lt.s32.totalorder %s9, 3
    %p195 = pnand %p193, %p194
    %p196 = pneg %p195
    // Predicated region
    $region29: #{embedding_transformer_forward.14} parent=5 // pred_check
      _
    $region30: #{embedding_transformer_forward.14} parent=5 // pred_check_branch
      %198 = sbr.rel (%p195) target = $region32
    $region31: #{embedding_transformer_forward.14} parent=5 // pred_region
      %s199 = ssub.s32 %s9, 1
      %p200 = scmp.lt.s32.totalorder %s18, 1
      %s201 = scalar_select %p200, %s18, 1
      %p202 = scmp.lt.s32.totalorder %s19, 2
      %s203 = scalar_select %p202, %s19, 2
      %s204 = smul.addr %s201, 3
      %s205 = sadd.s32 %s203, %s204
      %s206 = smul.addr %s205, 4
      %s207 = scalar_lea.vmem %s0, %s206
      %p208 = pneg %p49
      %p209 = pneg %p46
      %s210 = sadd.s32 %s19, 1
      %p211 = scmp.lt.s32.totalorder %s18, 1
      %s212 = scalar_select %p211, %s18, 1
      %p213 = scmp.lt.s32.totalorder %s210, 2
      %s214 = scalar_select %p213, %s210, 2
      %s215 = smul.addr %s212, 3
      %s216 = sadd.s32 %s214, %s215
      %s217 = smul.addr %s216, 4
      %s218 = scalar_lea.vmem %s1, %s217
      %p219 = pneg %p79
      %p220 = pneg %p76
      %s221 = sadd.s32 %s19, 2
      %p222 = scmp.lt.s32.totalorder %s18, 1
      %s223 = scalar_select %p222, %s18, 1
      %p224 = scmp.lt.s32.totalorder %s221, 2
      %s225 = scalar_select %p224, %s221, 2
      %s226 = smul.addr %s223, 3
      %s227 = sadd.s32 %s225, %s226
      %s228 = smul.addr %s227, 4
      %s229 = scalar_lea.vmem %s2, %s228
      %p230 = pneg %p109
      %p231 = pneg %p106
      %p232 = pneg %p137
      %p233 = pneg %p134
      %p234 = scmp.lt.s32.totalorder %s18, 1
      %s235 = scalar_select %p234, %s18, 1
      %p236 = scmp.lt.s32.totalorder %s19, 0
      %s237 = scalar_select %p236, %s19, 0
      %s238 = sadd.s32 %s237, %s235
      %s239 = smul.addr %s238, 4
      %s240 = scalar_lea.vmem %s3, %s239
      %p241 = scmp.lt.s32.totalorder %s18, 1
      %s242 = scalar_select %p241, %s18, 1
      %p243 = scmp.lt.s32.totalorder %s19, 2
      %s244 = scalar_select %p243, %s19, 2
      %s245 = smul.addr %s242, 3
      %s246 = sadd.s32 %s244, %s245
      %s247 = smul.addr %s246, 4
      %s248 = scalar_lea.vmem %s0, %s247
      %s249 = sadd.s32 %s19, 1
      %p250 = scmp.lt.s32.totalorder %s18, 1
      %s251 = scalar_select %p250, %s18, 1
      %p252 = scmp.lt.s32.totalorder %s249, 2
      %s253 = scalar_select %p252, %s249, 2
      %s254 = smul.addr %s251, 3
      %s255 = sadd.s32 %s253, %s254
      %s256 = smul.addr %s255, 4
      %s257 = scalar_lea.vmem %s1, %s256
      %s258 = sadd.s32 %s19, 1
      %s259 = sadd.s32 %s19, 2
      %p260 = scmp.lt.s32.totalorder %s18, 1
      %s261 = scalar_select %p260, %s18, 1
      %p262 = scmp.lt.s32.totalorder %s259, 2
      %s263 = scalar_select %p262, %s259, 2
      %s264 = smul.addr %s261, 3
      %s265 = sadd.s32 %s263, %s264
      %s266 = smul.addr %s265, 4
      %s267 = scalar_lea.vmem %s2, %s266
      %s268 = sadd.s32 %s19, 2
      %p269 = scmp.lt.s32.totalorder %s18, 1
      %s270 = scalar_select %p269, %s18, 1
      %p271 = scmp.lt.s32.totalorder %s19, 0
      %s272 = scalar_select %p271, %s19, 0
      %s273 = sadd.s32 %s272, %s270
      %s274 = smul.addr %s273, 4
      %s275 = scalar_lea.vmem %s3, %s274
      %v277 = vld [vmem:[%s248] sm:$0xf]
      %v278 = vld [vmem:[%s257] sm:$0xf]
      %v279 = vld [vmem:[%s267] sm:$0xf]
      %vm280 = vcmask 130048
      %v282 = vsel %vm280, %v277, 0
      %v285 = vsel %vm280, %v278, 0
      %287 = vmatprep.subr.bf16.mxu0 0
      %288 = vmatpush1.bf16.xpose.msra.mxu0 0
      %289 = vmatprep.subr.bf16.mxu0 0
      %290 = vmatpush1.bf16.xpose.msra.mxu0 0
      %291 = vmatprep.subr.bf16.mxu0 0
      %292 = vmatpush1.bf16.xpose.msra.mxu0 0
      %293 = vmatprep.subr.bf16.mxu0 0
      %294 = vmatpush1.bf16.xpose.msra.mxu0 0
      %295 = vmatprep.subr.bf16.mxu0 0
      %296 = vmatpush1.bf16.xpose.msra.mxu0 0
      %297 = vmatprep.subr.bf16.mxu0 0
      %298 = vmatpush1.bf16.xpose.msra.mxu0 0
      %299 = vmatprep.subr.bf16.mxu0 0
      %300 = vmatpush1.bf16.xpose.msra.mxu0 0
      %301 = vmatprep.subr.bf16.mxu0 0
      %302 = vmatpush1.bf16.xpose.msra.mxu0 %v285
      %303 = vmatprep.subr.bf16.mxu0 0
      %304 = vmatpush2.bf16.xpose.msra.mxu0 0
      %305 = vmatprep.subr.bf16.mxu0 0
      %306 = vmatpush2.bf16.xpose.msra.mxu0 0
      %307 = vmatprep.subr.bf16.mxu0 0
      %308 = vmatpush2.bf16.xpose.msra.mxu0 0
      %309 = vmatprep.subr.bf16.mxu0 0
      %310 = vmatpush2.bf16.xpose.msra.mxu0 0
      %311 = vmatprep.subr.bf16.mxu0 0
      %312 = vmatpush2.bf16.xpose.msra.mxu0 0
      %313 = vmatprep.subr.bf16.mxu0 0
      %314 = vmatpush2.bf16.xpose.msra.mxu0 0
      %315 = vmatprep.subr.bf16.mxu0 0
      %316 = vmatpush2.bf16.xpose.msra.mxu0 0
      %317 = vmatprep.subr.bf16.mxu0 0
      %318 = vmatpush2.bf16.xpose.msra.mxu0 0
      %319 = vmatprep.mubr.bf16.mxu0 0
      %320 = vmatmul.mubr.bf16.gmra.mxu0 %v282
      %v321 = vpop.f32.mrf.mxu0
      %v322 = vadd.f32 0.0, %v321
      %v323 = vpop.f32.mrf.mxu0
      %v324 = vpop.f32.mrf.mxu0
      %v325 = vpop.f32.mrf.mxu0
      %326 = vdwg.mxu0
      %v327 = vmul.f32 %v322, 0.088388346
      %vm328 = vcmask 64512
      %v329 = vsel %vm328, %v327, -inf
      %330 = vmax.xlane.f32.xlu0 %v329
      %v331 = vpop.xlane.xlu0 %330
      %v332 = vsub.f32 %v327, %v331
      %v333 = vmul.f32 %v332, 1.442695
      %v334 = vpow.pop %v333
      %v335 = vsel %vm328, %v334, 0.0
      %336 = vadd.xlane.f32.xlu0 %v335
      %v337 = vpop.xlane.xlu0 %336
      %v338 = vrcp.pop %v337
      %v339 = vmul.f32 %v334, %v338
      %v340 = vpack.c.bf16 %v339, %v339
      %v342 = vsel %vm328, %v340, 0
      %vm344 = vcmask 1043456
      %v346 = vsel %vm344, %v279, 0
      %348 = vmatprep.subr.bf16.mxu0 0
      %349 = vmatpush1.bf16.msra.mxu0 0
      %350 = vmatprep.subr.bf16.mxu0 0
      %351 = vmatpush1.bf16.msra.mxu0 0
      %352 = vmatprep.subr.bf16.mxu0 0
      %353 = vmatpush1.bf16.msra.mxu0 0
      %354 = vmatprep.subr.bf16.mxu0 0
      %355 = vmatpush1.bf16.msra.mxu0 0
      %356 = vmatprep.subr.bf16.mxu0 0
      %357 = vmatpush1.bf16.msra.mxu0 0
      %358 = vmatprep.subr.bf16.mxu0 0
      %359 = vmatpush1.bf16.msra.mxu0 0
      %360 = vmatprep.subr.bf16.mxu0 0
      %361 = vmatpush1.bf16.msra.mxu0 0
      %362 = vmatprep.subr.bf16.mxu0 0
      %363 = vmatpush1.bf16.msra.mxu0 %v346
      %364 = vmatprep.subr.bf16.mxu0 0
      %365 = vmatpush2.bf16.msra.mxu0 0
      %366 = vmatprep.subr.bf16.mxu0 0
      %367 = vmatpush2.bf16.msra.mxu0 0
      %368 = vmatprep.subr.bf16.mxu0 0
      %369 = vmatpush2.bf16.msra.mxu0 0
      %370 = vmatprep.subr.bf16.mxu0 0
      %371 = vmatpush2.bf16.msra.mxu0 0
      %372 = vmatprep.subr.bf16.mxu0 0
      %373 = vmatpush2.bf16.msra.mxu0 0
      %374 = vmatprep.subr.bf16.mxu0 0
      %375 = vmatpush2.bf16.msra.mxu0 0
      %376 = vmatprep.subr.bf16.mxu0 0
      %377 = vmatpush2.bf16.msra.mxu0 0
      %378 = vmatprep.subr.bf16.mxu0 0
      %379 = vmatpush2.bf16.msra.mxu0 0
      %380 = vmatprep.mubr.bf16.mxu0 0
      %381 = vmatmul.mubr.bf16.gmra.mxu0 %v342
      %v382 = vpop.f32.mrf.mxu0
      %v383 = vadd.f32 0.0, %v382
      %v384 = vpop.f32.mrf.mxu0
      %v385 = vpop.f32.mrf.mxu0
      %v386 = vpop.f32.mrf.mxu0
      %387 = vdwg.mxu0
      %v388 = vpack.c.bf16 %v383, %v383
      %vm389 = vcmask 125952
      %390 = vst.msk [vmem:[%s275] sm:$0xf] %vm389, %v388
      %v391 = vld [vmem:[%s248] sm:$0xf]
      %v392 = vld [vmem:[%s257] sm:$0xf]
      %v393 = vld [vmem:[%s267] sm:$0xf]
      %v395 = vunpack.c.l.b16 %v391
      %v396 = vpack.c.b16 %v395, %v395
      %397 = vrot.lane.b32.xlu0 %v396, 112
      %v398 = vpop.permute.xlu0 %397
      %v400 = vunpack.c.l.b16 %v392
      %v401 = vpack.c.b16 %v400, %v400
      %402 = vrot.lane.b32.xlu0 %v401, 112
      %v403 = vpop.permute.xlu0 %402
      %v405 = vsel %vm280, %v398, 0
      %v408 = vsel %vm280, %v403, 0
      %410 = vmatprep.subr.bf16.mxu0 0
      %411 = vmatpush1.bf16.xpose.msra.mxu0 0
      %412 = vmatprep.subr.bf16.mxu0 0
      %413 = vmatpush1.bf16.xpose.msra.mxu0 0
      %414 = vmatprep.subr.bf16.mxu0 0
      %415 = vmatpush1.bf16.xpose.msra.mxu0 0
      %416 = vmatprep.subr.bf16.mxu0 0
      %417 = vmatpush1.bf16.xpose.msra.mxu0 0
      %418 = vmatprep.subr.bf16.mxu0 0
      %419 = vmatpush1.bf16.xpose.msra.mxu0 0
      %420 = vmatprep.subr.bf16.mxu0 0
      %421 = vmatpush1.bf16.xpose.msra.mxu0 0
      %422 = vmatprep.subr.bf16.mxu0 0
      %423 = vmatpush1.bf16.xpose.msra.mxu0 0
      %424 = vmatprep.subr.bf16.mxu0 0
      %425 = vmatpush1.bf16.xpose.msra.mxu0 %v408
      %426 = vmatprep.subr.bf16.mxu0 0
      %427 = vmatpush2.bf16.xpose.msra.mxu0 0
      %428 = vmatprep.subr.bf16.mxu0 0
      %429 = vmatpush2.bf16.xpose.msra.mxu0 0
      %430 = vmatprep.subr.bf16.mxu0 0
      %431 = vmatpush2.bf16.xpose.msra.mxu0 0
      %432 = vmatprep.subr.bf16.mxu0 0
      %433 = vmatpush2.bf16.xpose.msra.mxu0 0
      %434 = vmatprep.subr.bf16.mxu0 0
      %435 = vmatpush2.bf16.xpose.msra.mxu0 0
      %436 = vmatprep.subr.bf16.mxu0 0
      %437 = vmatpush2.bf16.xpose.msra.mxu0 0
      %438 = vmatprep.subr.bf16.mxu0 0
      %439 = vmatpush2.bf16.xpose.msra.mxu0 0
      %440 = vmatprep.subr.bf16.mxu0 0
      %441 = vmatpush2.bf16.xpose.msra.mxu0 0
      %442 = vmatprep.mubr.bf16.mxu0 0
      %443 = vmatmul.mubr.bf16.gmra.mxu0 %v405
      %v444 = vpop.f32.mrf.mxu0
      %v445 = vadd.f32 0.0, %v444
      %v446 = vpop.f32.mrf.mxu0
      %v447 = vpop.f32.mrf.mxu0
      %v448 = vpop.f32.mrf.mxu0
      %449 = vdwg.mxu0
      %v450 = vmul.f32 %v445, 0.088388346
      %v451 = vsel %vm328, %v450, -inf
      %452 = vmax.xlane.f32.xlu0 %v451
      %v453 = vpop.xlane.xlu0 %452
      %v454 = vsub.f32 %v450, %v453
      %v455 = vmul.f32 %v454, 1.442695
      %v456 = vpow.pop %v455
      %v457 = vsel %vm328, %v456, 0.0
      %458 = vadd.xlane.f32.xlu0 %v457
      %v459 = vpop.xlane.xlu0 %458
      %v460 = vrcp.pop %v459
      %v461 = vmul.f32 %v456, %v460
      %v462 = vpack.c.bf16 %v461, %v461
      %v464 = vunpack.c.l.b16 %v393
      %v465 = vpack.c.b16 %v464, %v464
      %466 = vrot.lane.b32.xlu0 %v465, 112
      %v467 = vpop.permute.xlu0 %466
      %v469 = vsel %vm328, %v462, 0
      %v472 = vsel %vm344, %v467, 0
      %474 = vmatprep.subr.bf16.mxu0 0
      %475 = vmatpush1.bf16.msra.mxu0 0
      %476 = vmatprep.subr.bf16.mxu0 0
      %477 = vmatpush1.bf16.msra.mxu0 0
      %478 = vmatprep.subr.bf16.mxu0 0
      %479 = vmatpush1.bf16.msra.mxu0 0
      %480 = vmatprep.subr.bf16.mxu0 0
      %481 = vmatpush1.bf16.msra.mxu0 0
      %482 = vmatprep.subr.bf16.mxu0 0
      %483 = vmatpush1.bf16.msra.mxu0 0
      %484 = vmatprep.subr.bf16.mxu0 0
      %485 = vmatpush1.bf16.msra.mxu0 0
      %486 = vmatprep.subr.bf16.mxu0 0
      %487 = vmatpush1.bf16.msra.mxu0 0
      %488 = vmatprep.subr.bf16.mxu0 0
      %489 = vmatpush1.bf16.msra.mxu0 %v472
      %490 = vmatprep.subr.bf16.mxu0 0
      %491 = vmatpush2.bf16.msra.mxu0 0
      %492 = vmatprep.subr.bf16.mxu0 0
      %493 = vmatpush2.bf16.msra.mxu0 0
      %494 = vmatprep.subr.bf16.mxu0 0
      %495 = vmatpush2.bf16.msra.mxu0 0
      %496 = vmatprep.subr.bf16.mxu0 0
      %497 = vmatpush2.bf16.msra.mxu0 0
      %498 = vmatprep.subr.bf16.mxu0 0
      %499 = vmatpush2.bf16.msra.mxu0 0
      %500 = vmatprep.subr.bf16.mxu0 0
      %501 = vmatpush2.bf16.msra.mxu0 0
      %502 = vmatprep.subr.bf16.mxu0 0
      %503 = vmatpush2.bf16.msra.mxu0 0
      %504 = vmatprep.subr.bf16.mxu0 0
      %505 = vmatpush2.bf16.msra.mxu0 0
      %506 = vmatprep.mubr.bf16.mxu0 0
      %507 = vmatmul.mubr.bf16.gmra.mxu0 %v469
      %v508 = vpop.f32.mrf.mxu0
      %v509 = vadd.f32 0.0, %v508
      %v510 = vpop.f32.mrf.mxu0
      %v511 = vpop.f32.mrf.mxu0
      %v512 = vpop.f32.mrf.mxu0
      %513 = vdwg.mxu0
      %v514 = vpack.c.bf16 %v509, %v509
      %v516 = vunpack.c.l.b16 %v514
      %v517 = vpack.c.b16 %v516, %v516
      %518 = vrot.lane.b32.xlu0 %v517, 16
      %v519 = vpop.permute.xlu0 %518
      %vm521 = vcmask 257152
      %522 = vst.msk [vmem:[%s275] sm:$0xf] %vm521, %v519
      %v523 = vld [vmem:[%s248] sm:$0xf]
      %v524 = vld [vmem:[%s257] sm:$0xf]
      %v525 = vld [vmem:[%s267] sm:$0xf]
      %v527 = vunpack.c.l.b16 %v523
      %v528 = vpack.c.b16 %v527, %v527
      %529 = vrot.lane.b32.xlu0 %v528, 96
      %v530 = vpop.permute.xlu0 %529
      %v532 = vunpack.c.l.b16 %v524
      %v533 = vpack.c.b16 %v532, %v532
      %534 = vrot.lane.b32.xlu0 %v533, 96
      %v535 = vpop.permute.xlu0 %534
      %v537 = vsel %vm280, %v530, 0
      %v540 = vsel %vm280, %v535, 0
      %542 = vmatprep.subr.bf16.mxu0 0
      %543 = vmatpush1.bf16.xpose.msra.mxu0 0
      %544 = vmatprep.subr.bf16.mxu0 0
      %545 = vmatpush1.bf16.xpose.msra.mxu0 0
      %546 = vmatprep.subr.bf16.mxu0 0
      %547 = vmatpush1.bf16.xpose.msra.mxu0 0
      %548 = vmatprep.subr.bf16.mxu0 0
      %549 = vmatpush1.bf16.xpose.msra.mxu0 0
      %550 = vmatprep.subr.bf16.mxu0 0
      %551 = vmatpush1.bf16.xpose.msra.mxu0 0
      %552 = vmatprep.subr.bf16.mxu0 0
      %553 = vmatpush1.bf16.xpose.msra.mxu0 0
      %554 = vmatprep.subr.bf16.mxu0 0
      %555 = vmatpush1.bf16.xpose.msra.mxu0 0
      %556 = vmatprep.subr.bf16.mxu0 0
      %557 = vmatpush1.bf16.xpose.msra.mxu0 %v540
      %558 = vmatprep.subr.bf16.mxu0 0
      %559 = vmatpush2.bf16.xpose.msra.mxu0 0
      %560 = vmatprep.subr.bf16.mxu0 0
      %561 = vmatpush2.bf16.xpose.msra.mxu0 0
      %562 = vmatprep.subr.bf16.mxu0 0
      %563 = vmatpush2.bf16.xpose.msra.mxu0 0
      %564 = vmatprep.subr.bf16.mxu0 0
      %565 = vmatpush2.bf16.xpose.msra.mxu0 0
      %566 = vmatprep.subr.bf16.mxu0 0
      %567 = vmatpush2.bf16.xpose.msra.mxu0 0
      %568 = vmatprep.subr.bf16.mxu0 0
      %569 = vmatpush2.bf16.xpose.msra.mxu0 0
      %570 = vmatprep.subr.bf16.mxu0 0
      %571 = vmatpush2.bf16.xpose.msra.mxu0 0
      %572 = vmatprep.subr.bf16.mxu0 0
      %573 = vmatpush2.bf16.xpose.msra.mxu0 0
      %574 = vmatprep.mubr.bf16.mxu0 0
      %575 = vmatmul.mubr.bf16.gmra.mxu0 %v537
      %v576 = vpop.f32.mrf.mxu0
      %v577 = vadd.f32 0.0, %v576
      %v578 = vpop.f32.mrf.mxu0
      %v579 = vpop.f32.mrf.mxu0
      %v580 = vpop.f32.mrf.mxu0
      %581 = vdwg.mxu0
      %v582 = vmul.f32 %v577, 0.088388346
      %v583 = vsel %vm328, %v582, -inf
      %584 = vmax.xlane.f32.xlu0 %v583
      %v585 = vpop.xlane.xlu0 %584
      %v586 = vsub.f32 %v582, %v585
      %v587 = vmul.f32 %v586, 1.442695
      %v588 = vpow.pop %v587
      %v589 = vsel %vm328, %v588, 0.0
      %590 = vadd.xlane.f32.xlu0 %v589
      %v591 = vpop.xlane.xlu0 %590
      %v592 = vrcp.pop %v591
      %v593 = vmul.f32 %v588, %v592
      %v594 = vpack.c.bf16 %v593, %v593
      %v596 = vunpack.c.l.b16 %v525
      %v597 = vpack.c.b16 %v596, %v596
      %598 = vrot.lane.b32.xlu0 %v597, 96
      %v599 = vpop.permute.xlu0 %598
      %v601 = vsel %vm328, %v594, 0
      %v604 = vsel %vm344, %v599, 0
      %606 = vmatprep.subr.bf16.mxu0 0
      %607 = vmatpush1.bf16.msra.mxu0 0
      %608 = vmatprep.subr.bf16.mxu0 0
      %609 = vmatpush1.bf16.msra.mxu0 0
      %610 = vmatprep.subr.bf16.mxu0 0
      %611 = vmatpush1.bf16.msra.mxu0 0
      %612 = vmatprep.subr.bf16.mxu0 0
      %613 = vmatpush1.bf16.msra.mxu0 0
      %614 = vmatprep.subr.bf16.mxu0 0
      %615 = vmatpush1.bf16.msra.mxu0 0
      %616 = vmatprep.subr.bf16.mxu0 0
      %617 = vmatpush1.bf16.msra.mxu0 0
      %618 = vmatprep.subr.bf16.mxu0 0
      %619 = vmatpush1.bf16.msra.mxu0 0
      %620 = vmatprep.subr.bf16.mxu0 0
      %621 = vmatpush1.bf16.msra.mxu0 %v604
      %622 = vmatprep.subr.bf16.mxu0 0
      %623 = vmatpush2.bf16.msra.mxu0 0
      %624 = vmatprep.subr.bf16.mxu0 0
      %625 = vmatpush2.bf16.msra.mxu0 0
      %626 = vmatprep.subr.bf16.mxu0 0
      %627 = vmatpush2.bf16.msra.mxu0 0
      %628 = vmatprep.subr.bf16.mxu0 0
      %629 = vmatpush2.bf16.msra.mxu0 0
      %630 = vmatprep.subr.bf16.mxu0 0
      %631 = vmatpush2.bf16.msra.mxu0 0
      %632 = vmatprep.subr.bf16.mxu0 0
      %633 = vmatpush2.bf16.msra.mxu0 0
      %634 = vmatprep.subr.bf16.mxu0 0
      %635 = vmatpush2.bf16.msra.mxu0 0
      %636 = vmatprep.subr.bf16.mxu0 0
      %637 = vmatpush2.bf16.msra.mxu0 0
      %638 = vmatprep.mubr.bf16.mxu0 0
      %639 = vmatmul.mubr.bf16.gmra.mxu0 %v601
      %v640 = vpop.f32.mrf.mxu0
      %v641 = vadd.f32 0.0, %v640
      %v642 = vpop.f32.mrf.mxu0
      %v643 = vpop.f32.mrf.mxu0
      %v644 = vpop.f32.mrf.mxu0
      %645 = vdwg.mxu0
      %v646 = vpack.c.bf16 %v641, %v641
      %v648 = vunpack.c.l.b16 %v646
      %v649 = vpack.c.b16 %v648, %v648
      %650 = vrot.lane.b32.xlu0 %v649, 32
      %v651 = vpop.permute.xlu0 %650
      %vm653 = vcmask 388352
      %654 = vst.msk [vmem:[%s275] sm:$0xf] %vm653, %v651
      %v655 = vld [vmem:[%s248] sm:$0xf]
      %v656 = vld [vmem:[%s257] sm:$0xf]
      %v657 = vld [vmem:[%s267] sm:$0xf]
      %v659 = vunpack.c.l.b16 %v655
      %v660 = vpack.c.b16 %v659, %v659
      %661 = vrot.lane.b32.xlu0 %v660, 80
      %v662 = vpop.permute.xlu0 %661
      %v664 = vunpack.c.l.b16 %v656
      %v665 = vpack.c.b16 %v664, %v664
      %666 = vrot.lane.b32.xlu0 %v665, 80
      %v667 = vpop.permute.xlu0 %666
      %v669 = vsel %vm280, %v662, 0
      %v672 = vsel %vm280, %v667, 0
      %674 = vmatprep.subr.bf16.mxu0 0
      %675 = vmatpush1.bf16.xpose.msra.mxu0 0
      %676 = vmatprep.subr.bf16.mxu0 0
      %677 = vmatpush1.bf16.xpose.msra.mxu0 0
      %678 = vmatprep.subr.bf16.mxu0 0
      %679 = vmatpush1.bf16.xpose.msra.mxu0 0
      %680 = vmatprep.subr.bf16.mxu0 0
      %681 = vmatpush1.bf16.xpose.msra.mxu0 0
      %682 = vmatprep.subr.bf16.mxu0 0
      %683 = vmatpush1.bf16.xpose.msra.mxu0 0
      %684 = vmatprep.subr.bf16.mxu0 0
      %685 = vmatpush1.bf16.xpose.msra.mxu0 0
      %686 = vmatprep.subr.bf16.mxu0 0
      %687 = vmatpush1.bf16.xpose.msra.mxu0 0
      %688 = vmatprep.subr.bf16.mxu0 0
      %689 = vmatpush1.bf16.xpose.msra.mxu0 %v672
      %690 = vmatprep.subr.bf16.mxu0 0
      %691 = vmatpush2.bf16.xpose.msra.mxu0 0
      %692 = vmatprep.subr.bf16.mxu0 0
      %693 = vmatpush2.bf16.xpose.msra.mxu0 0
      %694 = vmatprep.subr.bf16.mxu0 0
      %695 = vmatpush2.bf16.xpose.msra.mxu0 0
      %696 = vmatprep.subr.bf16.mxu0 0
      %697 = vmatpush2.bf16.xpose.msra.mxu0 0
      %698 = vmatprep.subr.bf16.mxu0 0
      %699 = vmatpush2.bf16.xpose.msra.mxu0 0
      %700 = vmatprep.subr.bf16.mxu0 0
      %701 = vmatpush2.bf16.xpose.msra.mxu0 0
      %702 = vmatprep.subr.bf16.mxu0 0
      %703 = vmatpush2.bf16.xpose.msra.mxu0 0
      %704 = vmatprep.subr.bf16.mxu0 0
      %705 = vmatpush2.bf16.xpose.msra.mxu0 0
      %706 = vmatprep.mubr.bf16.mxu0 0
      %707 = vmatmul.mubr.bf16.gmra.mxu0 %v669
      %v708 = vpop.f32.mrf.mxu0
      %v709 = vadd.f32 0.0, %v708
      %v710 = vpop.f32.mrf.mxu0
      %v711 = vpop.f32.mrf.mxu0
      %v712 = vpop.f32.mrf.mxu0
      %713 = vdwg.mxu0
      %v714 = vmul.f32 %v709, 0.088388346
      %v715 = vsel %vm328, %v714, -inf
      %716 = vmax.xlane.f32.xlu0 %v715
      %v717 = vpop.xlane.xlu0 %716
      %v718 = vsub.f32 %v714, %v717
      %v719 = vmul.f32 %v718, 1.442695
      %v720 = vpow.pop %v719
      %v721 = vsel %vm328, %v720, 0.0
      %722 = vadd.xlane.f32.xlu0 %v721
      %v723 = vpop.xlane.xlu0 %722
      %v724 = vrcp.pop %v723
      %v725 = vmul.f32 %v720, %v724
      %v726 = vpack.c.bf16 %v725, %v725
      %v728 = vunpack.c.l.b16 %v657
      %v729 = vpack.c.b16 %v728, %v728
      %730 = vrot.lane.b32.xlu0 %v729, 80
      %v731 = vpop.permute.xlu0 %730
      %v733 = vsel %vm328, %v726, 0
      %v736 = vsel %vm344, %v731, 0
      %738 = vmatprep.subr.bf16.mxu0 0
      %739 = vmatpush1.bf16.msra.mxu0 0
      %740 = vmatprep.subr.bf16.mxu0 0
      %741 = vmatpush1.bf16.msra.mxu0 0
      %742 = vmatprep.subr.bf16.mxu0 0
      %743 = vmatpush1.bf16.msra.mxu0 0
      %744 = vmatprep.subr.bf16.mxu0 0
      %745 = vmatpush1.bf16.msra.mxu0 0
      %746 = vmatprep.subr.bf16.mxu0 0
      %747 = vmatpush1.bf16.msra.mxu0 0
      %748 = vmatprep.subr.bf16.mxu0 0
      %749 = vmatpush1.bf16.msra.mxu0 0
      %750 = vmatprep.subr.bf16.mxu0 0
      %751 = vmatpush1.bf16.msra.mxu0 0
      %752 = vmatprep.subr.bf16.mxu0 0
      %753 = vmatpush1.bf16.msra.mxu0 %v736
      %754 = vmatprep.subr.bf16.mxu0 0
      %755 = vmatpush2.bf16.msra.mxu0 0
      %756 = vmatprep.subr.bf16.mxu0 0
      %757 = vmatpush2.bf16.msra.mxu0 0
      %758 = vmatprep.subr.bf16.mxu0 0
      %759 = vmatpush2.bf16.msra.mxu0 0
      %760 = vmatprep.subr.bf16.mxu0 0
      %761 = vmatpush2.bf16.msra.mxu0 0
      %762 = vmatprep.subr.bf16.mxu0 0
      %763 = vmatpush2.bf16.msra.mxu0 0
      %764 = vmatprep.subr.bf16.mxu0 0
      %765 = vmatpush2.bf16.msra.mxu0 0
      %766 = vmatprep.subr.bf16.mxu0 0
      %767 = vmatpush2.bf16.msra.mxu0 0
      %768 = vmatprep.subr.bf16.mxu0 0
      %769 = vmatpush2.bf16.msra.mxu0 0
      %770 = vmatprep.mubr.bf16.mxu0 0
      %771 = vmatmul.mubr.bf16.gmra.mxu0 %v733
      %v772 = vpop.f32.mrf.mxu0
      %v773 = vadd.f32 0.0, %v772
      %v774 = vpop.f32.mrf.mxu0
      %v775 = vpop.f32.mrf.mxu0
      %v776 = vpop.f32.mrf.mxu0
      %777 = vdwg.mxu0
      %v778 = vpack.c.bf16 %v773, %v773
      %v780 = vunpack.c.l.b16 %v778
      %v781 = vpack.c.b16 %v780, %v780
      %782 = vrot.lane.b32.xlu0 %v781, 48
      %v783 = vpop.permute.xlu0 %782
      %vm785 = vcmask 519552
      %786 = vst.msk [vmem:[%s275] sm:$0xf] %vm785, %v783
      %v787 = vld [vmem:[%s248] sm:$0xf]
      %v788 = vld [vmem:[%s257] sm:$0xf]
      %v789 = vld [vmem:[%s267] sm:$0xf]
      %v791 = vunpack.c.l.b16 %v787
      %v792 = vpack.c.b16 %v791, %v791
      %793 = vrot.lane.b32.xlu0 %v792, 64
      %v794 = vpop.permute.xlu0 %793
      %v796 = vunpack.c.l.b16 %v788
      %v797 = vpack.c.b16 %v796, %v796
      %798 = vrot.lane.b32.xlu0 %v797, 64
      %v799 = vpop.permute.xlu0 %798
      %v801 = vsel %vm280, %v794, 0
      %v804 = vsel %vm280, %v799, 0
      %806 = vmatprep.subr.bf16.mxu0 0
      %807 = vmatpush1.bf16.xpose.msra.mxu0 0
      %808 = vmatprep.subr.bf16.mxu0 0
      %809 = vmatpush1.bf16.xpose.msra.mxu0 0
      %810 = vmatprep.subr.bf16.mxu0 0
      %811 = vmatpush1.bf16.xpose.msra.mxu0 0
      %812 = vmatprep.subr.bf16.mxu0 0
      %813 = vmatpush1.bf16.xpose.msra.mxu0 0
      %814 = vmatprep.subr.bf16.mxu0 0
      %815 = vmatpush1.bf16.xpose.msra.mxu0 0
      %816 = vmatprep.subr.bf16.mxu0 0
      %817 = vmatpush1.bf16.xpose.msra.mxu0 0
      %818 = vmatprep.subr.bf16.mxu0 0
      %819 = vmatpush1.bf16.xpose.msra.mxu0 0
      %820 = vmatprep.subr.bf16.mxu0 0
      %821 = vmatpush1.bf16.xpose.msra.mxu0 %v804
      %822 = vmatprep.subr.bf16.mxu0 0
      %823 = vmatpush2.bf16.xpose.msra.mxu0 0
      %824 = vmatprep.subr.bf16.mxu0 0
      %825 = vmatpush2.bf16.xpose.msra.mxu0 0
      %826 = vmatprep.subr.bf16.mxu0 0
      %827 = vmatpush2.bf16.xpose.msra.mxu0 0
      %828 = vmatprep.subr.bf16.mxu0 0
      %829 = vmatpush2.bf16.xpose.msra.mxu0 0
      %830 = vmatprep.subr.bf16.mxu0 0
      %831 = vmatpush2.bf16.xpose.msra.mxu0 0
      %832 = vmatprep.subr.bf16.mxu0 0
      %833 = vmatpush2.bf16.xpose.msra.mxu0 0
      %834 = vmatprep.subr.bf16.mxu0 0
      %835 = vmatpush2.bf16.xpose.msra.mxu0 0
      %836 = vmatprep.subr.bf16.mxu0 0
      %837 = vmatpush2.bf16.xpose.msra.mxu0 0
      %838 = vmatprep.mubr.bf16.mxu0 0
      %839 = vmatmul.mubr.bf16.gmra.mxu0 %v801
      %v840 = vpop.f32.mrf.mxu0
      %v841 = vadd.f32 0.0, %v840
      %v842 = vpop.f32.mrf.mxu0
      %v843 = vpop.f32.mrf.mxu0
      %v844 = vpop.f32.mrf.mxu0
      %845 = vdwg.mxu0
      %v846 = vmul.f32 %v841, 0.088388346
      %v847 = vsel %vm328, %v846, -inf
      %848 = vmax.xlane.f32.xlu0 %v847
      %v849 = vpop.xlane.xlu0 %848
      %v850 = vsub.f32 %v846, %v849
      %v851 = vmul.f32 %v850, 1.442695
      %v852 = vpow.pop %v851
      %v853 = vsel %vm328, %v852, 0.0
      %854 = vadd.xlane.f32.xlu0 %v853
      %v855 = vpop.xlane.xlu0 %854
      %v856 = vrcp.pop %v855
      %v857 = vmul.f32 %v852, %v856
      %v858 = vpack.c.bf16 %v857, %v857
      %v860 = vunpack.c.l.b16 %v789
      %v861 = vpack.c.b16 %v860, %v860
      %862 = vrot.lane.b32.xlu0 %v861, 64
      %v863 = vpop.permute.xlu0 %862
      %v865 = vsel %vm328, %v858, 0
      %v868 = vsel %vm344, %v863, 0
      %870 = vmatprep.subr.bf16.mxu0 0
      %871 = vmatpush1.bf16.msra.mxu0 0
      %872 = vmatprep.subr.bf16.mxu0 0
      %873 = vmatpush1.bf16.msra.mxu0 0
      %874 = vmatprep.subr.bf16.mxu0 0
      %875 = vmatpush1.bf16.msra.mxu0 0
      %876 = vmatprep.subr.bf16.mxu0 0
      %877 = vmatpush1.bf16.msra.mxu0 0
      %878 = vmatprep.subr.bf16.mxu0 0
      %879 = vmatpush1.bf16.msra.mxu0 0
      %880 = vmatprep.subr.bf16.mxu0 0
      %881 = vmatpush1.bf16.msra.mxu0 0
      %882 = vmatprep.subr.bf16.mxu0 0
      %883 = vmatpush1.bf16.msra.mxu0 0
      %884 = vmatprep.subr.bf16.mxu0 0
      %885 = vmatpush1.bf16.msra.mxu0 %v868
      %886 = vmatprep.subr.bf16.mxu0 0
      %887 = vmatpush2.bf16.msra.mxu0 0
      %888 = vmatprep.subr.bf16.mxu0 0
      %889 = vmatpush2.bf16.msra.mxu0 0
      %890 = vmatprep.subr.bf16.mxu0 0
      %891 = vmatpush2.bf16.msra.mxu0 0
      %892 = vmatprep.subr.bf16.mxu0 0
      %893 = vmatpush2.bf16.msra.mxu0 0
      %894 = vmatprep.subr.bf16.mxu0 0
      %895 = vmatpush2.bf16.msra.mxu0 0
      %896 = vmatprep.subr.bf16.mxu0 0
      %897 = vmatpush2.bf16.msra.mxu0 0
      %898 = vmatprep.subr.bf16.mxu0 0
      %899 = vmatpush2.bf16.msra.mxu0 0
      %900 = vmatprep.subr.bf16.mxu0 0
      %901 = vmatpush2.bf16.msra.mxu0 0
      %902 = vmatprep.mubr.bf16.mxu0 0
      %903 = vmatmul.mubr.bf16.gmra.mxu0 %v865
      %v904 = vpop.f32.mrf.mxu0
      %v905 = vadd.f32 0.0, %v904
      %v906 = vpop.f32.mrf.mxu0
      %v907 = vpop.f32.mrf.mxu0
      %v908 = vpop.f32.mrf.mxu0
      %909 = vdwg.mxu0
      %v910 = vpack.c.bf16 %v905, %v905
      %v912 = vunpack.c.l.b16 %v910
      %v913 = vpack.c.b16 %v912, %v912
      %914 = vrot.lane.b32.xlu0 %v913, 64
      %v915 = vpop.permute.xlu0 %914
      %vm917 = vcmask 650752
      %918 = vst.msk [vmem:[%s275] sm:$0xf] %vm917, %v915
      %v919 = vld [vmem:[%s248] sm:$0xf]
      %v920 = vld [vmem:[%s257] sm:$0xf]
      %v921 = vld [vmem:[%s267] sm:$0xf]
      %v923 = vunpack.c.l.b16 %v919
      %v924 = vpack.c.b16 %v923, %v923
      %925 = vrot.lane.b32.xlu0 %v924, 48
      %v926 = vpop.permute.xlu0 %925
      %v928 = vunpack.c.l.b16 %v920
      %v929 = vpack.c.b16 %v928, %v928
      %930 = vrot.lane.b32.xlu0 %v929, 48
      %v931 = vpop.permute.xlu0 %930
      %v933 = vsel %vm280, %v926, 0
      %v936 = vsel %vm280, %v931, 0
      %938 = vmatprep.subr.bf16.mxu0 0
      %939 = vmatpush1.bf16.xpose.msra.mxu0 0
      %940 = vmatprep.subr.bf16.mxu0 0
      %941 = vmatpush1.bf16.xpose.msra.mxu0 0
      %942 = vmatprep.subr.bf16.mxu0 0
      %943 = vmatpush1.bf16.xpose.msra.mxu0 0
      %944 = vmatprep.subr.bf16.mxu0 0
      %945 = vmatpush1.bf16.xpose.msra.mxu0 0
      %946 = vmatprep.subr.bf16.mxu0 0
      %947 = vmatpush1.bf16.xpose.msra.mxu0 0
      %948 = vmatprep.subr.bf16.mxu0 0
      %949 = vmatpush1.bf16.xpose.msra.mxu0 0
      %950 = vmatprep.subr.bf16.mxu0 0
      %951 = vmatpush1.bf16.xpose.msra.mxu0 0
      %952 = vmatprep.subr.bf16.mxu0 0
      %953 = vmatpush1.bf16.xpose.msra.mxu0 %v936
      %954 = vmatprep.subr.bf16.mxu0 0
      %955 = vmatpush2.bf16.xpose.msra.mxu0 0
      %956 = vmatprep.subr.bf16.mxu0 0
      %957 = vmatpush2.bf16.xpose.msra.mxu0 0
      %958 = vmatprep.subr.bf16.mxu0 0
      %959 = vmatpush2.bf16.xpose.msra.mxu0 0
      %960 = vmatprep.subr.bf16.mxu0 0
      %961 = vmatpush2.bf16.xpose.msra.mxu0 0
      %962 = vmatprep.subr.bf16.mxu0 0
      %963 = vmatpush2.bf16.xpose.msra.mxu0 0
      %964 = vmatprep.subr.bf16.mxu0 0
      %965 = vmatpush2.bf16.xpose.msra.mxu0 0
      %966 = vmatprep.subr.bf16.mxu0 0
      %967 = vmatpush2.bf16.xpose.msra.mxu0 0
      %968 = vmatprep.subr.bf16.mxu0 0
      %969 = vmatpush2.bf16.xpose.msra.mxu0 0
      %970 = vmatprep.mubr.bf16.mxu0 0
      %971 = vmatmul.mubr.bf16.gmra.mxu0 %v933
      %v972 = vpop.f32.mrf.mxu0
      %v973 = vadd.f32 0.0, %v972
      %v974 = vpop.f32.mrf.mxu0
      %v975 = vpop.f32.mrf.mxu0
      %v976 = vpop.f32.mrf.mxu0
      %977 = vdwg.mxu0
      %v978 = vmul.f32 %v973, 0.088388346
      %v979 = vsel %vm328, %v978, -inf
      %980 = vmax.xlane.f32.xlu0 %v979
      %v981 = vpop.xlane.xlu0 %980
      %v982 = vsub.f32 %v978, %v981
      %v983 = vmul.f32 %v982, 1.442695
      %v984 = vpow.pop %v983
      %v985 = vsel %vm328, %v984, 0.0
      %986 = vadd.xlane.f32.xlu0 %v985
      %v987 = vpop.xlane.xlu0 %986
      %v988 = vrcp.pop %v987
      %v989 = vmul.f32 %v984, %v988
      %v990 = vpack.c.bf16 %v989, %v989
      %v992 = vunpack.c.l.b16 %v921
      %v993 = vpack.c.b16 %v992, %v992
      %994 = vrot.lane.b32.xlu0 %v993, 48
      %v995 = vpop.permute.xlu0 %994
      %v997 = vsel %vm328, %v990, 0
      %v1000 = vsel %vm344, %v995, 0
      %1002 = vmatprep.subr.bf16.mxu0 0
      %1003 = vmatpush1.bf16.msra.mxu0 0
      %1004 = vmatprep.subr.bf16.mxu0 0
      %1005 = vmatpush1.bf16.msra.mxu0 0
      %1006 = vmatprep.subr.bf16.mxu0 0
      %1007 = vmatpush1.bf16.msra.mxu0 0
      %1008 = vmatprep.subr.bf16.mxu0 0
      %1009 = vmatpush1.bf16.msra.mxu0 0
      %1010 = vmatprep.subr.bf16.mxu0 0
      %1011 = vmatpush1.bf16.msra.mxu0 0
      %1012 = vmatprep.subr.bf16.mxu0 0
      %1013 = vmatpush1.bf16.msra.mxu0 0
      %1014 = vmatprep.subr.bf16.mxu0 0
      %1015 = vmatpush1.bf16.msra.mxu0 0
      %1016 = vmatprep.subr.bf16.mxu0 0
      %1017 = vmatpush1.bf16.msra.mxu0 %v1000
      %1018 = vmatprep.subr.bf16.mxu0 0
      %1019 = vmatpush2.bf16.msra.mxu0 0
      %1020 = vmatprep.subr.bf16.mxu0 0
      %1021 = vmatpush2.bf16.msra.mxu0 0
      %1022 = vmatprep.subr.bf16.mxu0 0
      %1023 = vmatpush2.bf16.msra.mxu0 0
      %1024 = vmatprep.subr.bf16.mxu0 0
      %1025 = vmatpush2.bf16.msra.mxu0 0
      %1026 = vmatprep.subr.bf16.mxu0 0
      %1027 = vmatpush2.bf16.msra.mxu0 0
      %1028 = vmatprep.subr.bf16.mxu0 0
      %1029 = vmatpush2.bf16.msra.mxu0 0
      %1030 = vmatprep.subr.bf16.mxu0 0
      %1031 = vmatpush2.bf16.msra.mxu0 0
      %1032 = vmatprep.subr.bf16.mxu0 0
      %1033 = vmatpush2.bf16.msra.mxu0 0
      %1034 = vmatprep.mubr.bf16.mxu0 0
      %1035 = vmatmul.mubr.bf16.gmra.mxu0 %v997
      %v1036 = vpop.f32.mrf.mxu0
      %v1037 = vadd.f32 0.0, %v1036
      %v1038 = vpop.f32.mrf.mxu0
      %v1039 = vpop.f32.mrf.mxu0
      %v1040 = vpop.f32.mrf.mxu0
      %1041 = vdwg.mxu0
      %v1042 = vpack.c.bf16 %v1037, %v1037
      %v1044 = vunpack.c.l.b16 %v1042
      %v1045 = vpack.c.b16 %v1044, %v1044
      %1046 = vrot.lane.b32.xlu0 %v1045, 80
      %v1047 = vpop.permute.xlu0 %1046
      %vm1049 = vcmask 781952
      %1050 = vst.msk [vmem:[%s275] sm:$0xf] %vm1049, %v1047
      %v1051 = vld [vmem:[%s248] sm:$0xf]
      %v1052 = vld [vmem:[%s257] sm:$0xf]
      %v1053 = vld [vmem:[%s267] sm:$0xf]
      %v1055 = vunpack.c.l.b16 %v1051
      %v1056 = vpack.c.b16 %v1055, %v1055
      %1057 = vrot.lane.b32.xlu0 %v1056, 32
      %v1058 = vpop.permute.xlu0 %1057
      %v1060 = vunpack.c.l.b16 %v1052
      %v1061 = vpack.c.b16 %v1060, %v1060
      %1062 = vrot.lane.b32.xlu0 %v1061, 32
      %v1063 = vpop.permute.xlu0 %1062
      %v1065 = vsel %vm280, %v1058, 0
      %v1068 = vsel %vm280, %v1063, 0
      %1070 = vmatprep.subr.bf16.mxu0 0
      %1071 = vmatpush1.bf16.xpose.msra.mxu0 0
      %1072 = vmatprep.subr.bf16.mxu0 0
      %1073 = vmatpush1.bf16.xpose.msra.mxu0 0
      %1074 = vmatprep.subr.bf16.mxu0 0
      %1075 = vmatpush1.bf16.xpose.msra.mxu0 0
      %1076 = vmatprep.subr.bf16.mxu0 0
      %1077 = vmatpush1.bf16.xpose.msra.mxu0 0
      %1078 = vmatprep.subr.bf16.mxu0 0
      %1079 = vmatpush1.bf16.xpose.msra.mxu0 0
      %1080 = vmatprep.subr.bf16.mxu0 0
      %1081 = vmatpush1.bf16.xpose.msra.mxu0 0
      %1082 = vmatprep.subr.bf16.mxu0 0
      %1083 = vmatpush1.bf16.xpose.msra.mxu0 0
      %1084 = vmatprep.subr.bf16.mxu0 0
      %1085 = vmatpush1.bf16.xpose.msra.mxu0 %v1068
      %1086 = vmatprep.subr.bf16.mxu0 0
      %1087 = vmatpush2.bf16.xpose.msra.mxu0 0
      %1088 = vmatprep.subr.bf16.mxu0 0
      %1089 = vmatpush2.bf16.xpose.msra.mxu0 0
      %1090 = vmatprep.subr.bf16.mxu0 0
      %1091 = vmatpush2.bf16.xpose.msra.mxu0 0
      %1092 = vmatprep.subr.bf16.mxu0 0
      %1093 = vmatpush2.bf16.xpose.msra.mxu0 0
      %1094 = vmatprep.subr.bf16.mxu0 0
      %1095 = vmatpush2.bf16.xpose.msra.mxu0 0
      %1096 = vmatprep.subr.bf16.mxu0 0
      %1097 = vmatpush2.bf16.xpose.msra.mxu0 0
      %1098 = vmatprep.subr.bf16.mxu0 0
      %1099 = vmatpush2.bf16.xpose.msra.mxu0 0
      %1100 = vmatprep.subr.bf16.mxu0 0
      %1101 = vmatpush2.bf16.xpose.msra.mxu0 0
      %1102 = vmatprep.mubr.bf16.mxu0 0
      %1103 = vmatmul.mubr.bf16.gmra.mxu0 %v1065
      %v1104 = vpop.f32.mrf.mxu0
      %v1105 = vadd.f32 0.0, %v1104
      %v1106 = vpop.f32.mrf.mxu0
      %v1107 = vpop.f32.mrf.mxu0
      %v1108 = vpop.f32.mrf.mxu0
      %1109 = vdwg.mxu0
      %v1110 = vmul.f32 %v1105, 0.088388346
      %v1111 = vsel %vm328, %v1110, -inf
      %1112 = vmax.xlane.f32.xlu0 %v1111
      %v1113 = vpop.xlane.xlu0 %1112
      %v1114 = vsub.f32 %v1110, %v1113
      %v1115 = vmul.f32 %v1114, 1.442695
      %v1116 = vpow.pop %v1115
      %v1117 = vsel %vm328, %v1116, 0.0
      %1118 = vadd.xlane.f32.xlu0 %v1117
      %v1119 = vpop.xlane.xlu0 %1118
      %v1120 = vrcp.pop %v1119
      %v1121 = vmul.f32 %v1116, %v1120
      %v1122 = vpack.c.bf16 %v1121, %v1121
      %v1124 = vunpack.c.l.b16 %v1053
      %v1125 = vpack.c.b16 %v1124, %v1124
      %1126 = vrot.lane.b32.xlu0 %v1125, 32
      %v1127 = vpop.permute.xlu0 %1126
      %v1129 = vsel %vm328, %v1122, 0
      %v1132 = vsel %vm344, %v1127, 0
      %1134 = vmatprep.subr.bf16.mxu0 0
      %1135 = vmatpush1.bf16.msra.mxu0 0
      %1136 = vmatprep.subr.bf16.mxu0 0
      %1137 = vmatpush1.bf16.msra.mxu0 0
      %1138 = vmatprep.subr.bf16.mxu0 0
      %1139 = vmatpush1.bf16.msra.mxu0 0
      %1140 = vmatprep.subr.bf16.mxu0 0
      %1141 = vmatpush1.bf16.msra.mxu0 0
      %1142 = vmatprep.subr.bf16.mxu0 0
      %1143 = vmatpush1.bf16.msra.mxu0 0
      %1144 = vmatprep.subr.bf16.mxu0 0
      %1145 = vmatpush1.bf16.msra.mxu0 0
      %1146 = vmatprep.subr.bf16.mxu0 0
      %1147 = vmatpush1.bf16.msra.mxu0 0
      %1148 = vmatprep.subr.bf16.mxu0 0
      %1149 = vmatpush1.bf16.msra.mxu0 %v1132
      %1150 = vmatprep.subr.bf16.mxu0 0
      %1151 = vmatpush2.bf16.msra.mxu0 0
      %1152 = vmatprep.subr.bf16.mxu0 0
      %1153 = vmatpush2.bf16.msra.mxu0 0
      %1154 = vmatprep.subr.bf16.mxu0 0
      %1155 = vmatpush2.bf16.msra.mxu0 0
      %1156 = vmatprep.subr.bf16.mxu0 0
      %1157 = vmatpush2.bf16.msra.mxu0 0
      %1158 = vmatprep.subr.bf16.mxu0 0
      %1159 = vmatpush2.bf16.msra.mxu0 0
      %1160 = vmatprep.subr.bf16.mxu0 0
      %1161 = vmatpush2.bf16.msra.mxu0 0
      %1162 = vmatprep.subr.bf16.mxu0 0
      %1163 = vmatpush2.bf16.msra.mxu0 0
      %1164 = vmatprep.subr.bf16.mxu0 0
      %1165 = vmatpush2.bf16.msra.mxu0 0
      %1166 = vmatprep.mubr.bf16.mxu0 0
      %1167 = vmatmul.mubr.bf16.gmra.mxu0 %v1129
      %v1168 = vpop.f32.mrf.mxu0
      %v1169 = vadd.f32 0.0, %v1168
      %v1170 = vpop.f32.mrf.mxu0
      %v1171 = vpop.f32.mrf.mxu0
      %v1172 = vpop.f32.mrf.mxu0
      %1173 = vdwg.mxu0
      %v1174 = vpack.c.bf16 %v1169, %v1169
      %v1176 = vunpack.c.l.b16 %v1174
      %v1177 = vpack.c.b16 %v1176, %v1176
      %1178 = vrot.lane.b32.xlu0 %v1177, 96
      %v1179 = vpop.permute.xlu0 %1178
      %vm1181 = vcmask 913152
      %1182 = vst.msk [vmem:[%s275] sm:$0xf] %vm1181, %v1179
      %v1183 = vld [vmem:[%s248] sm:$0xf]
      %v1184 = vld [vmem:[%s257] sm:$0xf]
      %v1185 = vld [vmem:[%s267] sm:$0xf]
      %v1187 = vunpack.c.l.b16 %v1183
      %v1188 = vpack.c.b16 %v1187, %v1187
      %1189 = vrot.lane.b32.xlu0 %v1188, 16
      %v1190 = vpop.permute.xlu0 %1189
      %v1192 = vunpack.c.l.b16 %v1184
      %v1193 = vpack.c.b16 %v1192, %v1192
      %1194 = vrot.lane.b32.xlu0 %v1193, 16
      %v1195 = vpop.permute.xlu0 %1194
      %v1197 = vsel %vm280, %v1190, 0
      %v1200 = vsel %vm280, %v1195, 0
      %1202 = vmatprep.subr.bf16.mxu0 0
      %1203 = vmatpush1.bf16.xpose.msra.mxu0 0
      %1204 = vmatprep.subr.bf16.mxu0 0
      %1205 = vmatpush1.bf16.xpose.msra.mxu0 0
      %1206 = vmatprep.subr.bf16.mxu0 0
      %1207 = vmatpush1.bf16.xpose.msra.mxu0 0
      %1208 = vmatprep.subr.bf16.mxu0 0
      %1209 = vmatpush1.bf16.xpose.msra.mxu0 0
      %1210 = vmatprep.subr.bf16.mxu0 0
      %1211 = vmatpush1.bf16.xpose.msra.mxu0 0
      %1212 = vmatprep.subr.bf16.mxu0 0
      %1213 = vmatpush1.bf16.xpose.msra.mxu0 0
      %1214 = vmatprep.subr.bf16.mxu0 0
      %1215 = vmatpush1.bf16.xpose.msra.mxu0 0
      %1216 = vmatprep.subr.bf16.mxu0 0
      %1217 = vmatpush1.bf16.xpose.msra.mxu0 %v1200
      %1218 = vmatprep.subr.bf16.mxu0 0
      %1219 = vmatpush2.bf16.xpose.msra.mxu0 0
      %1220 = vmatprep.subr.bf16.mxu0 0
      %1221 = vmatpush2.bf16.xpose.msra.mxu0 0
      %1222 = vmatprep.subr.bf16.mxu0 0
      %1223 = vmatpush2.bf16.xpose.msra.mxu0 0
      %1224 = vmatprep.subr.bf16.mxu0 0
      %1225 = vmatpush2.bf16.xpose.msra.mxu0 0
      %1226 = vmatprep.subr.bf16.mxu0 0
      %1227 = vmatpush2.bf16.xpose.msra.mxu0 0
      %1228 = vmatprep.subr.bf16.mxu0 0
      %1229 = vmatpush2.bf16.xpose.msra.mxu0 0
      %1230 = vmatprep.subr.bf16.mxu0 0
      %1231 = vmatpush2.bf16.xpose.msra.mxu0 0
      %1232 = vmatprep.subr.bf16.mxu0 0
      %1233 = vmatpush2.bf16.xpose.msra.mxu0 0
      %1234 = vmatprep.mubr.bf16.mxu0 0
      %1235 = vmatmul.mubr.bf16.gmra.mxu0 %v1197
      %v1236 = vpop.f32.mrf.mxu0
      %v1237 = vadd.f32 0.0, %v1236
      %v1238 = vpop.f32.mrf.mxu0
      %v1239 = vpop.f32.mrf.mxu0
      %v1240 = vpop.f32.mrf.mxu0
      %1241 = vdwg.mxu0
      %v1242 = vmul.f32 %v1237, 0.088388346
      %v1243 = vsel %vm328, %v1242, -inf
      %1244 = vmax.xlane.f32.xlu0 %v1243
      %v1245 = vpop.xlane.xlu0 %1244
      %v1246 = vsub.f32 %v1242, %v1245
      %v1247 = vmul.f32 %v1246, 1.442695
      %v1248 = vpow.pop %v1247
      %v1249 = vsel %vm328, %v1248, 0.0
      %1250 = vadd.xlane.f32.xlu0 %v1249
      %v1251 = vpop.xlane.xlu0 %1250
      %v1252 = vrcp.pop %v1251
      %v1253 = vmul.f32 %v1248, %v1252
      %v1254 = vpack.c.bf16 %v1253, %v1253
      %v1256 = vunpack.c.l.b16 %v1185
      %v1257 = vpack.c.b16 %v1256, %v1256
      %1258 = vrot.lane.b32.xlu0 %v1257, 16
      %v1259 = vpop.permute.xlu0 %1258
      %v1261 = vsel %vm328, %v1254, 0
      %v1264 = vsel %vm344, %v1259, 0
      %1266 = vmatprep.subr.bf16.mxu0 0
      %1267 = vmatpush1.bf16.msra.mxu0 0
      %1268 = vmatprep.subr.bf16.mxu0 0
      %1269 = vmatpush1.bf16.msra.mxu0 0
      %1270 = vmatprep.subr.bf16.mxu0 0
      %1271 = vmatpush1.bf16.msra.mxu0 0
      %1272 = vmatprep.subr.bf16.mxu0 0
      %1273 = vmatpush1.bf16.msra.mxu0 0
      %1274 = vmatprep.subr.bf16.mxu0 0
      %1275 = vmatpush1.bf16.msra.mxu0 0
      %1276 = vmatprep.subr.bf16.mxu0 0
      %1277 = vmatpush1.bf16.msra.mxu0 0
      %1278 = vmatprep.subr.bf16.mxu0 0
      %1279 = vmatpush1.bf16.msra.mxu0 0
      %1280 = vmatprep.subr.bf16.mxu0 0
      %1281 = vmatpush1.bf16.msra.mxu0 %v1264
      %1282 = vmatprep.subr.bf16.mxu0 0
      %1283 = vmatpush2.bf16.msra.mxu0 0
      %1284 = vmatprep.subr.bf16.mxu0 0
      %1285 = vmatpush2.bf16.msra.mxu0 0
      %1286 = vmatprep.subr.bf16.mxu0 0
      %1287 = vmatpush2.bf16.msra.mxu0 0
      %1288 = vmatprep.subr.bf16.mxu0 0
      %1289 = vmatpush2.bf16.msra.mxu0 0
      %1290 = vmatprep.subr.bf16.mxu0 0
      %1291 = vmatpush2.bf16.msra.mxu0 0
      %1292 = vmatprep.subr.bf16.mxu0 0
      %1293 = vmatpush2.bf16.msra.mxu0 0
      %1294 = vmatprep.subr.bf16.mxu0 0
      %1295 = vmatpush2.bf16.msra.mxu0 0
      %1296 = vmatprep.subr.bf16.mxu0 0
      %1297 = vmatpush2.bf16.msra.mxu0 0
      %1298 = vmatprep.mubr.bf16.mxu0 0
      %1299 = vmatmul.mubr.bf16.gmra.mxu0 %v1261
      %v1300 = vpop.f32.mrf.mxu0
      %v1301 = vadd.f32 0.0, %v1300
      %v1302 = vpop.f32.mrf.mxu0
      %v1303 = vpop.f32.mrf.mxu0
      %v1304 = vpop.f32.mrf.mxu0
      %1305 = vdwg.mxu0
      %v1306 = vpack.c.bf16 %v1301, %v1301
      %v1308 = vunpack.c.l.b16 %v1306
      %v1309 = vpack.c.b16 %v1308, %v1308
      %1310 = vrot.lane.b32.xlu0 %v1309, 112
      %v1311 = vpop.permute.xlu0 %1310
      %vm1313 = vcmask 1044352
      %1314 = vst.msk [vmem:[%s275] sm:$0xf] %vm1313, %v1311
      %p1315 = scmp.lt.s32.totalorder %s18, 1
      %s1316 = scalar_select %p1315, %s18, 1
      %p1317 = scmp.lt.s32.totalorder %s19, 0
      %s1318 = scalar_select %p1317, %s19, 0
      %s1319 = sadd.s32 %s1318, %s1316
      %s1320 = smul.addr %s1319, 4
      %s1321 = scalar_lea.vmem %s3, %s1320
      // Predicated region
      $region33: #{embedding_transformer_forward.14} parent=31 // pred_check
        %p1322 = pneg %p134
      $region34: #{embedding_transformer_forward.14} parent=31 // pred_check_branch
        %1324 = sbr.rel (%p1322) target = $region36
      $region35: #{embedding_transformer_forward.14} parent=31 // pred_region
        _
      $region36: #{embedding_transformer_forward.14} parent=31 // pred_fallthru
        _
    $region32: #{embedding_transformer_forward.14} parent=5 // pred_fallthru
      _
    %p1325 = scmp.le.s32.totalorder 2, %s9
    // Predicated region
    $region37: #{embedding_transformer_forward.14} parent=5 // pred_check
      %p1326 = pneg %p1325
    $region38: #{embedding_transformer_forward.14} parent=5 // pred_check_branch
      %1328 = sbr.rel (%p1326) target = $region40
    $region39: #{embedding_transformer_forward.14} parent=5 // pred_region
      %s1329 = ssub.s32 %s9, 2
      // Predicated region
      $region41: #{embedding_transformer_forward.14} parent=39 // pred_check
        %p1330 = pneg %p140
      $region42: #{embedding_transformer_forward.14} parent=39 // pred_check_branch
        %1332 = sbr.rel (%p1330) target = $region44
      $region43: #{embedding_transformer_forward.14} parent=39 // pred_region
        %p1333 = scmp.lt.s32.totalorder %s20, 1
        %s1334 = scalar_select %p1333, %s20, 1
        %p1335 = scmp.lt.s32.totalorder %s21, 0
        %s1336 = scalar_select %p1335, %s21, 0
        %s1337 = sadd.s32 %s1336, %s1334
        %s1338 = smul.addr %s1337, 4
        %s1339 = scalar_lea.vmem %s3, %s1338
      $region44: #{embedding_transformer_forward.14} parent=39 // pred_fallthru
        _
    $region40: #{embedding_transformer_forward.14} parent=5 // pred_fallthru
      _
  $region6: #{embedding_transformer_forward.14} parent=0 // loop_footer
    %s13 = sadd.s32 1, %s9
  $region7: #{embedding_transformer_forward.14} parent=0 // loop_footer_branch
    %8 = sbr.rel target = $region3
  $region8: #{embedding_transformer_forward.14} parent=0 // loop_exit
    _

// kernel: embedding_transformer_forward.23
$region0: #{embedding_transformer_forward.23}
  #allocation0 [shape = 'u32[]', space=smem, size = 0x4, offset = 0x4, fixed_abs, tag = 'smem constant byte address 0x4 - core index']
  #allocation1 [shape = 'u32[144,128]{1,0:T(1,128)}', space=vmem, size = 0x12000, scoped, tag = 'internal scratch']
  %s0 = inlined_call_operand.vmem [shape: f32[16,128], index: 0, kind: input, shape index: {}]
  %s1 = inlined_call_operand.vmem [shape: bf16[128,256], index: 1, kind: input, shape index: {}]
  %s2 = inlined_call_operand.vmem [shape: f32[1,256], index: 2, kind: input, shape index: {}]
  %s3 = inlined_call_operand.hbm [shape: f32[16,256], index: 3, kind: output, shape index: {}]
  %s4 = sld [smem:[#allocation0]]
  $region22: #{embedding_transformer_forward.23} parent=0
    _
  %s6 = ssub.s32 1, %s4
  %s7 = scalar_select 0, %s6, %s4
  $region1: #{embedding_transformer_forward.23} parent=0
    #allocation2 [shape = 'u8[16384]{0}', space=vmem, size = 0x4000, scoped, tag = 'output window, operand 0, single buffered']
    #allocation3 [shape = 's32[1]{0}', space=sflag, size = 0x4, scoped, tag = 'scoped memory for embedding_transformer_forward.23']
    %8 = vsyncpa [#allocation3], 0
    // Predicated region
    $region2: #{embedding_transformer_forward.23} parent=1 // pred_check
      _
    $region3: #{embedding_transformer_forward.23} parent=1 // pred_check_branch
      %10 = sbr.rel (0) target = $region5
    $region4: #{embedding_transformer_forward.23} parent=1 // pred_region
      _
    $region5: #{embedding_transformer_forward.23} parent=1 // pred_fallthru
      _
    // Predicated region
    $region6: #{embedding_transformer_forward.23} parent=1 // pred_check
      _
    $region7: #{embedding_transformer_forward.23} parent=1 // pred_check_branch
      %12 = sbr.rel (0) target = $region9
    $region8: #{embedding_transformer_forward.23} parent=1 // pred_region
      _
    $region9: #{embedding_transformer_forward.23} parent=1 // pred_fallthru
      _
    // Predicated region
    $region10: #{embedding_transformer_forward.23} parent=1 // pred_check
      _
    $region11: #{embedding_transformer_forward.23} parent=1 // pred_check_branch
      %14 = sbr.rel (0) target = $region13
    $region12: #{embedding_transformer_forward.23} parent=1 // pred_region
      _
    $region13: #{embedding_transformer_forward.23} parent=1 // pred_fallthru
      _
    %v16 = vld [vmem:[%s0] sm:$0xff]
    %v17 = vld [vmem:[%s0 + $0x8] sm:$0xff]
    %v18 = vpack.c.bf16 %v17, %v16
    %v19 = vld [vmem:[%s1] sm:$0xff]
    %v20 = vld [vmem:[%s1 + $0x8] sm:$0xff]
    %v21 = vld [vmem:[%s1 + $0x10] sm:$0xff]
    %v22 = vld [vmem:[%s1 + $0x18] sm:$0xff]
    %v23 = vld [vmem:[%s1 + $0x20] sm:$0xff]
    %v24 = vld [vmem:[%s1 + $0x28] sm:$0xff]
    %v25 = vld [vmem:[%s1 + $0x30] sm:$0xff]
    %v26 = vld [vmem:[%s1 + $0x38] sm:$0xff]
    %v27 = vld [vmem:[%s1 + $0x40] sm:$0xff]
    %v28 = vld [vmem:[%s1 + $0x48] sm:$0xff]
    %v29 = vld [vmem:[%s1 + $0x50] sm:$0xff]
    %v30 = vld [vmem:[%s1 + $0x58] sm:$0xff]
    %v31 = vld [vmem:[%s1 + $0x60] sm:$0xff]
    %v32 = vld [vmem:[%s1 + $0x68] sm:$0xff]
    %v33 = vld [vmem:[%s1 + $0x70] sm:$0xff]
    %v34 = vld [vmem:[%s1 + $0x78] sm:$0xff]
    %v35 = vld [vmem:[%s2] sm:$0x3]
    %v37 = vlaneseq
    %v38 = vshrl.u32 %v37, 7
    %v39 = vsub.s32 0, %v38
    %v40 = vrot.slane %v35, %v39
    %v41 = vlaneseq
    %v42 = vshrl.u32 %v41, 7
    %v43 = vsub.s32 1, %v42
    %v44 = vrot.slane %v35, %v43
    %v63 = vunpack.c.l.b16 %v19
    %v64 = vunpack.c.h.b16 %v19
    %v65 = vunpack.c.l.b16 %v20
    %v66 = vunpack.c.h.b16 %v20
    %v67 = vunpack.c.l.b16 %v21
    %v68 = vunpack.c.h.b16 %v21
    %v69 = vunpack.c.l.b16 %v22
    %v70 = vunpack.c.h.b16 %v22
    %v71 = vunpack.c.l.b16 %v23
    %v72 = vunpack.c.h.b16 %v23
    %v73 = vunpack.c.l.b16 %v24
    %v74 = vunpack.c.h.b16 %v24
    %v75 = vunpack.c.l.b16 %v25
    %v76 = vunpack.c.h.b16 %v25
    %v77 = vunpack.c.l.b16 %v26
    %v78 = vunpack.c.h.b16 %v26
    %v79 = vunpack.c.l.b16 %v27
    %v80 = vunpack.c.h.b16 %v27
    %v81 = vunpack.c.l.b16 %v28
    %v82 = vunpack.c.h.b16 %v28
    %v83 = vunpack.c.l.b16 %v29
    %v84 = vunpack.c.h.b16 %v29
    %v85 = vunpack.c.l.b16 %v30
    %v86 = vunpack.c.h.b16 %v30
    %v87 = vunpack.c.l.b16 %v31
    %v88 = vunpack.c.h.b16 %v31
    %v89 = vunpack.c.l.b16 %v32
    %v90 = vunpack.c.h.b16 %v32
    %v91 = vunpack.c.l.b16 %v33
    %v92 = vunpack.c.h.b16 %v33
    %v93 = vunpack.c.l.b16 %v34
    %v94 = vunpack.c.h.b16 %v34
    %v95 = vpack.c.b16 %v65, %v63
    %v96 = vpack.c.b16 %v66, %v64
    %v97 = vpack.c.b16 %v69, %v67
    %v98 = vpack.c.b16 %v70, %v68
    %v99 = vpack.c.b16 %v73, %v71
    %v100 = vpack.c.b16 %v74, %v72
    %v101 = vpack.c.b16 %v77, %v75
    %v102 = vpack.c.b16 %v78, %v76
    %v103 = vpack.c.b16 %v81, %v79
    %v104 = vpack.c.b16 %v82, %v80
    %v105 = vpack.c.b16 %v85, %v83
    %v106 = vpack.c.b16 %v86, %v84
    %v107 = vpack.c.b16 %v89, %v87
    %v108 = vpack.c.b16 %v90, %v88
    %v109 = vpack.c.b16 %v93, %v91
    %v110 = vpack.c.b16 %v94, %v92
    %127 = vmatprep.subr.bf16.mxu0 %v110
    %128 = vmatpush1.bf16.msra.mxu0 %v109
    %129 = vmatprep.subr.bf16.mxu0 %v108
    %130 = vmatpush1.bf16.msra.mxu0 %v107
    %131 = vmatprep.subr.bf16.mxu0 %v106
    %132 = vmatpush1.bf16.msra.mxu0 %v105
    %133 = vmatprep.subr.bf16.mxu0 %v104
    %134 = vmatpush1.bf16.msra.mxu0 %v103
    %135 = vmatprep.subr.bf16.mxu0 %v102
    %136 = vmatpush1.bf16.msra.mxu0 %v101
    %137 = vmatprep.subr.bf16.mxu0 %v100
    %138 = vmatpush1.bf16.msra.mxu0 %v99
    %139 = vmatprep.subr.bf16.mxu0 %v98
    %140 = vmatpush1.bf16.msra.mxu0 %v97
    %141 = vmatprep.subr.bf16.mxu0 %v96
    %142 = vmatpush1.bf16.msra.mxu0 %v95
    %143 = vmatprep.subr.bf16.mxu0 0
    %144 = vmatpush2.bf16.msra.mxu0 0
    %145 = vmatprep.subr.bf16.mxu0 0
    %146 = vmatpush2.bf16.msra.mxu0 0
    %147 = vmatprep.subr.bf16.mxu0 0
    %148 = vmatpush2.bf16.msra.mxu0 0
    %149 = vmatprep.subr.bf16.mxu0 0
    %150 = vmatpush2.bf16.msra.mxu0 0
    %151 = vmatprep.subr.bf16.mxu0 0
    %152 = vmatpush2.bf16.msra.mxu0 0
    %153 = vmatprep.subr.bf16.mxu0 0
    %154 = vmatpush2.bf16.msra.mxu0 0
    %155 = vmatprep.subr.bf16.mxu0 0
    %156 = vmatpush2.bf16.msra.mxu0 0
    %157 = vmatprep.subr.bf16.mxu0 0
    %158 = vmatpush2.bf16.msra.mxu0 0
    %159 = vmatprep.mubr.bf16.mxu0 0
    %160 = vmatmul.mubr.bf16.gmra.mxu0 %v18
    %v161 = vpop.f32.mrf.mxu0
    %v162 = vadd.f32 %v40, %v161
    %v163 = vpop.f32.mrf.mxu0
    %v164 = vadd.f32 %v44, %v163
    %v165 = vpop.f32.mrf.mxu0
    %v166 = vadd.f32 %v40, %v165
    %v167 = vpop.f32.mrf.mxu0
    %v168 = vadd.f32 %v44, %v167
    %169 = vdwg.mxu0
    %170 = vst [vmem:[#allocation2] sm:$0xff] %v162
    %171 = vst [vmem:[#allocation2 + $0x8] sm:$0xff] %v164
    %172 = vst [vmem:[#allocation2 + $0x10] sm:$0xff] %v166
    %173 = vst [vmem:[#allocation2 + $0x18] sm:$0xff] %v168
    // Predicated region
    $region14: #{embedding_transformer_forward.23} parent=1 // pred_check
      _
    $region15: #{embedding_transformer_forward.23} parent=1 // pred_check_branch
      %175 = sbr.rel (0) target = $region17
    $region16: #{embedding_transformer_forward.23} parent=1 // pred_region
      %s177 = ssub.s32 512, 512
      %178 = vsyncadd [#allocation3], %s177
      %s179 = sshll.u32 [#allocation2], 4
      %s180 = int_to_ptr.vmem [resolvable:$true] %s179
      %185 = dma.vmem_to_hbm [thread:$0]  %s180, 512, %s3, [#allocation3], 256, 256, 16
    $region17: #{embedding_transformer_forward.23} parent=1 // pred_fallthru
      _
    // Predicated region
    $region18: #{embedding_transformer_forward.23} parent=1 // pred_check
      _
    $region19: #{embedding_transformer_forward.23} parent=1 // pred_check_branch
      %187 = sbr.rel (0) target = $region21
    $region20: #{embedding_transformer_forward.23} parent=1 // pred_region
      %188 = dma.done [#allocation3], 512
    $region21: #{embedding_transformer_forward.23} parent=1 // pred_fallthru
      _
    %189 = vsyncpa [#allocation3], 1

// kernel: embedding_transformer_forward.16
$region0: #{embedding_transformer_forward.16}
  #allocation0 [shape = 'u32[]', space=smem, size = 0x4, offset = 0x4, fixed_abs, tag = 'smem constant byte address 0x4 - core index']
  #allocation1 [shape = 'u32[144,128]{1,0:T(1,128)}', space=vmem, size = 0x12000, scoped, tag = 'internal scratch']
  #allocation2 [shape = 'bf16[16,128]{1,0:T(8,128)(2,1)}', space=vmem, size = 0x1000, scoped, tag = 'scratch operand']
  %s0 = inlined_call_operand.vmem [shape: f32[16,128], index: 0, kind: input, shape index: {}]
  %s1 = inlined_call_operand.vmem [shape: f32[1,128], index: 1, kind: input, shape index: {}]
  %s2 = inlined_call_operand.vmem [shape: f32[1,128], index: 2, kind: input, shape index: {}]
  %s3 = inlined_call_operand.vmem [shape: bf16[128,128], index: 3, kind: input, shape index: {}]
  %s4 = inlined_call_operand.vmem [shape: f32[1,128], index: 4, kind: input, shape index: {}]
  %s5 = inlined_call_operand.vmem [shape: bf16[16,128], index: 5, kind: output, shape index: {}]
  %s6 = sld [smem:[#allocation0]]
  $region34: #{embedding_transformer_forward.16} parent=0
    _
  %s8 = ssub.s32 1, %s6
  %s9 = scalar_select 0, %s8, %s6
  // Predicated region
  $region2: #{embedding_transformer_forward.16} parent=0 // pred_check
    _
  $region3: #{embedding_transformer_forward.16} parent=0 // pred_check_branch
    %11 = sbr.rel (0) target = $region5
  $region4: #{embedding_transformer_forward.16} parent=0 // pred_region
    _
  $region5: #{embedding_transformer_forward.16} parent=0 // pred_fallthru
    _
  // Predicated region
  $region6: #{embedding_transformer_forward.16} parent=0 // pred_check
    _
  $region7: #{embedding_transformer_forward.16} parent=0 // pred_check_branch
    %13 = sbr.rel (0) target = $region9
  $region8: #{embedding_transformer_forward.16} parent=0 // pred_region
    _
  $region9: #{embedding_transformer_forward.16} parent=0 // pred_fallthru
    _
  // Predicated region
  $region10: #{embedding_transformer_forward.16} parent=0 // pred_check
    _
  $region11: #{embedding_transformer_forward.16} parent=0 // pred_check_branch
    %15 = sbr.rel (0) target = $region13
  $region12: #{embedding_transformer_forward.16} parent=0 // pred_region
    _
  $region13: #{embedding_transformer_forward.16} parent=0 // pred_fallthru
    _
  // Predicated region
  $region14: #{embedding_transformer_forward.16} parent=0 // pred_check
    _
  $region15: #{embedding_transformer_forward.16} parent=0 // pred_check_branch
    %17 = sbr.rel (0) target = $region17
  $region16: #{embedding_transformer_forward.16} parent=0 // pred_region
    _
  $region17: #{embedding_transformer_forward.16} parent=0 // pred_fallthru
    _
  // Predicated region
  $region18: #{embedding_transformer_forward.16} parent=0 // pred_check
    _
  $region19: #{embedding_transformer_forward.16} parent=0 // pred_check_branch
    %19 = sbr.rel (0) target = $region21
  $region20: #{embedding_transformer_forward.16} parent=0 // pred_region
    _
  $region21: #{embedding_transformer_forward.16} parent=0 // pred_fallthru
    _
  %p21 = scmp.eq.s32.totalorder 0, 0
  // Predicated region
  $region22: #{embedding_transformer_forward.16} parent=0 // pred_check
    %p22 = pneg %p21
  $region23: #{embedding_transformer_forward.16} parent=0 // pred_check_branch
    %24 = sbr.rel (%p22) target = $region25
  $region24: #{embedding_transformer_forward.16} parent=0 // pred_region
    %v25 = vld [vmem:[%s0] sm:$0xff]
    %v26 = vld [vmem:[%s0 + $0x8] sm:$0xff]
    %27 = vadd.xlane.f32.xlu0 %v25
    %v28 = vpop.xlane.xlu0 %27
    %29 = vadd.xlane.f32.xlu0 %v26
    %v30 = vpop.xlane.xlu0 %29
    %v31 = vrcp.pop 128.0
    %v32 = vmul.f32 %v28, %v31
    %v33 = vmul.f32 %v30, %v31
    %v34 = vsub.f32 %v25, %v32
    %v35 = vsub.f32 %v26, %v33
    %v36 = vmul.f32 %v34, %v34
    %v37 = vmul.f32 %v35, %v35
    %38 = vadd.xlane.f32.xlu0 %v36
    %v39 = vpop.xlane.xlu0 %38
    %40 = vadd.xlane.f32.xlu0 %v37
    %v41 = vpop.xlane.xlu0 %40
    %v42 = vmul.f32 %v39, %v31
    %v43 = vmul.f32 %v41, %v31
    %v44 = vadd.f32 %v42, 1e-05
    %v45 = vadd.f32 %v43, 1e-05
    %v46 = vrsqrt.pop %v44
    %v47 = vrsqrt.pop %v45
    %v48 = vmul.f32 %v34, %v46
    %v49 = vmul.f32 %v35, %v47
    %v50 = vld [vmem:[%s1] sm:$0x1]
    %v52 = vlaneseq
    %v53 = vshrl.u32 %v52, 7
    %v54 = vsub.s32 0, %v53
    %v55 = vrot.slane %v50, %v54
    %v57 = vmul.f32 %v48, %v55
    %v58 = vmul.f32 %v49, %v55
    %v59 = vld [vmem:[%s2] sm:$0x1]
    %v61 = vlaneseq
    %v62 = vshrl.u32 %v61, 7
    %v63 = vsub.s32 0, %v62
    %v64 = vrot.slane %v59, %v63
    %v66 = vadd.f32 %v57, %v64
    %v67 = vadd.f32 %v58, %v64
    %v68 = vpack.c.bf16 %v67, %v66
    %v70 = vunpack.c.l.b16 %v68
    %v71 = vunpack.c.h.b16 %v68
    %v72 = vpack.c.b16 %v70, %v70
    %v73 = vpack.c.b16 %v71, %v71
    %76 = vst [vmem:[#allocation2] sm:$0xf] %v72
    %77 = vst [vmem:[#allocation2 + $0x4] sm:$0xf] %v73
  $region25: #{embedding_transformer_forward.16} parent=0 // pred_fallthru
    _
  %v78 = vld [vmem:[#allocation2] sm:$0xf]
  %v79 = vld [vmem:[#allocation2 + $0x4] sm:$0xf]
  %v80 = vld [vmem:[%s3] sm:$0xf]
  %v81 = vld [vmem:[%s3 + $0x4] sm:$0xf]
  %v82 = vld [vmem:[%s3 + $0x8] sm:$0xf]
  %v83 = vld [vmem:[%s3 + $0xc] sm:$0xf]
  %v84 = vld [vmem:[%s3 + $0x10] sm:$0xf]
  %v85 = vld [vmem:[%s3 + $0x14] sm:$0xf]
  %v86 = vld [vmem:[%s3 + $0x18] sm:$0xf]
  %v87 = vld [vmem:[%s3 + $0x1c] sm:$0xf]
  %v88 = vld [vmem:[%s3 + $0x20] sm:$0xf]
  %v89 = vld [vmem:[%s3 + $0x24] sm:$0xf]
  %v90 = vld [vmem:[%s3 + $0x28] sm:$0xf]
  %v91 = vld [vmem:[%s3 + $0x2c] sm:$0xf]
  %v92 = vld [vmem:[%s3 + $0x30] sm:$0xf]
  %v93 = vld [vmem:[%s3 + $0x34] sm:$0xf]
  %v94 = vld [vmem:[%s3 + $0x38] sm:$0xf]
  %v95 = vld [vmem:[%s3 + $0x3c] sm:$0xf]
  %v96 = vld [vmem:[%s4] sm:$0x1]
  %v98 = vlaneseq
  %v99 = vshrl.u32 %v98, 7
  %v100 = vsub.s32 0, %v99
  %v101 = vrot.slane %v96, %v100
  %v105 = vunpack.c.l.b16 %v78
  %v106 = vunpack.c.l.b16 %v79
  %v107 = vpack.c.b16 %v106, %v105
  %v125 = vunpack.c.l.b16 %v80
  %v126 = vunpack.c.l.b16 %v81
  %v127 = vunpack.c.l.b16 %v82
  %v128 = vunpack.c.l.b16 %v83
  %v129 = vunpack.c.l.b16 %v84
  %v130 = vunpack.c.l.b16 %v85
  %v131 = vunpack.c.l.b16 %v86
  %v132 = vunpack.c.l.b16 %v87
  %v133 = vunpack.c.l.b16 %v88
  %v134 = vunpack.c.l.b16 %v89
  %v135 = vunpack.c.l.b16 %v90
  %v136 = vunpack.c.l.b16 %v91
  %v137 = vunpack.c.l.b16 %v92
  %v138 = vunpack.c.l.b16 %v93
  %v139 = vunpack.c.l.b16 %v94
  %v140 = vunpack.c.l.b16 %v95
  %v141 = vpack.c.b16 %v126, %v125
  %v142 = vpack.c.b16 %v128, %v127
  %v143 = vpack.c.b16 %v130, %v129
  %v144 = vpack.c.b16 %v132, %v131
  %v145 = vpack.c.b16 %v134, %v133
  %v146 = vpack.c.b16 %v136, %v135
  %v147 = vpack.c.b16 %v138, %v137
  %v148 = vpack.c.b16 %v140, %v139
  %157 = vmatprep.subr.bf16.mxu0 0
  %158 = vmatpush1.bf16.msra.mxu0 %v148
  %159 = vmatprep.subr.bf16.mxu0 0
  %160 = vmatpush1.bf16.msra.mxu0 %v147
  %161 = vmatprep.subr.bf16.mxu0 0
  %162 = vmatpush1.bf16.msra.mxu0 %v146
  %163 = vmatprep.subr.bf16.mxu0 0
  %164 = vmatpush1.bf16.msra.mxu0 %v145
  %165 = vmatprep.subr.bf16.mxu0 0
  %166 = vmatpush1.bf16.msra.mxu0 %v144
  %167 = vmatprep.subr.bf16.mxu0 0
  %168 = vmatpush1.bf16.msra.mxu0 %v143
  %169 = vmatprep.subr.bf16.mxu0 0
  %170 = vmatpush1.bf16.msra.mxu0 %v142
  %171 = vmatprep.subr.bf16.mxu0 0
  %172 = vmatpush1.bf16.msra.mxu0 %v141
  %173 = vmatprep.subr.bf16.mxu0 0
  %174 = vmatpush2.bf16.msra.mxu0 0
  %175 = vmatprep.subr.bf16.mxu0 0
  %176 = vmatpush2.bf16.msra.mxu0 0
  %177 = vmatprep.subr.bf16.mxu0 0
  %178 = vmatpush2.bf16.msra.mxu0 0
  %179 = vmatprep.subr.bf16.mxu0 0
  %180 = vmatpush2.bf16.msra.mxu0 0
  %181 = vmatprep.subr.bf16.mxu0 0
  %182 = vmatpush2.bf16.msra.mxu0 0
  %183 = vmatprep.subr.bf16.mxu0 0
  %184 = vmatpush2.bf16.msra.mxu0 0
  %185 = vmatprep.subr.bf16.mxu0 0
  %186 = vmatpush2.bf16.msra.mxu0 0
  %187 = vmatprep.subr.bf16.mxu0 0
  %188 = vmatpush2.bf16.msra.mxu0 0
  %189 = vmatprep.mubr.bf16.mxu0 0
  %190 = vmatmul.mubr.bf16.gmra.mxu0 %v107
  %v191 = vpop.f32.mrf.mxu0
  %v192 = vadd.f32 %v101, %v191
  %v193 = vpop.f32.mrf.mxu0
  %v194 = vpop.f32.mrf.mxu0
  %v195 = vadd.f32 %v101, %v194
  %v196 = vpop.f32.mrf.mxu0
  %197 = vdwg.mxu0
  %v198 = vmul.f32 %v192, 0.5
  %v199 = vmul.f32 %v195, 0.5
  %v200 = vmul.f32 %v192, 0.70710677
  %v201 = vmul.f32 %v195, 0.70710677
  %vm202 = vcmp.ge.f32.partialorder %v200, 0.0
  %vm203 = vcmp.ge.f32.partialorder %v201, 0.0
  %v204 = vsel %vm202, 1.0, -1.0
  %v205 = vsel %vm203, 1.0, -1.0
  %v206 = vand.u32 2147483647, %v200
  %v207 = vand.u32 2147483647, %v201
  %v208 = vmul.f32 %v206, 0.3275911
  %v209 = vmul.f32 %v207, 0.3275911
  %v210 = vadd.f32 %v208, 1.0
  %v211 = vadd.f32 %v209, 1.0
  %v212 = vrcp.pop %v210
  %v213 = vmul.f32 1.0, %v212
  %v214 = vrcp.pop %v211
  %v215 = vmul.f32 1.0, %v214
  %v216 = vmul.f32 %v213, 1.0614054
  %v217 = vmul.f32 %v215, 1.0614054
  %v218 = vadd.f32 %v216, -1.4531521
  %v219 = vadd.f32 %v217, -1.4531521
  %v220 = vmul.f32 %v218, %v213
  %v221 = vmul.f32 %v219, %v215
  %v222 = vadd.f32 %v220, 1.4214138
  %v223 = vadd.f32 %v221, 1.4214138
  %v224 = vmul.f32 %v222, %v213
  %v225 = vmul.f32 %v223, %v215
  %v226 = vadd.f32 %v224, -0.28449672
  %v227 = vadd.f32 %v225, -0.28449672
  %v228 = vmul.f32 %v226, %v213
  %v229 = vmul.f32 %v227, %v215
  %v230 = vadd.f32 %v228, 0.2548296
  %v231 = vadd.f32 %v229, 0.2548296
  %v232 = vmul.f32 %v230, %v213
  %v233 = vmul.f32 %v231, %v215
  %v234 = vsub.f32 0.0, %v206
  %v235 = vsub.f32 0.0, %v207
  %v236 = vmul.f32 %v234, %v206
  %v237 = vmul.f32 %v235, %v207
  %v238 = vmul.f32 %v236, 1.442695
  %v239 = vpow.pop %v238
  %v240 = vmul.f32 %v237, 1.442695
  %v241 = vpow.pop %v240
  %v242 = vmul.f32 %v232, %v239
  %v243 = vmul.f32 %v233, %v241
  %v244 = vsub.f32 1.0, %v242
  %v245 = vsub.f32 1.0, %v243
  %v246 = vmul.f32 %v204, %v244
  %v247 = vmul.f32 %v205, %v245
  %v248 = vadd.f32 %v246, 1.0
  %v249 = vadd.f32 %v247, 1.0
  %v250 = vmul.f32 %v198, %v248
  %v251 = vmul.f32 %v199, %v249
  %v252 = vpack.c.bf16 %v251, %v250
  %v254 = vunpack.c.l.b16 %v252
  %v255 = vunpack.c.h.b16 %v252
  %v256 = vpack.c.b16 %v254, %v254
  %v257 = vpack.c.b16 %v255, %v255
  %260 = vst [vmem:[%s5] sm:$0xf] %v256
  %261 = vst [vmem:[%s5 + $0x4] sm:$0xf] %v257
  // Predicated region
  $region26: #{embedding_transformer_forward.16} parent=0 // pred_check
    _
  $region27: #{embedding_transformer_forward.16} parent=0 // pred_check_branch
    %263 = sbr.rel (0) target = $region29
  $region28: #{embedding_transformer_forward.16} parent=0 // pred_region
    _
  $region29: #{embedding_transformer_forward.16} parent=0 // pred_fallthru
    _
  // Predicated region
  $region30: #{embedding_transformer_forward.16} parent=0 // pred_check
    _
  $region31: #{embedding_transformer_forward.16} parent=0 // pred_check_branch
    %265 = sbr.rel (0) target = $region33
  $region32: #{embedding_transformer_forward.16} parent=0 // pred_region
    _
  $region33: #{embedding_transformer_forward.16} parent=0 // pred_fallthru
    _

// kernel: embedding_transformer_forward.18
$region0: #{embedding_transformer_forward.18}
  #allocation0 [shape = 'u32[]', space=smem, size = 0x4, offset = 0x4, fixed_abs, tag = 'smem constant byte address 0x4 - core index']
  #allocation1 [shape = 'u32[144,128]{1,0:T(1,128)}', space=vmem, size = 0x12000, scoped, tag = 'internal scratch']
  #allocation2 [shape = 'bf16[16,128]{1,0:T(8,128)(2,1)}', space=vmem, size = 0x1000, scoped, tag = 'scratch operand']
  %s0 = inlined_call_operand.vmem [shape: f32[16,128], index: 0, kind: input, shape index: {}]
  %s1 = inlined_call_operand.vmem [shape: f32[1,128], index: 1, kind: input, shape index: {}]
  %s2 = inlined_call_operand.vmem [shape: f32[1,128], index: 2, kind: input, shape index: {}]
  %s3 = inlined_call_operand.vmem [shape: bf16[128,384], index: 3, kind: input, shape index: {}]
  %s4 = inlined_call_operand.vmem [shape: bf16[16,384], index: 4, kind: output, shape index: {}]
  %s5 = sld [smem:[#allocation0]]
  $region30: #{embedding_transformer_forward.18} parent=0
    _
  %s7 = ssub.s32 1, %s5
  %s8 = scalar_select 0, %s7, %s5
  // Predicated region
  $region2: #{embedding_transformer_forward.18} parent=0 // pred_check
    _
  $region3: #{embedding_transformer_forward.18} parent=0 // pred_check_branch
    %10 = sbr.rel (0) target = $region5
  $region4: #{embedding_transformer_forward.18} parent=0 // pred_region
    _
  $region5: #{embedding_transformer_forward.18} parent=0 // pred_fallthru
    _
  // Predicated region
  $region6: #{embedding_transformer_forward.18} parent=0 // pred_check
    _
  $region7: #{embedding_transformer_forward.18} parent=0 // pred_check_branch
    %12 = sbr.rel (0) target = $region9
  $region8: #{embedding_transformer_forward.18} parent=0 // pred_region
    _
  $region9: #{embedding_transformer_forward.18} parent=0 // pred_fallthru
    _
  // Predicated region
  $region10: #{embedding_transformer_forward.18} parent=0 // pred_check
    _
  $region11: #{embedding_transformer_forward.18} parent=0 // pred_check_branch
    %14 = sbr.rel (0) target = $region13
  $region12: #{embedding_transformer_forward.18} parent=0 // pred_region
    _
  $region13: #{embedding_transformer_forward.18} parent=0 // pred_fallthru
    _
  // Predicated region
  $region14: #{embedding_transformer_forward.18} parent=0 // pred_check
    _
  $region15: #{embedding_transformer_forward.18} parent=0 // pred_check_branch
    %16 = sbr.rel (0) target = $region17
  $region16: #{embedding_transformer_forward.18} parent=0 // pred_region
    _
  $region17: #{embedding_transformer_forward.18} parent=0 // pred_fallthru
    _
  %p18 = scmp.eq.s32.totalorder 0, 0
  // Predicated region
  $region18: #{embedding_transformer_forward.18} parent=0 // pred_check
    %p19 = pneg %p18
  $region19: #{embedding_transformer_forward.18} parent=0 // pred_check_branch
    %21 = sbr.rel (%p19) target = $region21
  $region20: #{embedding_transformer_forward.18} parent=0 // pred_region
    %v22 = vld [vmem:[%s0] sm:$0xff]
    %v23 = vld [vmem:[%s0 + $0x8] sm:$0xff]
    %24 = vadd.xlane.f32.xlu0 %v22
    %v25 = vpop.xlane.xlu0 %24
    %26 = vadd.xlane.f32.xlu0 %v23
    %v27 = vpop.xlane.xlu0 %26
    %v28 = vrcp.pop 128.0
    %v29 = vmul.f32 %v25, %v28
    %v30 = vmul.f32 %v27, %v28
    %v31 = vsub.f32 %v22, %v29
    %v32 = vsub.f32 %v23, %v30
    %v33 = vmul.f32 %v31, %v31
    %v34 = vmul.f32 %v32, %v32
    %35 = vadd.xlane.f32.xlu0 %v33
    %v36 = vpop.xlane.xlu0 %35
    %37 = vadd.xlane.f32.xlu0 %v34
    %v38 = vpop.xlane.xlu0 %37
    %v39 = vmul.f32 %v36, %v28
    %v40 = vmul.f32 %v38, %v28
    %v41 = vadd.f32 %v39, 1e-05
    %v42 = vadd.f32 %v40, 1e-05
    %v43 = vrsqrt.pop %v41
    %v44 = vrsqrt.pop %v42
    %v45 = vmul.f32 %v31, %v43
    %v46 = vmul.f32 %v32, %v44
    %v47 = vld [vmem:[%s1] sm:$0x1]
    %v49 = vlaneseq
    %v50 = vshrl.u32 %v49, 7
    %v51 = vsub.s32 0, %v50
    %v52 = vrot.slane %v47, %v51
    %v54 = vmul.f32 %v45, %v52
    %v55 = vmul.f32 %v46, %v52
    %v56 = vld [vmem:[%s2] sm:$0x1]
    %v58 = vlaneseq
    %v59 = vshrl.u32 %v58, 7
    %v60 = vsub.s32 0, %v59
    %v61 = vrot.slane %v56, %v60
    %v63 = vadd.f32 %v54, %v61
    %v64 = vadd.f32 %v55, %v61
    %v65 = vpack.c.bf16 %v64, %v63
    %v67 = vunpack.c.l.b16 %v65
    %v68 = vunpack.c.h.b16 %v65
    %v69 = vpack.c.b16 %v67, %v67
    %v70 = vpack.c.b16 %v68, %v68
    %73 = vst [vmem:[#allocation2] sm:$0xf] %v69
    %74 = vst [vmem:[#allocation2 + $0x4] sm:$0xf] %v70
  $region21: #{embedding_transformer_forward.18} parent=0 // pred_fallthru
    _
  %v75 = vld [vmem:[#allocation2] sm:$0xf]
  %v76 = vld [vmem:[#allocation2 + $0x4] sm:$0xf]
  %v77 = vld [vmem:[%s3] sm:$0xff]
  %v78 = vld [vmem:[%s3 + $0x8] sm:$0xf]
  %v79 = vld [vmem:[%s3 + $0xc] sm:$0xff]
  %v80 = vld [vmem:[%s3 + $0x14] sm:$0xf]
  %v81 = vld [vmem:[%s3 + $0x18] sm:$0xff]
  %v82 = vld [vmem:[%s3 + $0x20] sm:$0xf]
  %v83 = vld [vmem:[%s3 + $0x24] sm:$0xff]
  %v84 = vld [vmem:[%s3 + $0x2c] sm:$0xf]
  %v85 = vld [vmem:[%s3 + $0x30] sm:$0xff]
  %v86 = vld [vmem:[%s3 + $0x38] sm:$0xf]
  %v87 = vld [vmem:[%s3 + $0x3c] sm:$0xff]
  %v88 = vld [vmem:[%s3 + $0x44] sm:$0xf]
  %v89 = vld [vmem:[%s3 + $0x48] sm:$0xff]
  %v90 = vld [vmem:[%s3 + $0x50] sm:$0xf]
  %v91 = vld [vmem:[%s3 + $0x54] sm:$0xff]
  %v92 = vld [vmem:[%s3 + $0x5c] sm:$0xf]
  %v93 = vld [vmem:[%s3 + $0x60] sm:$0xff]
  %v94 = vld [vmem:[%s3 + $0x68] sm:$0xf]
  %v95 = vld [vmem:[%s3 + $0x6c] sm:$0xff]
  %v96 = vld [vmem:[%s3 + $0x74] sm:$0xf]
  %v97 = vld [vmem:[%s3 + $0x78] sm:$0xff]
  %v98 = vld [vmem:[%s3 + $0x80] sm:$0xf]
  %v99 = vld [vmem:[%s3 + $0x84] sm:$0xff]
  %v100 = vld [vmem:[%s3 + $0x8c] sm:$0xf]
  %v101 = vld [vmem:[%s3 + $0x90] sm:$0xff]
  %v102 = vld [vmem:[%s3 + $0x98] sm:$0xf]
  %v103 = vld [vmem:[%s3 + $0x9c] sm:$0xff]
  %v104 = vld [vmem:[%s3 + $0xa4] sm:$0xf]
  %v105 = vld [vmem:[%s3 + $0xa8] sm:$0xff]
  %v106 = vld [vmem:[%s3 + $0xb0] sm:$0xf]
  %v107 = vld [vmem:[%s3 + $0xb4] sm:$0xff]
  %v108 = vld [vmem:[%s3 + $0xbc] sm:$0xf]
  %v111 = vunpack.c.l.b16 %v75
  %v112 = vunpack.c.l.b16 %v76
  %v113 = vpack.c.b16 %v112, %v111
  %v147 = vunpack.c.l.b16 %v77
  %v148 = vunpack.c.h.b16 %v77
  %v149 = vunpack.c.l.b16 %v78
  %v150 = vunpack.c.l.b16 %v79
  %v151 = vunpack.c.h.b16 %v79
  %v152 = vunpack.c.l.b16 %v80
  %v153 = vunpack.c.l.b16 %v81
  %v154 = vunpack.c.h.b16 %v81
  %v155 = vunpack.c.l.b16 %v82
  %v156 = vunpack.c.l.b16 %v83
  %v157 = vunpack.c.h.b16 %v83
  %v158 = vunpack.c.l.b16 %v84
  %v159 = vunpack.c.l.b16 %v85
  %v160 = vunpack.c.h.b16 %v85
  %v161 = vunpack.c.l.b16 %v86
  %v162 = vunpack.c.l.b16 %v87
  %v163 = vunpack.c.h.b16 %v87
  %v164 = vunpack.c.l.b16 %v88
  %v165 = vunpack.c.l.b16 %v89
  %v166 = vunpack.c.h.b16 %v89
  %v167 = vunpack.c.l.b16 %v90
  %v168 = vunpack.c.l.b16 %v91
  %v169 = vunpack.c.h.b16 %v91
  %v170 = vunpack.c.l.b16 %v92
  %v171 = vunpack.c.l.b16 %v93
  %v172 = vunpack.c.h.b16 %v93
  %v173 = vunpack.c.l.b16 %v94
  %v174 = vunpack.c.l.b16 %v95
  %v175 = vunpack.c.h.b16 %v95
  %v176 = vunpack.c.l.b16 %v96
  %v177 = vunpack.c.l.b16 %v97
  %v178 = vunpack.c.h.b16 %v97
  %v179 = vunpack.c.l.b16 %v98
  %v180 = vunpack.c.l.b16 %v99
  %v181 = vunpack.c.h.b16 %v99
  %v182 = vunpack.c.l.b16 %v100
  %v183 = vunpack.c.l.b16 %v101
  %v184 = vunpack.c.h.b16 %v101
  %v185 = vunpack.c.l.b16 %v102
  %v186 = vunpack.c.l.b16 %v103
  %v187 = vunpack.c.h.b16 %v103
  %v188 = vunpack.c.l.b16 %v104
  %v189 = vunpack.c.l.b16 %v105
  %v190 = vunpack.c.h.b16 %v105
  %v191 = vunpack.c.l.b16 %v106
  %v192 = vunpack.c.l.b16 %v107
  %v193 = vunpack.c.h.b16 %v107
  %v194 = vunpack.c.l.b16 %v108
  %v195 = vpack.c.b16 %v150, %v147
  %v196 = vpack.c.b16 %v151, %v148
  %v197 = vpack.c.b16 %v152, %v149
  %v198 = vpack.c.b16 %v156, %v153
  %v199 = vpack.c.b16 %v157, %v154
  %v200 = vpack.c.b16 %v158, %v155
  %v201 = vpack.c.b16 %v162, %v159
  %v202 = vpack.c.b16 %v163, %v160
  %v203 = vpack.c.b16 %v164, %v161
  %v204 = vpack.c.b16 %v168, %v165
  %v205 = vpack.c.b16 %v169, %v166
  %v206 = vpack.c.b16 %v170, %v167
  %v207 = vpack.c.b16 %v174, %v171
  %v208 = vpack.c.b16 %v175, %v172
  %v209 = vpack.c.b16 %v176, %v173
  %v210 = vpack.c.b16 %v180, %v177
  %v211 = vpack.c.b16 %v181, %v178
  %v212 = vpack.c.b16 %v182, %v179
  %v213 = vpack.c.b16 %v186, %v183
  %v214 = vpack.c.b16 %v187, %v184
  %v215 = vpack.c.b16 %v188, %v185
  %v216 = vpack.c.b16 %v192, %v189
  %v217 = vpack.c.b16 %v193, %v190
  %v218 = vpack.c.b16 %v194, %v191
  %243 = vmatprep.subr.bf16.mxu0 %v217
  %244 = vmatpush1.bf16.msra.mxu0 %v216
  %245 = vmatprep.subr.bf16.mxu0 %v214
  %246 = vmatpush1.bf16.msra.mxu0 %v213
  %247 = vmatprep.subr.bf16.mxu0 %v211
  %248 = vmatpush1.bf16.msra.mxu0 %v210
  %249 = vmatprep.subr.bf16.mxu0 %v208
  %250 = vmatpush1.bf16.msra.mxu0 %v207
  %251 = vmatprep.subr.bf16.mxu0 %v205
  %252 = vmatpush1.bf16.msra.mxu0 %v204
  %253 = vmatprep.subr.bf16.mxu0 %v202
  %254 = vmatpush1.bf16.msra.mxu0 %v201
  %255 = vmatprep.subr.bf16.mxu0 %v199
  %256 = vmatpush1.bf16.msra.mxu0 %v198
  %257 = vmatprep.subr.bf16.mxu0 %v196
  %258 = vmatpush1.bf16.msra.mxu0 %v195
  %259 = vmatprep.subr.bf16.mxu0 0
  %260 = vmatpush2.bf16.msra.mxu0 0
  %261 = vmatprep.subr.bf16.mxu0 0
  %262 = vmatpush2.bf16.msra.mxu0 0
  %263 = vmatprep.subr.bf16.mxu0 0
  %264 = vmatpush2.bf16.msra.mxu0 0
  %265 = vmatprep.subr.bf16.mxu0 0
  %266 = vmatpush2.bf16.msra.mxu0 0
  %267 = vmatprep.subr.bf16.mxu0 0
  %268 = vmatpush2.bf16.msra.mxu0 0
  %269 = vmatprep.subr.bf16.mxu0 0
  %270 = vmatpush2.bf16.msra.mxu0 0
  %271 = vmatprep.subr.bf16.mxu0 0
  %272 = vmatpush2.bf16.msra.mxu0 0
  %273 = vmatprep.subr.bf16.mxu0 0
  %274 = vmatpush2.bf16.msra.mxu0 0
  %275 = vmatprep.mubr.bf16.mxu0 0
  %276 = vmatmul.mubr.bf16.gmra.mxu0 %v113
  %v277 = vpop.f32.mrf.mxu0
  %v278 = vadd.f32 0.0, %v277
  %v279 = vpop.f32.mrf.mxu0
  %v280 = vadd.f32 0.0, %v279
  %v281 = vpop.f32.mrf.mxu0
  %v282 = vadd.f32 0.0, %v281
  %v283 = vpop.f32.mrf.mxu0
  %v284 = vadd.f32 0.0, %v283
  %285 = vdwg.mxu0
  %286 = vmatprep.subr.bf16.mxu0 0
  %287 = vmatpush1.bf16.msra.mxu0 %v218
  %288 = vmatprep.subr.bf16.mxu0 0
  %289 = vmatpush1.bf16.msra.mxu0 %v215
  %290 = vmatprep.subr.bf16.mxu0 0
  %291 = vmatpush1.bf16.msra.mxu0 %v212
  %292 = vmatprep.subr.bf16.mxu0 0
  %293 = vmatpush1.bf16.msra.mxu0 %v209
  %294 = vmatprep.subr.bf16.mxu0 0
  %295 = vmatpush1.bf16.msra.mxu0 %v206
  %296 = vmatprep.subr.bf16.mxu0 0
  %297 = vmatpush1.bf16.msra.mxu0 %v203
  %298 = vmatprep.subr.bf16.mxu0 0
  %299 = vmatpush1.bf16.msra.mxu0 %v200
  %300 = vmatprep.subr.bf16.mxu0 0
  %301 = vmatpush1.bf16.msra.mxu0 %v197
  %302 = vmatprep.subr.bf16.mxu0 0
  %303 = vmatpush2.bf16.msra.mxu0 0
  %304 = vmatprep.subr.bf16.mxu0 0
  %305 = vmatpush2.bf16.msra.mxu0 0
  %306 = vmatprep.subr.bf16.mxu0 0
  %307 = vmatpush2.bf16.msra.mxu0 0
  %308 = vmatprep.subr.bf16.mxu0 0
  %309 = vmatpush2.bf16.msra.mxu0 0
  %310 = vmatprep.subr.bf16.mxu0 0
  %311 = vmatpush2.bf16.msra.mxu0 0
  %312 = vmatprep.subr.bf16.mxu0 0
  %313 = vmatpush2.bf16.msra.mxu0 0
  %314 = vmatprep.subr.bf16.mxu0 0
  %315 = vmatpush2.bf16.msra.mxu0 0
  %316 = vmatprep.subr.bf16.mxu0 0
  %317 = vmatpush2.bf16.msra.mxu0 0
  %318 = vmatprep.mubr.bf16.mxu0 0
  %319 = vmatmul.mubr.bf16.gmra.mxu0 %v113
  %v320 = vpop.f32.mrf.mxu0
  %v321 = vadd.f32 0.0, %v320
  %v322 = vpop.f32.mrf.mxu0
  %v323 = vpop.f32.mrf.mxu0
  %v324 = vadd.f32 0.0, %v323
  %v325 = vpop.f32.mrf.mxu0
  %326 = vdwg.mxu0
  %v327 = vpack.c.bf16 %v282, %v278
  %v328 = vpack.c.bf16 %v284, %v280
  %v329 = vpack.c.bf16 %v324, %v321
  %v333 = vunpack.c.l.b16 %v327
  %v334 = vunpack.c.l.b16 %v328
  %v335 = vunpack.c.l.b16 %v329
  %v336 = vunpack.c.h.b16 %v327
  %v337 = vunpack.c.h.b16 %v328
  %v338 = vunpack.c.h.b16 %v329
  %v339 = vpack.c.b16 %v334, %v333
  %v340 = vpack.c.b16 %v335, %v335
  %v341 = vpack.c.b16 %v337, %v336
  %v342 = vpack.c.b16 %v338, %v338
  %347 = vst [vmem:[%s4] sm:$0xff] %v339
  %348 = vst [vmem:[%s4 + $0x8] sm:$0xf] %v340
  %349 = vst [vmem:[%s4 + $0xc] sm:$0xff] %v341
  %350 = vst [vmem:[%s4 + $0x14] sm:$0xf] %v342
  // Predicated region
  $region22: #{embedding_transformer_forward.18} parent=0 // pred_check
    _
  $region23: #{embedding_transformer_forward.18} parent=0 // pred_check_branch
    %352 = sbr.rel (0) target = $region25
  $region24: #{embedding_transformer_forward.18} parent=0 // pred_region
    _
  $region25: #{embedding_transformer_forward.18} parent=0 // pred_fallthru
    _
  // Predicated region
  $region26: #{embedding_transformer_forward.18} parent=0 // pred_check
    _
  $region27: #{embedding_transformer_forward.18} parent=0 // pred_check_branch
    %354 = sbr.rel (0) target = $region29
  $region28: #{embedding_transformer_forward.18} parent=0 // pred_region
    _
  $region29: #{embedding_transformer_forward.18} parent=0 // pred_fallthru
    _

</llo_original>
